<compile_context>
chip_gen: v7x
topology: tpu7x:2x2x1
jax: 0.10.0
libtpu: 0.0.40
codegen_flags: <defaults>
</compile_context>

<pallas_src>
import functools

import numpy as np
import jax
import jax.numpy as jnp
from jax.experimental import pallas as pl
from jax.experimental.pallas import tpu as pltpu


# ----------------------------------------------------------------------------
# Host-side constant matrices
# ----------------------------------------------------------------------------
def _bilinear_matrix(n_out, n_in):
    """Resize matrix A (n_out, n_in): bilinear interpolation, align_corners=True."""
    A = np.zeros((n_out, n_in), dtype=np.float32)
    if n_out == 1:
        A[0, 0] = 1.0
        return A
    scale = (n_in - 1) / (n_out - 1)
    for i in range(n_out):
        src = i * scale
        i0 = min(int(np.floor(src)), n_in - 1)
        i1 = min(i0 + 1, n_in - 1)
        f = src - i0
        A[i, i0] += 1.0 - f
        A[i, i1] += f
    return A


def _build_constants(H, W):
    """Builds:
       E9 : (H*W, 9*H*W)    a @ E9 -> 9 lane-stacked, zero-padded tap-shifted copies of a
       D9 : (H*W, 9*HW2P)   same, but with the bilinear 1/2x downsample folded in (BCU conv
                            input); half-res frame padded from H2*W2 to HW2P (mult of 128)
       U  : (HW2P, H*W)     bilinear upsample back to full res; padded rows are zero
    """
    H2, W2 = H // 2, W // 2
    HW, HW2 = H * W, H2 * W2
    HW2P = ((HW2 + 127) // 128) * 128

    # --- E9: full-res zero-padded 3x3 tap shifts -----------------------------
    E9 = np.zeros((HW, 9, HW), np.float32)
    for di in range(3):
        for dj in range(3):
            t = di * 3 + dj
            for i in range(H):
                hh = i + di - 1
                if not (0 <= hh < H):
                    continue
                for j in range(W):
                    ww = j + dj - 1
                    if 0 <= ww < W:
                        E9[hh * W + ww, t, i * W + j] = 1.0
    E9 = E9.reshape(HW, 9 * HW)

    # --- bilinear resize matrices (align_corners=True) ------------------------
    Dh, Dw = _bilinear_matrix(H2, H), _bilinear_matrix(W2, W)
    Uh, Uw = _bilinear_matrix(H, H2), _bilinear_matrix(W, W2)

    # --- D9: downsample + zero-pad + tap shift folded into one matrix ---------
    # M_down[h*W+w, a*W2+b] = Dh[a,h] * Dw[b,w]
    M_down = np.einsum('ah,bw->hwab', Dh, Dw).reshape(HW, HW2)
    D9 = np.zeros((HW, 9, HW2P), np.float32)
    for di in range(3):
        for dj in range(3):
            t = di * 3 + dj
            for i2 in range(H2):
                a2 = i2 + di - 1
                if not (0 <= a2 < H2):
                    continue
                for j2 in range(W2):
                    b2 = j2 + dj - 1
                    if 0 <= b2 < W2:
                        D9[:, t, i2 * W2 + j2] = M_down[:, a2 * W2 + b2]
    D9 = D9.reshape(HW, 9 * HW2P)

    # --- U: upsample half-res (padded) frame -> full-res valid frame ----------
    # M_up[a*W2+b, i*W+j] = Uh[i,a] * Uw[j,b]; padded rows (>= HW2) stay zero so the
    # garbage half-res lanes (which hold relu(bias)) never contribute.
    M_up = np.einsum('ia,jb->abij', Uh, Uw).reshape(HW2, HW)
    U = np.zeros((HW2P, HW), np.float32)
    U[:HW2, :] = M_up
    return E9, D9, U, HW2P


def _prep_weights(weights, biases, C, G):
    """Per-conv stacked tap weights, block-diagonal over the G fused images.
       W_flat[g*C+oc, t*G*C + g*C + ic] = w[oc, ic, di, dj]  (t = di*3+dj).
       Returns (5, G*C, 9*G*C) weights and (5, G*C, 1) bias columns."""
    GC = G * C
    w_list, b_list = [], []
    for w, b in zip(weights, biases):
        wt = np.transpose(np.asarray(w, np.float32), (2, 3, 0, 1)).reshape(9, C, C)
        Wf = np.zeros((GC, 9 * GC), np.float32)
        for t in range(9):
            for g in range(G):
                Wf[g * C:(g + 1) * C, t * GC + g * C:t * GC + (g + 1) * C] = wt[t]
        w_list.append(Wf)
        b_list.append(np.tile(np.asarray(b, np.float32), G).reshape(GC, 1))
    return np.stack(w_list), np.stack(b_list)


# ----------------------------------------------------------------------------
# Pallas kernel (one fused (G*C, H*W) slab per grid step)
# ----------------------------------------------------------------------------
def _mrm_kernel(x_ref, w_ref, b_ref, e9_ref, d9_ref, u_ref, o_ref, *, HW, HW2P):
    f32 = jnp.float32
    GC = x_ref.shape[0]

    def conv_relu(a, idx, e_ref, fro):
        # a: (GC, frame_in).  One wide matmul produces all 9 zero-padded tap-shifted
        # copies; lane-tile-aligned slices are stacked along sublanes so the 3x3 conv
        # collapses to a single K = 9*GC matmul against block-diagonal tap weights.
        p = jnp.dot(a, e_ref[...], preferred_element_type=f32)        # (GC, 9*fro)
        p9 = jnp.concatenate(
            [p[:, t * fro:(t + 1) * fro] for t in range(9)], axis=0)   # (9*GC, fro)
        acc = jnp.dot(w_ref[idx], p9, preferred_element_type=f32)      # (GC, fro)
        return jnp.maximum(acc + b_ref[idx], 0.0)

    x = x_ref[...].astype(f32)                          # (GC, HW)

    a1 = conv_relu(x, 0, e9_ref, HW)                    # conv1
    a2 = conv_relu(a1, 1, e9_ref, HW)                   # conv2 (first)
    a3 = conv_relu(a2, 2, e9_ref, HW)                   # conv2 (second)
    g = conv_relu(a1, 3, d9_ref, HW2P)                  # BCU conv at half res (Down folded into D9)
    # Bilinear upsample; operand and matrix are non-negative, so the ReLU is a no-op.
    up = jnp.dot(g, u_ref[...], preferred_element_type=f32)            # (GC, HW)
    a4 = conv_relu(a3 + up, 4, e9_ref, HW)              # conv3
    o_ref[...] = (a4 + x).astype(o_ref.dtype)


def mrm_forward(x, weights, biases):
    """x: (N, C, H, W) f32.
    weights: 5 arrays (C, C, 3, 3) in order [conv1, conv2a, conv2b, bcu_conv, conv3].
    biases:  5 arrays (C,) in the same order."""
    N, C, H, W = x.shape
    assert H % 2 == 0 and W % 2 == 0
    HW = H * W

    # Fuse G images per slab so the 8 f32 sublanes are full (G*C <= 8, G | N).
    G = 1
    while (G * 2) * C <= 8 and N % (G * 2) == 0:
        G *= 2
    GC = G * C
    NG = N // G

    E9, D9, U, HW2P = _build_constants(H, W)
    w_stack, b_stack = _prep_weights(weights, biases, C, G)

    x_flat = jnp.asarray(x, jnp.float32).reshape(N * C, HW)
    kernel = functools.partial(_mrm_kernel, HW=HW, HW2P=HW2P)

    out = pl.pallas_call(
        kernel,
        out_shape=jax.ShapeDtypeStruct((N * C, HW), jnp.float32),
        grid=(NG,),
        in_specs=[
            pl.BlockSpec((GC, HW), lambda g: (g, 0)),
            pl.BlockSpec(w_stack.shape, lambda g: (0, 0, 0)),
            pl.BlockSpec(b_stack.shape, lambda g: (0, 0, 0)),
            pl.BlockSpec(E9.shape, lambda g: (0, 0)),
            pl.BlockSpec(D9.shape, lambda g: (0, 0)),
            pl.BlockSpec(U.shape, lambda g: (0, 0)),
        ],
        out_specs=pl.BlockSpec((GC, HW), lambda g: (g, 0)),
        compiler_params=pltpu.CompilerParams(
            dimension_semantics=("parallel",)),
    )(x_flat, jnp.asarray(w_stack), jnp.asarray(b_stack),
      jnp.asarray(E9), jnp.asarray(D9), jnp.asarray(U))
    return out.reshape(N, C, H, W)


# ----------------------------------------------------------------------------
# Pure-JAX reference (high precision) for correctness checking
# ----------------------------------------------------------------------------
def _conv3x3_ref(x, w, b):
    y = jax.lax.conv_general_dilated(
        x, w, (1, 1), 'SAME',
        dimension_numbers=('NCHW', 'OIHW', 'NCHW'),
        precision=jax.lax.Precision.HIGHEST)
    return jax.nn.relu(y + b[None, :, None, None])


def _resize_ref(x, Ah, Aw):
    hp = jax.lax.Precision.HIGHEST
    y = jnp.einsum('oh,nchw->ncow', Ah, x, precision=hp)
    return jnp.einsum('pw,ncow->ncop', Aw, y, precision=hp)


def mrm_reference(x, weights, biases):
    N, C, H, W = x.shape
    H2, W2 = H // 2, W // 2
    Dh = jnp.asarray(_bilinear_matrix(H2, H))
    Dw = jnp.asarray(_bilinear_matrix(W2, W))
    Uh = jnp.asarray(_bilinear_matrix(H, H2))
    Uw = jnp.asarray(_bilinear_matrix(W, W2))
    w1, w2a, w2b, wb, w3 = weights
    b1, b2a, b2b, bb, b3 = biases
    c1 = _conv3x3_ref(x, w1, b1)
    c2 = _conv3x3_ref(_conv3x3_ref(c1, w2a, b2a), w2b, b2b)
    bcu = jax.nn.relu(_resize_ref(_conv3x3_ref(_resize_ref(c1, Dh, Dw), wb, bb), Uh, Uw))
    c3 = _conv3x3_ref(c2 + bcu, w3, b3)
    return c3 + x


# ----------------------------------------------------------------------------
if __name__ == "__main__":
    key = jax.random.PRNGKey(0)
    keys = jax.random.split(key, 11)

    N, C, H, W = 2, 4, 16, 16
    x = jax.random.normal(keys[0], (N, C, H, W), jnp.float32)

    # Deterministic Conv2d(C, C, 3) params (kaiming-uniform-style bounds), 5 convs:
    # [conv1, conv2a, conv2b, bcu_conv, conv3].
    fan_in = C * 3 * 3
    bound = 1.0 / np.sqrt(fan_in)
    weights, biases = [], []
    for i in range(5):
        weights.append(jax.random.uniform(keys[1 + 2 * i], (C, C, 3, 3),
                                          jnp.float32, -bound, bound))
        biases.append(jax.random.uniform(keys[2 + 2 * i], (C,),
                                         jnp.float32, -bound, bound))

    out = jax.block_until_ready(mrm_forward(x, weights, biases))
    assert out.shape == (N, C, H, W)

    ref = jax.block_until_ready(mrm_reference(x, weights, biases))
    err = np.max(np.abs(np.asarray(out) - np.asarray(ref)))
    # Kernel uses default (single-pass bf16) MXU precision per the perf review;
    # reference is computed at HIGHEST precision, hence the relaxed tolerance.
    assert np.allclose(np.asarray(out), np.asarray(ref), rtol=2e-2, atol=2e-2), \
        f"max abs err {err}"

    print("KERNEL_OK")
</pallas_src>

<mosaic_0001>
module attributes {stable_mosaic.version = 11 : i64} {
  func.func @_mrm_kernel(%arg0: i32, %arg1: memref<8x256xf32, #tpu.memory_space<vmem>>, %arg2: memref<5x8x72xf32, #tpu.memory_space<vmem>>, %arg3: memref<5x8x1xf32, #tpu.memory_space<vmem>>, %arg4: memref<256x2304xf32, #tpu.memory_space<vmem>>, %arg5: memref<256x1152xf32, #tpu.memory_space<vmem>>, %arg6: memref<128x256xf32, #tpu.memory_space<vmem>>, %arg7: memref<8x256xf32, #tpu.memory_space<vmem>>) attributes {dimension_semantics = [#tpu.dimension_semantics<parallel>], iteration_bounds = array<i64: 1>, scalar_prefetch = 0 : i64, scratch_operands = 0 : i64, tpu.core_type = #tpu.core_type<tc>, window_params = [{transform_indices = @transform_0, window_bounds = array<i64: 8, 256>}, {pipeline_mode = #tpu.pipeline_mode<synchronous>, transform_indices = @transform_1, window_bounds = array<i64: 5, 8, 72>}, {pipeline_mode = #tpu.pipeline_mode<synchronous>, transform_indices = @transform_2, window_bounds = array<i64: 5, 8, 1>}, {pipeline_mode = #tpu.pipeline_mode<synchronous>, transform_indices = @transform_3, window_bounds = array<i64: 256, 2304>}, {pipeline_mode = #tpu.pipeline_mode<synchronous>, transform_indices = @transform_4, window_bounds = array<i64: 256, 1152>}, {pipeline_mode = #tpu.pipeline_mode<synchronous>, transform_indices = @transform_5, window_bounds = array<i64: 128, 256>}, {transform_indices = @transform_6, window_bounds = array<i64: 8, 256>}]} {
    %c0 = arith.constant 0 : index
    %c0_0 = arith.constant 0 : index
    %0 = vector.load %arg1[%c0, %c0_0] : memref<8x256xf32, #tpu.memory_space<vmem>>, vector<8x256xf32>
    %c0_1 = arith.constant 0 : index
    %c0_2 = arith.constant 0 : index
    %1 = vector.load %arg4[%c0_1, %c0_2] : memref<256x2304xf32, #tpu.memory_space<vmem>>, vector<256x2304xf32>
    %cst = arith.constant dense<0.000000e+00> : vector<8x2304xf32>
    %2 = tpu.matmul %0, %1, %cst {dimension_numbers = #tpu.dot_dimension_numbers<[1], [0], [0], [1], [0, 0, 1, 1], [], []>} : vector<8x256xf32>, vector<256x2304xf32>, vector<8x2304xf32> -> vector<8x2304xf32>
    %3 = vector.extract_strided_slice %2 {offsets = [0, 0], sizes = [8, 256], strides = [1, 1]} : vector<8x2304xf32> to vector<8x256xf32>
    %4 = vector.extract_strided_slice %2 {offsets = [0, 256], sizes = [8, 256], strides = [1, 1]} : vector<8x2304xf32> to vector<8x256xf32>
    %5 = vector.extract_strided_slice %2 {offsets = [0, 512], sizes = [8, 256], strides = [1, 1]} : vector<8x2304xf32> to vector<8x256xf32>
    %6 = vector.extract_strided_slice %2 {offsets = [0, 768], sizes = [8, 256], strides = [1, 1]} : vector<8x2304xf32> to vector<8x256xf32>
    %7 = vector.extract_strided_slice %2 {offsets = [0, 1024], sizes = [8, 256], strides = [1, 1]} : vector<8x2304xf32> to vector<8x256xf32>
    %8 = vector.extract_strided_slice %2 {offsets = [0, 1280], sizes = [8, 256], strides = [1, 1]} : vector<8x2304xf32> to vector<8x256xf32>
    %9 = vector.extract_strided_slice %2 {offsets = [0, 1536], sizes = [8, 256], strides = [1, 1]} : vector<8x2304xf32> to vector<8x256xf32>
    %10 = vector.extract_strided_slice %2 {offsets = [0, 1792], sizes = [8, 256], strides = [1, 1]} : vector<8x2304xf32> to vector<8x256xf32>
    %11 = vector.extract_strided_slice %2 {offsets = [0, 2048], sizes = [8, 256], strides = [1, 1]} : vector<8x2304xf32> to vector<8x256xf32>
    %12 = tpu.concatenate %3, %4, %5, %6, %7, %8, %9, %10, %11 in 0 : vector<8x256xf32>, vector<8x256xf32>, vector<8x256xf32>, vector<8x256xf32>, vector<8x256xf32>, vector<8x256xf32>, vector<8x256xf32>, vector<8x256xf32>, vector<8x256xf32> -> vector<72x256xf32>
    %c0_3 = arith.constant 0 : index
    %c0_4 = arith.constant 0 : index
    %c0_5 = arith.constant 0 : index
    %13 = vector.load %arg2[%c0_3, %c0_4, %c0_5] : memref<5x8x72xf32, #tpu.memory_space<vmem>>, vector<1x8x72xf32>
    %14 = vector.shape_cast %13 : vector<1x8x72xf32> to vector<8x72xf32>
    %cst_6 = arith.constant dense<0.000000e+00> : vector<8x256xf32>
    %15 = tpu.matmul %14, %12, %cst_6 {dimension_numbers = #tpu.dot_dimension_numbers<[1], [0], [0], [1], [0, 0, 1, 1], [], []>} : vector<8x72xf32>, vector<72x256xf32>, vector<8x256xf32> -> vector<8x256xf32>
    %c0_7 = arith.constant 0 : index
    %c0_8 = arith.constant 0 : index
    %c0_9 = arith.constant 0 : index
    %16 = vector.load %arg3[%c0_7, %c0_8, %c0_9] : memref<5x8x1xf32, #tpu.memory_space<vmem>>, vector<1x8x1xf32>
    %17 = vector.shape_cast %16 : vector<1x8x1xf32> to vector<8x1xf32>
    %18 = vector.broadcast %17 : vector<8x1xf32> to vector<8x256xf32>
    %19 = arith.addf %15, %18 : vector<8x256xf32>
    %cst_10 = arith.constant 0.000000e+00 : f32
    %20 = vector.broadcast %cst_10 : f32 to vector<8x256xf32>
    %21 = arith.maximumf %19, %20 : vector<8x256xf32>
    %c0_11 = arith.constant 0 : index
    %c0_12 = arith.constant 0 : index
    %22 = vector.load %arg4[%c0_11, %c0_12] : memref<256x2304xf32, #tpu.memory_space<vmem>>, vector<256x2304xf32>
    %cst_13 = arith.constant dense<0.000000e+00> : vector<8x2304xf32>
    %23 = tpu.matmul %21, %22, %cst_13 {dimension_numbers = #tpu.dot_dimension_numbers<[1], [0], [0], [1], [0, 0, 1, 1], [], []>} : vector<8x256xf32>, vector<256x2304xf32>, vector<8x2304xf32> -> vector<8x2304xf32>
    %24 = vector.extract_strided_slice %23 {offsets = [0, 0], sizes = [8, 256], strides = [1, 1]} : vector<8x2304xf32> to vector<8x256xf32>
    %25 = vector.extract_strided_slice %23 {offsets = [0, 256], sizes = [8, 256], strides = [1, 1]} : vector<8x2304xf32> to vector<8x256xf32>
    %26 = vector.extract_strided_slice %23 {offsets = [0, 512], sizes = [8, 256], strides = [1, 1]} : vector<8x2304xf32> to vector<8x256xf32>
    %27 = vector.extract_strided_slice %23 {offsets = [0, 768], sizes = [8, 256], strides = [1, 1]} : vector<8x2304xf32> to vector<8x256xf32>
    %28 = vector.extract_strided_slice %23 {offsets = [0, 1024], sizes = [8, 256], strides = [1, 1]} : vector<8x2304xf32> to vector<8x256xf32>
    %29 = vector.extract_strided_slice %23 {offsets = [0, 1280], sizes = [8, 256], strides = [1, 1]} : vector<8x2304xf32> to vector<8x256xf32>
    %30 = vector.extract_strided_slice %23 {offsets = [0, 1536], sizes = [8, 256], strides = [1, 1]} : vector<8x2304xf32> to vector<8x256xf32>
    %31 = vector.extract_strided_slice %23 {offsets = [0, 1792], sizes = [8, 256], strides = [1, 1]} : vector<8x2304xf32> to vector<8x256xf32>
    %32 = vector.extract_strided_slice %23 {offsets = [0, 2048], sizes = [8, 256], strides = [1, 1]} : vector<8x2304xf32> to vector<8x256xf32>
    %33 = tpu.concatenate %24, %25, %26, %27, %28, %29, %30, %31, %32 in 0 : vector<8x256xf32>, vector<8x256xf32>, vector<8x256xf32>, vector<8x256xf32>, vector<8x256xf32>, vector<8x256xf32>, vector<8x256xf32>, vector<8x256xf32>, vector<8x256xf32> -> vector<72x256xf32>
    %c1 = arith.constant 1 : index
    %c0_14 = arith.constant 0 : index
    %c0_15 = arith.constant 0 : index
    %34 = vector.load %arg2[%c1, %c0_14, %c0_15] : memref<5x8x72xf32, #tpu.memory_space<vmem>>, vector<1x8x72xf32>
    %35 = vector.shape_cast %34 : vector<1x8x72xf32> to vector<8x72xf32>
    %cst_16 = arith.constant dense<0.000000e+00> : vector<8x256xf32>
    %36 = tpu.matmul %35, %33, %cst_16 {dimension_numbers = #tpu.dot_dimension_numbers<[1], [0], [0], [1], [0, 0, 1, 1], [], []>} : vector<8x72xf32>, vector<72x256xf32>, vector<8x256xf32> -> vector<8x256xf32>
    %c1_17 = arith.constant 1 : index
    %c0_18 = arith.constant 0 : index
    %c0_19 = arith.constant 0 : index
    %37 = vector.load %arg3[%c1_17, %c0_18, %c0_19] : memref<5x8x1xf32, #tpu.memory_space<vmem>>, vector<1x8x1xf32>
    %38 = vector.shape_cast %37 : vector<1x8x1xf32> to vector<8x1xf32>
    %39 = vector.broadcast %38 : vector<8x1xf32> to vector<8x256xf32>
    %40 = arith.addf %36, %39 : vector<8x256xf32>
    %cst_20 = arith.constant 0.000000e+00 : f32
    %41 = vector.broadcast %cst_20 : f32 to vector<8x256xf32>
    %42 = arith.maximumf %40, %41 : vector<8x256xf32>
    %c0_21 = arith.constant 0 : index
    %c0_22 = arith.constant 0 : index
    %43 = vector.load %arg4[%c0_21, %c0_22] : memref<256x2304xf32, #tpu.memory_space<vmem>>, vector<256x2304xf32>
    %cst_23 = arith.constant dense<0.000000e+00> : vector<8x2304xf32>
    %44 = tpu.matmul %42, %43, %cst_23 {dimension_numbers = #tpu.dot_dimension_numbers<[1], [0], [0], [1], [0, 0, 1, 1], [], []>} : vector<8x256xf32>, vector<256x2304xf32>, vector<8x2304xf32> -> vector<8x2304xf32>
    %45 = vector.extract_strided_slice %44 {offsets = [0, 0], sizes = [8, 256], strides = [1, 1]} : vector<8x2304xf32> to vector<8x256xf32>
    %46 = vector.extract_strided_slice %44 {offsets = [0, 256], sizes = [8, 256], strides = [1, 1]} : vector<8x2304xf32> to vector<8x256xf32>
    %47 = vector.extract_strided_slice %44 {offsets = [0, 512], sizes = [8, 256], strides = [1, 1]} : vector<8x2304xf32> to vector<8x256xf32>
    %48 = vector.extract_strided_slice %44 {offsets = [0, 768], sizes = [8, 256], strides = [1, 1]} : vector<8x2304xf32> to vector<8x256xf32>
    %49 = vector.extract_strided_slice %44 {offsets = [0, 1024], sizes = [8, 256], strides = [1, 1]} : vector<8x2304xf32> to vector<8x256xf32>
    %50 = vector.extract_strided_slice %44 {offsets = [0, 1280], sizes = [8, 256], strides = [1, 1]} : vector<8x2304xf32> to vector<8x256xf32>
    %51 = vector.extract_strided_slice %44 {offsets = [0, 1536], sizes = [8, 256], strides = [1, 1]} : vector<8x2304xf32> to vector<8x256xf32>
    %52 = vector.extract_strided_slice %44 {offsets = [0, 1792], sizes = [8, 256], strides = [1, 1]} : vector<8x2304xf32> to vector<8x256xf32>
    %53 = vector.extract_strided_slice %44 {offsets = [0, 2048], sizes = [8, 256], strides = [1, 1]} : vector<8x2304xf32> to vector<8x256xf32>
    %54 = tpu.concatenate %45, %46, %47, %48, %49, %50, %51, %52, %53 in 0 : vector<8x256xf32>, vector<8x256xf32>, vector<8x256xf32>, vector<8x256xf32>, vector<8x256xf32>, vector<8x256xf32>, vector<8x256xf32>, vector<8x256xf32>, vector<8x256xf32> -> vector<72x256xf32>
    %c2 = arith.constant 2 : index
    %c0_24 = arith.constant 0 : index
    %c0_25 = arith.constant 0 : index
    %55 = vector.load %arg2[%c2, %c0_24, %c0_25] : memref<5x8x72xf32, #tpu.memory_space<vmem>>, vector<1x8x72xf32>
    %56 = vector.shape_cast %55 : vector<1x8x72xf32> to vector<8x72xf32>
    %cst_26 = arith.constant dense<0.000000e+00> : vector<8x256xf32>
    %57 = tpu.matmul %56, %54, %cst_26 {dimension_numbers = #tpu.dot_dimension_numbers<[1], [0], [0], [1], [0, 0, 1, 1], [], []>} : vector<8x72xf32>, vector<72x256xf32>, vector<8x256xf32> -> vector<8x256xf32>
    %c2_27 = arith.constant 2 : index
    %c0_28 = arith.constant 0 : index
    %c0_29 = arith.constant 0 : index
    %58 = vector.load %arg3[%c2_27, %c0_28, %c0_29] : memref<5x8x1xf32, #tpu.memory_space<vmem>>, vector<1x8x1xf32>
    %59 = vector.shape_cast %58 : vector<1x8x1xf32> to vector<8x1xf32>
    %60 = vector.broadcast %59 : vector<8x1xf32> to vector<8x256xf32>
    %61 = arith.addf %57, %60 : vector<8x256xf32>
    %cst_30 = arith.constant 0.000000e+00 : f32
    %62 = vector.broadcast %cst_30 : f32 to vector<8x256xf32>
    %63 = arith.maximumf %61, %62 : vector<8x256xf32>
    %c0_31 = arith.constant 0 : index
    %c0_32 = arith.constant 0 : index
    %64 = vector.load %arg5[%c0_31, %c0_32] : memref<256x1152xf32, #tpu.memory_space<vmem>>, vector<256x1152xf32>
    %cst_33 = arith.constant dense<0.000000e+00> : vector<8x1152xf32>
    %65 = tpu.matmul %21, %64, %cst_33 {dimension_numbers = #tpu.dot_dimension_numbers<[1], [0], [0], [1], [0, 0, 1, 1], [], []>} : vector<8x256xf32>, vector<256x1152xf32>, vector<8x1152xf32> -> vector<8x1152xf32>
    %66 = vector.extract_strided_slice %65 {offsets = [0, 0], sizes = [8, 128], strides = [1, 1]} : vector<8x1152xf32> to vector<8x128xf32>
    %67 = vector.extract_strided_slice %65 {offsets = [0, 128], sizes = [8, 128], strides = [1, 1]} : vector<8x1152xf32> to vector<8x128xf32>
    %68 = vector.extract_strided_slice %65 {offsets = [0, 256], sizes = [8, 128], strides = [1, 1]} : vector<8x1152xf32> to vector<8x128xf32>
    %69 = vector.extract_strided_slice %65 {offsets = [0, 384], sizes = [8, 128], strides = [1, 1]} : vector<8x1152xf32> to vector<8x128xf32>
    %70 = vector.extract_strided_slice %65 {offsets = [0, 512], sizes = [8, 128], strides = [1, 1]} : vector<8x1152xf32> to vector<8x128xf32>
    %71 = vector.extract_strided_slice %65 {offsets = [0, 640], sizes = [8, 128], strides = [1, 1]} : vector<8x1152xf32> to vector<8x128xf32>
    %72 = vector.extract_strided_slice %65 {offsets = [0, 768], sizes = [8, 128], strides = [1, 1]} : vector<8x1152xf32> to vector<8x128xf32>
    %73 = vector.extract_strided_slice %65 {offsets = [0, 896], sizes = [8, 128], strides = [1, 1]} : vector<8x1152xf32> to vector<8x128xf32>
    %74 = vector.extract_strided_slice %65 {offsets = [0, 1024], sizes = [8, 128], strides = [1, 1]} : vector<8x1152xf32> to vector<8x128xf32>
    %75 = tpu.concatenate %66, %67, %68, %69, %70, %71, %72, %73, %74 in 0 : vector<8x128xf32>, vector<8x128xf32>, vector<8x128xf32>, vector<8x128xf32>, vector<8x128xf32>, vector<8x128xf32>, vector<8x128xf32>, vector<8x128xf32>, vector<8x128xf32> -> vector<72x128xf32>
    %c3 = arith.constant 3 : index
    %c0_34 = arith.constant 0 : index
    %c0_35 = arith.constant 0 : index
    %76 = vector.load %arg2[%c3, %c0_34, %c0_35] : memref<5x8x72xf32, #tpu.memory_space<vmem>>, vector<1x8x72xf32>
    %77 = vector.shape_cast %76 : vector<1x8x72xf32> to vector<8x72xf32>
    %cst_36 = arith.constant dense<0.000000e+00> : vector<8x128xf32>
    %78 = tpu.matmul %77, %75, %cst_36 {dimension_numbers = #tpu.dot_dimension_numbers<[1], [0], [0], [1], [0, 0, 1, 1], [], []>} : vector<8x72xf32>, vector<72x128xf32>, vector<8x128xf32> -> vector<8x128xf32>
    %c3_37 = arith.constant 3 : index
    %c0_38 = arith.constant 0 : index
    %c0_39 = arith.constant 0 : index
    %79 = vector.load %arg3[%c3_37, %c0_38, %c0_39] : memref<5x8x1xf32, #tpu.memory_space<vmem>>, vector<1x8x1xf32>
    %80 = vector.shape_cast %79 : vector<1x8x1xf32> to vector<8x1xf32>
    %81 = vector.broadcast %80 : vector<8x1xf32> to vector<8x128xf32>
    %82 = arith.addf %78, %81 : vector<8x128xf32>
    %cst_40 = arith.constant 0.000000e+00 : f32
    %83 = vector.broadcast %cst_40 : f32 to vector<8x128xf32>
    %84 = arith.maximumf %82, %83 : vector<8x128xf32>
    %c0_41 = arith.constant 0 : index
    %c0_42 = arith.constant 0 : index
    %85 = vector.load %arg6[%c0_41, %c0_42] : memref<128x256xf32, #tpu.memory_space<vmem>>, vector<128x256xf32>
    %cst_43 = arith.constant dense<0.000000e+00> : vector<8x256xf32>
    %86 = tpu.matmul %84, %85, %cst_43 {dimension_numbers = #tpu.dot_dimension_numbers<[1], [0], [0], [1], [0, 0, 1, 1], [], []>} : vector<8x128xf32>, vector<128x256xf32>, vector<8x256xf32> -> vector<8x256xf32>
    %87 = arith.addf %63, %86 : vector<8x256xf32>
    %c0_44 = arith.constant 0 : index
    %c0_45 = arith.constant 0 : index
    %88 = vector.load %arg4[%c0_44, %c0_45] : memref<256x2304xf32, #tpu.memory_space<vmem>>, vector<256x2304xf32>
    %cst_46 = arith.constant dense<0.000000e+00> : vector<8x2304xf32>
    %89 = tpu.matmul %87, %88, %cst_46 {dimension_numbers = #tpu.dot_dimension_numbers<[1], [0], [0], [1], [0, 0, 1, 1], [], []>} : vector<8x256xf32>, vector<256x2304xf32>, vector<8x2304xf32> -> vector<8x2304xf32>
    %90 = vector.extract_strided_slice %89 {offsets = [0, 0], sizes = [8, 256], strides = [1, 1]} : vector<8x2304xf32> to vector<8x256xf32>
    %91 = vector.extract_strided_slice %89 {offsets = [0, 256], sizes = [8, 256], strides = [1, 1]} : vector<8x2304xf32> to vector<8x256xf32>
    %92 = vector.extract_strided_slice %89 {offsets = [0, 512], sizes = [8, 256], strides = [1, 1]} : vector<8x2304xf32> to vector<8x256xf32>
    %93 = vector.extract_strided_slice %89 {offsets = [0, 768], sizes = [8, 256], strides = [1, 1]} : vector<8x2304xf32> to vector<8x256xf32>
    %94 = vector.extract_strided_slice %89 {offsets = [0, 1024], sizes = [8, 256], strides = [1, 1]} : vector<8x2304xf32> to vector<8x256xf32>
    %95 = vector.extract_strided_slice %89 {offsets = [0, 1280], sizes = [8, 256], strides = [1, 1]} : vector<8x2304xf32> to vector<8x256xf32>
    %96 = vector.extract_strided_slice %89 {offsets = [0, 1536], sizes = [8, 256], strides = [1, 1]} : vector<8x2304xf32> to vector<8x256xf32>
    %97 = vector.extract_strided_slice %89 {offsets = [0, 1792], sizes = [8, 256], strides = [1, 1]} : vector<8x2304xf32> to vector<8x256xf32>
    %98 = vector.extract_strided_slice %89 {offsets = [0, 2048], sizes = [8, 256], strides = [1, 1]} : vector<8x2304xf32> to vector<8x256xf32>
    %99 = tpu.concatenate %90, %91, %92, %93, %94, %95, %96, %97, %98 in 0 : vector<8x256xf32>, vector<8x256xf32>, vector<8x256xf32>, vector<8x256xf32>, vector<8x256xf32>, vector<8x256xf32>, vector<8x256xf32>, vector<8x256xf32>, vector<8x256xf32> -> vector<72x256xf32>
    %c4 = arith.constant 4 : index
    %c0_47 = arith.constant 0 : index
    %c0_48 = arith.constant 0 : index
    %100 = vector.load %arg2[%c4, %c0_47, %c0_48] : memref<5x8x72xf32, #tpu.memory_space<vmem>>, vector<1x8x72xf32>
    %101 = vector.shape_cast %100 : vector<1x8x72xf32> to vector<8x72xf32>
    %cst_49 = arith.constant dense<0.000000e+00> : vector<8x256xf32>
    %102 = tpu.matmul %101, %99, %cst_49 {dimension_numbers = #tpu.dot_dimension_numbers<[1], [0], [0], [1], [0, 0, 1, 1], [], []>} : vector<8x72xf32>, vector<72x256xf32>, vector<8x256xf32> -> vector<8x256xf32>
    %c4_50 = arith.constant 4 : index
    %c0_51 = arith.constant 0 : index
    %c0_52 = arith.constant 0 : index
    %103 = vector.load %arg3[%c4_50, %c0_51, %c0_52] : memref<5x8x1xf32, #tpu.memory_space<vmem>>, vector<1x8x1xf32>
    %104 = vector.shape_cast %103 : vector<1x8x1xf32> to vector<8x1xf32>
    %105 = vector.broadcast %104 : vector<8x1xf32> to vector<8x256xf32>
    %106 = arith.addf %102, %105 : vector<8x256xf32>
    %cst_53 = arith.constant 0.000000e+00 : f32
    %107 = vector.broadcast %cst_53 : f32 to vector<8x256xf32>
    %108 = arith.maximumf %106, %107 : vector<8x256xf32>
    %109 = arith.addf %108, %0 : vector<8x256xf32>
    %c0_54 = arith.constant 0 : index
    %c0_55 = arith.constant 0 : index
    %110 = vector.load %arg7[%c0_54, %c0_55] : memref<8x256xf32, #tpu.memory_space<vmem>>, vector<8x256xf32>
    tpu.vector_store %arg7[%c0_54, %c0_55], %109 {strides = array<i32>} : memref<8x256xf32, #tpu.memory_space<vmem>>, vector<8x256xf32>,
    return
  }
  func.func @transform_0(%arg0: i32) -> (i32, i32) {
    %c0_i32 = arith.constant 0 : i32
    %c0_i32_0 = arith.constant 0 : i32
    return %arg0, %c0_i32 : i32, i32
  }
  func.func @transform_1(%arg0: i32) -> (i32, i32, i32) {
    %c0_i32 = arith.constant 0 : i32
    %c0_i32_0 = arith.constant 0 : i32
    %c0_i32_1 = arith.constant 0 : i32
    %c0_i32_2 = arith.constant 0 : i32
    return %c0_i32, %c0_i32_0, %c0_i32_1 : i32, i32, i32
  }
  func.func @transform_2(%arg0: i32) -> (i32, i32, i32) {
    %c0_i32 = arith.constant 0 : i32
    %c0_i32_0 = arith.constant 0 : i32
    %c0_i32_1 = arith.constant 0 : i32
    %c0_i32_2 = arith.constant 0 : i32
    return %c0_i32, %c0_i32_0, %c0_i32_1 : i32, i32, i32
  }
  func.func @transform_3(%arg0: i32) -> (i32, i32) {
    %c0_i32 = arith.constant 0 : i32
    %c0_i32_0 = arith.constant 0 : i32
    %c0_i32_1 = arith.constant 0 : i32
    return %c0_i32, %c0_i32_0 : i32, i32
  }
  func.func @transform_4(%arg0: i32) -> (i32, i32) {
    %c0_i32 = arith.constant 0 : i32
    %c0_i32_0 = arith.constant 0 : i32
    %c0_i32_1 = arith.constant 0 : i32
    return %c0_i32, %c0_i32_0 : i32, i32
  }
  func.func @transform_5(%arg0: i32) -> (i32, i32) {
    %c0_i32 = arith.constant 0 : i32
    %c0_i32_0 = arith.constant 0 : i32
    %c0_i32_1 = arith.constant 0 : i32
    return %c0_i32, %c0_i32_0 : i32, i32
  }
  func.func @transform_6(%arg0: i32) -> (i32, i32) {
    %c0_i32 = arith.constant 0 : i32
    %c0_i32_0 = arith.constant 0 : i32
    return %arg0, %c0_i32 : i32, i32
  }
}

</mosaic_0001>

<llo_original>
// kernel: tpu_custom_call.1
$region0: #{tpu_custom_call.1}
  #allocation0 [shape = 'u32[]', space=smem, size = 0x4, offset = 0x4, fixed_abs, tag = 'smem constant byte address 0x4 - core index']
  #allocation1 [shape = 'u32[144,128]{1,0:T(1,128)}', space=vmem, size = 0x12000, scoped, tag = 'internal scratch']
  %s0 = inlined_call_operand.hbm [shape: f32[8,256], index: 0, kind: input, shape index: {}]
  %s1 = inlined_call_operand.hbm [shape: f32[5,8,72], index: 1, kind: input, shape index: {}]
  %s2 = inlined_call_operand.vmem [shape: f32[5,8,1], index: 2, kind: input, shape index: {}]
  %s3 = inlined_call_operand.hbm [shape: f32[256,2304], index: 3, kind: input, shape index: {}]
  %s4 = inlined_call_operand.hbm [shape: f32[256,1152], index: 4, kind: input, shape index: {}]
  %s5 = inlined_call_operand.hbm [shape: f32[128,256], index: 5, kind: input, shape index: {}]
  %s6 = inlined_call_operand.hbm [shape: f32[8,256], index: 6, kind: output, shape index: {}]
  %s7 = sld [smem:[#allocation0]]
  $region54: #{tpu_custom_call.1} parent=0
    _
  %s9 = ssub.s32 1, %s7
  %s10 = scalar_select 0, %s9, %s7
  $region1: #{tpu_custom_call.1} parent=0
    #allocation2 [shape = 'u8[8192]{0}', space=vmem, size = 0x2000, scoped, tag = 'input window, operand 0, single buffered']
    #allocation3 [shape = 's32[1]{0}', space=sflag, size = 0x4, scoped, tag = 'scoped memory for tpu_custom_call.1']
    #allocation4 [shape = 's32[1]{0}', space=sflag, size = 0x4, scoped, tag = 'scoped memory for tpu_custom_call.1']
    #allocation5 [shape = 'u8[20480]{0}', space=vmem, size = 0x5000, scoped, tag = 'input window, operand 1, single buffered']
    #allocation6 [shape = 's32[1]{0}', space=sflag, size = 0x4, scoped, tag = 'scoped memory for tpu_custom_call.1']
    #allocation7 [shape = 'u8[2359296]{0}', space=vmem, size = 0x240000, scoped, tag = 'input window, operand 3, single buffered']
    #allocation8 [shape = 'u8[1179648]{0}', space=vmem, size = 0x120000, scoped, tag = 'input window, operand 4, single buffered']
    #allocation9 [shape = 's32[1]{0}', space=sflag, size = 0x4, scoped, tag = 'scoped memory for tpu_custom_call.1']
    #allocation10 [shape = 'u8[131072]{0}', space=vmem, size = 0x20000, scoped, tag = 'input window, operand 5, single buffered']
    #allocation11 [shape = 'u8[8192]{0}', space=vmem, size = 0x2000, scoped, tag = 'output window, operand 0, single buffered']
    %11 = vsyncpa [#allocation3], 0
    %12 = vsyncpa [#allocation6], 0
    %13 = vsyncpa [#allocation9], 0
    %14 = vsyncpa [#allocation4], 0
    // Predicated region
    $region2: #{tpu_custom_call.1} parent=1 // pred_check
      _
    $region3: #{tpu_custom_call.1} parent=1 // pred_check_branch
      %16 = sbr.rel (0) target = $region5
    $region4: #{tpu_custom_call.1} parent=1 // pred_region
      %s18 = ssub.s32 256, 256
      %19 = vsyncadd [#allocation3], %s18
      %s21 = sshll.u32 [#allocation2], 4
      %s22 = int_to_ptr.vmem [resolvable:$true] %s21
      %24 = dma.hbm_to_vmem [thread:$0]  %s0, 256, %s22, [#allocation3]
    $region5: #{tpu_custom_call.1} parent=1 // pred_fallthru
      _
    // Predicated region
    $region6: #{tpu_custom_call.1} parent=1 // pred_check
      _
    $region7: #{tpu_custom_call.1} parent=1 // pred_check_branch
      %26 = sbr.rel (0) target = $region9
    $region8: #{tpu_custom_call.1} parent=1 // pred_region
      %s28 = ssub.s32 640, 640
      %29 = vsyncadd [#allocation6], %s28
      %s30 = sshll.u32 [#allocation5], 4
      %s31 = int_to_ptr.vmem [resolvable:$true] %s30
      %36 = dma.hbm_to_vmem [thread:$0]  %s1, 640, %s31, [#allocation6], 128, 128, 8
    $region9: #{tpu_custom_call.1} parent=1 // pred_fallthru
      _
    // Predicated region
    $region10: #{tpu_custom_call.1} parent=1 // pred_check
      _
    $region11: #{tpu_custom_call.1} parent=1 // pred_check_branch
      %38 = sbr.rel (0) target = $region13
    $region12: #{tpu_custom_call.1} parent=1 // pred_region
      _
    $region13: #{tpu_custom_call.1} parent=1 // pred_fallthru
      _
    // Predicated region
    $region14: #{tpu_custom_call.1} parent=1 // pred_check
      _
    $region15: #{tpu_custom_call.1} parent=1 // pred_check_branch
      %40 = sbr.rel (0) target = $region17
    $region16: #{tpu_custom_call.1} parent=1 // pred_region
      %s42 = ssub.s32 73728, 73728
      %43 = vsyncadd [#allocation6], %s42
      %s44 = sshll.u32 [#allocation7], 4
      %s45 = int_to_ptr.vmem [resolvable:$true] %s44
      %50 = dma.hbm_to_vmem [thread:$0]  %s3, 73728, %s45, [#allocation6], 2304, 2304, 144
    $region17: #{tpu_custom_call.1} parent=1 // pred_fallthru
      _
    // Predicated region
    $region18: #{tpu_custom_call.1} parent=1 // pred_check
      _
    $region19: #{tpu_custom_call.1} parent=1 // pred_check_branch
      %52 = sbr.rel (0) target = $region21
    $region20: #{tpu_custom_call.1} parent=1 // pred_region
      %s54 = ssub.s32 36864, 36864
      %55 = vsyncadd [#allocation9], %s54
      %s56 = sshll.u32 [#allocation8], 4
      %s57 = int_to_ptr.vmem [resolvable:$true] %s56
      %62 = dma.hbm_to_vmem [thread:$0]  %s4, 36864, %s57, [#allocation9], 1152, 1152, 72
    $region21: #{tpu_custom_call.1} parent=1 // pred_fallthru
      _
    // Predicated region
    $region22: #{tpu_custom_call.1} parent=1 // pred_check
      _
    $region23: #{tpu_custom_call.1} parent=1 // pred_check_branch
      %64 = sbr.rel (0) target = $region25
    $region24: #{tpu_custom_call.1} parent=1 // pred_region
      %s66 = ssub.s32 4096, 4096
      %67 = vsyncadd [#allocation9], %s66
      %s68 = sshll.u32 [#allocation10], 4
      %s69 = int_to_ptr.vmem [resolvable:$true] %s68
      %74 = dma.hbm_to_vmem [thread:$0]  %s5, 4096, %s69, [#allocation9], 256, 256, 16
    $region25: #{tpu_custom_call.1} parent=1 // pred_fallthru
      _
    // Predicated region
    $region26: #{tpu_custom_call.1} parent=1 // pred_check
      _
    $region27: #{tpu_custom_call.1} parent=1 // pred_check_branch
      %76 = sbr.rel (0) target = $region29
    $region28: #{tpu_custom_call.1} parent=1 // pred_region
      %77 = dma.done [#allocation3], 256
    $region29: #{tpu_custom_call.1} parent=1 // pred_fallthru
      _
    // Predicated region
    $region30: #{tpu_custom_call.1} parent=1 // pred_check
      _
    $region31: #{tpu_custom_call.1} parent=1 // pred_check_branch
      %79 = sbr.rel (0) target = $region33
    $region32: #{tpu_custom_call.1} parent=1 // pred_region
      %80 = dma.done [#allocation6], 640
    $region33: #{tpu_custom_call.1} parent=1 // pred_fallthru
      _
    // Predicated region
    $region34: #{tpu_custom_call.1} parent=1 // pred_check
      _
    $region35: #{tpu_custom_call.1} parent=1 // pred_check_branch
      %82 = sbr.rel (0) target = $region37
    $region36: #{tpu_custom_call.1} parent=1 // pred_region
      %83 = dma.done [#allocation6], 73728
    $region37: #{tpu_custom_call.1} parent=1 // pred_fallthru
      _
    // Predicated region
    $region38: #{tpu_custom_call.1} parent=1 // pred_check
      _
    $region39: #{tpu_custom_call.1} parent=1 // pred_check_branch
      %85 = sbr.rel (0) target = $region41
    $region40: #{tpu_custom_call.1} parent=1 // pred_region
      %86 = dma.done [#allocation9], 36864
    $region41: #{tpu_custom_call.1} parent=1 // pred_fallthru
      _
    // Predicated region
    $region42: #{tpu_custom_call.1} parent=1 // pred_check
      _
    $region43: #{tpu_custom_call.1} parent=1 // pred_check_branch
      %88 = sbr.rel (0) target = $region45
    $region44: #{tpu_custom_call.1} parent=1 // pred_region
      %89 = dma.done [#allocation9], 4096
    $region45: #{tpu_custom_call.1} parent=1 // pred_fallthru
      _
    %v90 = vld [vmem:[#allocation2] sm:$0xff]
    %v91 = vld [vmem:[#allocation2 + $0x8] sm:$0xff]
    %v92 = vld [vmem:[#allocation7] sm:$0xff]
    %v93 = vld [vmem:[#allocation7 + $0x8] sm:$0xff]
    %v94 = vld [vmem:[#allocation7 + $0x10] sm:$0xff]
    %v95 = vld [vmem:[#allocation7 + $0x18] sm:$0xff]
    %v96 = vld [vmem:[#allocation7 + $0x20] sm:$0xff]
    %v97 = vld [vmem:[#allocation7 + $0x28] sm:$0xff]
    %v98 = vld [vmem:[#allocation7 + $0x30] sm:$0xff]
    %v99 = vld [vmem:[#allocation7 + $0x38] sm:$0xff]
    %v100 = vld [vmem:[#allocation7 + $0x40] sm:$0xff]
    %v101 = vld [vmem:[#allocation7 + $0x48] sm:$0xff]
    %v102 = vld [vmem:[#allocation7 + $0x50] sm:$0xff]
    %v103 = vld [vmem:[#allocation7 + $0x58] sm:$0xff]
    %v104 = vld [vmem:[#allocation7 + $0x60] sm:$0xff]
    %v105 = vld [vmem:[#allocation7 + $0x68] sm:$0xff]
    %v106 = vld [vmem:[#allocation7 + $0x70] sm:$0xff]
    %v107 = vld [vmem:[#allocation7 + $0x78] sm:$0xff]
    %v108 = vld [vmem:[#allocation7 + $0x80] sm:$0xff]
    %v109 = vld [vmem:[#allocation7 + $0x88] sm:$0xff]
    %v110 = vld [vmem:[#allocation7 + $0x90] sm:$0xff]
    %v111 = vld [vmem:[#allocation7 + $0x98] sm:$0xff]
    %v112 = vld [vmem:[#allocation7 + $0xa0] sm:$0xff]
    %v113 = vld [vmem:[#allocation7 + $0xa8] sm:$0xff]
    %v114 = vld [vmem:[#allocation7 + $0xb0] sm:$0xff]
    %v115 = vld [vmem:[#allocation7 + $0xb8] sm:$0xff]
    %v116 = vld [vmem:[#allocation7 + $0xc0] sm:$0xff]
    %v117 = vld [vmem:[#allocation7 + $0xc8] sm:$0xff]
    %v118 = vld [vmem:[#allocation7 + $0xd0] sm:$0xff]
    %v119 = vld [vmem:[#allocation7 + $0xd8] sm:$0xff]
    %v120 = vld [vmem:[#allocation7 + $0xe0] sm:$0xff]
    %v121 = vld [vmem:[#allocation7 + $0xe8] sm:$0xff]
    %v122 = vld [vmem:[#allocation7 + $0xf0] sm:$0xff]
    %v123 = vld [vmem:[#allocation7 + $0xf8] sm:$0xff]
    %v124 = vld [vmem:[#allocation7 + $0x100] sm:$0xff]
    %v125 = vld [vmem:[#allocation7 + $0x108] sm:$0xff]
    %v126 = vld [vmem:[#allocation7 + $0x110] sm:$0xff]
    %v127 = vld [vmem:[#allocation7 + $0x118] sm:$0xff]
    %v128 = vld [vmem:[#allocation7 + $0x120] sm:$0xff]
    %v129 = vld [vmem:[#allocation7 + $0x128] sm:$0xff]
    %v130 = vld [vmem:[#allocation7 + $0x130] sm:$0xff]
    %v131 = vld [vmem:[#allocation7 + $0x138] sm:$0xff]
    %v132 = vld [vmem:[#allocation7 + $0x140] sm:$0xff]
    %v133 = vld [vmem:[#allocation7 + $0x148] sm:$0xff]
    %v134 = vld [vmem:[#allocation7 + $0x150] sm:$0xff]
    %v135 = vld [vmem:[#allocation7 + $0x158] sm:$0xff]
    %v136 = vld [vmem:[#allocation7 + $0x160] sm:$0xff]
    %v137 = vld [vmem:[#allocation7 + $0x168] sm:$0xff]
    %v138 = vld [vmem:[#allocation7 + $0x170] sm:$0xff]
    %v139 = vld [vmem:[#allocation7 + $0x178] sm:$0xff]
    %v140 = vld [vmem:[#allocation7 + $0x180] sm:$0xff]
    %v141 = vld [vmem:[#allocation7 + $0x188] sm:$0xff]
    %v142 = vld [vmem:[#allocation7 + $0x190] sm:$0xff]
    %v143 = vld [vmem:[#allocation7 + $0x198] sm:$0xff]
    %v144 = vld [vmem:[#allocation7 + $0x1a0] sm:$0xff]
    %v145 = vld [vmem:[#allocation7 + $0x1a8] sm:$0xff]
    %v146 = vld [vmem:[#allocation7 + $0x1b0] sm:$0xff]
    %v147 = vld [vmem:[#allocation7 + $0x1b8] sm:$0xff]
    %v148 = vld [vmem:[#allocation7 + $0x1c0] sm:$0xff]
    %v149 = vld [vmem:[#allocation7 + $0x1c8] sm:$0xff]
    %v150 = vld [vmem:[#allocation7 + $0x1d0] sm:$0xff]
    %v151 = vld [vmem:[#allocation7 + $0x1d8] sm:$0xff]
    %v152 = vld [vmem:[#allocation7 + $0x1e0] sm:$0xff]
    %v153 = vld [vmem:[#allocation7 + $0x1e8] sm:$0xff]
    %v154 = vld [vmem:[#allocation7 + $0x1f0] sm:$0xff]
    %v155 = vld [vmem:[#allocation7 + $0x1f8] sm:$0xff]
    %v156 = vld [vmem:[#allocation7 + $0x200] sm:$0xff]
    %v157 = vld [vmem:[#allocation7 + $0x208] sm:$0xff]
    %v158 = vld [vmem:[#allocation7 + $0x210] sm:$0xff]
    %v159 = vld [vmem:[#allocation7 + $0x218] sm:$0xff]
    %v160 = vld [vmem:[#allocation7 + $0x220] sm:$0xff]
    %v161 = vld [vmem:[#allocation7 + $0x228] sm:$0xff]
    %v162 = vld [vmem:[#allocation7 + $0x230] sm:$0xff]
    %v163 = vld [vmem:[#allocation7 + $0x238] sm:$0xff]
    %v164 = vld [vmem:[#allocation7 + $0x240] sm:$0xff]
    %v165 = vld [vmem:[#allocation7 + $0x248] sm:$0xff]
    %v166 = vld [vmem:[#allocation7 + $0x250] sm:$0xff]
    %v167 = vld [vmem:[#allocation7 + $0x258] sm:$0xff]
    %v168 = vld [vmem:[#allocation7 + $0x260] sm:$0xff]
    %v169 = vld [vmem:[#allocation7 + $0x268] sm:$0xff]
    %v170 = vld [vmem:[#allocation7 + $0x270] sm:$0xff]
    %v171 = vld [vmem:[#allocation7 + $0x278] sm:$0xff]
    %v172 = vld [vmem:[#allocation7 + $0x280] sm:$0xff]
    %v173 = vld [vmem:[#allocation7 + $0x288] sm:$0xff]
    %v174 = vld [vmem:[#allocation7 + $0x290] sm:$0xff]
    %v175 = vld [vmem:[#allocation7 + $0x298] sm:$0xff]
    %v176 = vld [vmem:[#allocation7 + $0x2a0] sm:$0xff]
    %v177 = vld [vmem:[#allocation7 + $0x2a8] sm:$0xff]
    %v178 = vld [vmem:[#allocation7 + $0x2b0] sm:$0xff]
    %v179 = vld [vmem:[#allocation7 + $0x2b8] sm:$0xff]
    %v180 = vld [vmem:[#allocation7 + $0x2c0] sm:$0xff]
    %v181 = vld [vmem:[#allocation7 + $0x2c8] sm:$0xff]
    %v182 = vld [vmem:[#allocation7 + $0x2d0] sm:$0xff]
    %v183 = vld [vmem:[#allocation7 + $0x2d8] sm:$0xff]
    %v184 = vld [vmem:[#allocation7 + $0x2e0] sm:$0xff]
    %v185 = vld [vmem:[#allocation7 + $0x2e8] sm:$0xff]
    %v186 = vld [vmem:[#allocation7 + $0x2f0] sm:$0xff]
    %v187 = vld [vmem:[#allocation7 + $0x2f8] sm:$0xff]
    %v188 = vld [vmem:[#allocation7 + $0x300] sm:$0xff]
    %v189 = vld [vmem:[#allocation7 + $0x308] sm:$0xff]
    %v190 = vld [vmem:[#allocation7 + $0x310] sm:$0xff]
    %v191 = vld [vmem:[#allocation7 + $0x318] sm:$0xff]
    %v192 = vld [vmem:[#allocation7 + $0x320] sm:$0xff]
    %v193 = vld [vmem:[#allocation7 + $0x328] sm:$0xff]
    %v194 = vld [vmem:[#allocation7 + $0x330] sm:$0xff]
    %v195 = vld [vmem:[#allocation7 + $0x338] sm:$0xff]
    %v196 = vld [vmem:[#allocation7 + $0x340] sm:$0xff]
    %v197 = vld [vmem:[#allocation7 + $0x348] sm:$0xff]
    %v198 = vld [vmem:[#allocation7 + $0x350] sm:$0xff]
    %v199 = vld [vmem:[#allocation7 + $0x358] sm:$0xff]
    %v200 = vld [vmem:[#allocation7 + $0x360] sm:$0xff]
    %v201 = vld [vmem:[#allocation7 + $0x368] sm:$0xff]
    %v202 = vld [vmem:[#allocation7 + $0x370] sm:$0xff]
    %v203 = vld [vmem:[#allocation7 + $0x378] sm:$0xff]
    %v204 = vld [vmem:[#allocation7 + $0x380] sm:$0xff]
    %v205 = vld [vmem:[#allocation7 + $0x388] sm:$0xff]
    %v206 = vld [vmem:[#allocation7 + $0x390] sm:$0xff]
    %v207 = vld [vmem:[#allocation7 + $0x398] sm:$0xff]
    %v208 = vld [vmem:[#allocation7 + $0x3a0] sm:$0xff]
    %v209 = vld [vmem:[#allocation7 + $0x3a8] sm:$0xff]
    %v210 = vld [vmem:[#allocation7 + $0x3b0] sm:$0xff]
    %v211 = vld [vmem:[#allocation7 + $0x3b8] sm:$0xff]
    %v212 = vld [vmem:[#allocation7 + $0x3c0] sm:$0xff]
    %v213 = vld [vmem:[#allocation7 + $0x3c8] sm:$0xff]
    %v214 = vld [vmem:[#allocation7 + $0x3d0] sm:$0xff]
    %v215 = vld [vmem:[#allocation7 + $0x3d8] sm:$0xff]
    %v216 = vld [vmem:[#allocation7 + $0x3e0] sm:$0xff]
    %v217 = vld [vmem:[#allocation7 + $0x3e8] sm:$0xff]
    %v218 = vld [vmem:[#allocation7 + $0x3f0] sm:$0xff]
    %v219 = vld [vmem:[#allocation7 + $0x3f8] sm:$0xff]
    %v220 = vld [vmem:[#allocation7 + $0x400] sm:$0xff]
    %v221 = vld [vmem:[#allocation7 + $0x408] sm:$0xff]
    %v222 = vld [vmem:[#allocation7 + $0x410] sm:$0xff]
    %v223 = vld [vmem:[#allocation7 + $0x418] sm:$0xff]
    %v224 = vld [vmem:[#allocation7 + $0x420] sm:$0xff]
    %v225 = vld [vmem:[#allocation7 + $0x428] sm:$0xff]
    %v226 = vld [vmem:[#allocation7 + $0x430] sm:$0xff]
    %v227 = vld [vmem:[#allocation7 + $0x438] sm:$0xff]
    %v228 = vld [vmem:[#allocation7 + $0x440] sm:$0xff]
    %v229 = vld [vmem:[#allocation7 + $0x448] sm:$0xff]
    %v230 = vld [vmem:[#allocation7 + $0x450] sm:$0xff]
    %v231 = vld [vmem:[#allocation7 + $0x458] sm:$0xff]
    %v232 = vld [vmem:[#allocation7 + $0x460] sm:$0xff]
    %v233 = vld [vmem:[#allocation7 + $0x468] sm:$0xff]
    %v234 = vld [vmem:[#allocation7 + $0x470] sm:$0xff]
    %v235 = vld [vmem:[#allocation7 + $0x478] sm:$0xff]
    %v236 = vld [vmem:[#allocation7 + $0x480] sm:$0xff]
    %v237 = vld [vmem:[#allocation7 + $0x488] sm:$0xff]
    %v238 = vld [vmem:[#allocation7 + $0x490] sm:$0xff]
    %v239 = vld [vmem:[#allocation7 + $0x498] sm:$0xff]
    %v240 = vld [vmem:[#allocation7 + $0x4a0] sm:$0xff]
    %v241 = vld [vmem:[#allocation7 + $0x4a8] sm:$0xff]
    %v242 = vld [vmem:[#allocation7 + $0x4b0] sm:$0xff]
    %v243 = vld [vmem:[#allocation7 + $0x4b8] sm:$0xff]
    %v244 = vld [vmem:[#allocation7 + $0x4c0] sm:$0xff]
    %v245 = vld [vmem:[#allocation7 + $0x4c8] sm:$0xff]
    %v246 = vld [vmem:[#allocation7 + $0x4d0] sm:$0xff]
    %v247 = vld [vmem:[#allocation7 + $0x4d8] sm:$0xff]
    %v248 = vld [vmem:[#allocation7 + $0x4e0] sm:$0xff]
    %v249 = vld [vmem:[#allocation7 + $0x4e8] sm:$0xff]
    %v250 = vld [vmem:[#allocation7 + $0x4f0] sm:$0xff]
    %v251 = vld [vmem:[#allocation7 + $0x4f8] sm:$0xff]
    %v252 = vld [vmem:[#allocation7 + $0x500] sm:$0xff]
    %v253 = vld [vmem:[#allocation7 + $0x508] sm:$0xff]
    %v254 = vld [vmem:[#allocation7 + $0x510] sm:$0xff]
    %v255 = vld [vmem:[#allocation7 + $0x518] sm:$0xff]
    %v256 = vld [vmem:[#allocation7 + $0x520] sm:$0xff]
    %v257 = vld [vmem:[#allocation7 + $0x528] sm:$0xff]
    %v258 = vld [vmem:[#allocation7 + $0x530] sm:$0xff]
    %v259 = vld [vmem:[#allocation7 + $0x538] sm:$0xff]
    %v260 = vld [vmem:[#allocation7 + $0x540] sm:$0xff]
    %v261 = vld [vmem:[#allocation7 + $0x548] sm:$0xff]
    %v262 = vld [vmem:[#allocation7 + $0x550] sm:$0xff]
    %v263 = vld [vmem:[#allocation7 + $0x558] sm:$0xff]
    %v264 = vld [vmem:[#allocation7 + $0x560] sm:$0xff]
    %v265 = vld [vmem:[#allocation7 + $0x568] sm:$0xff]
    %v266 = vld [vmem:[#allocation7 + $0x570] sm:$0xff]
    %v267 = vld [vmem:[#allocation7 + $0x578] sm:$0xff]
    %v268 = vld [vmem:[#allocation7 + $0x580] sm:$0xff]
    %v269 = vld [vmem:[#allocation7 + $0x588] sm:$0xff]
    %v270 = vld [vmem:[#allocation7 + $0x590] sm:$0xff]
    %v271 = vld [vmem:[#allocation7 + $0x598] sm:$0xff]
    %v272 = vld [vmem:[#allocation7 + $0x5a0] sm:$0xff]
    %v273 = vld [vmem:[#allocation7 + $0x5a8] sm:$0xff]
    %v274 = vld [vmem:[#allocation7 + $0x5b0] sm:$0xff]
    %v275 = vld [vmem:[#allocation7 + $0x5b8] sm:$0xff]
    %v276 = vld [vmem:[#allocation7 + $0x5c0] sm:$0xff]
    %v277 = vld [vmem:[#allocation7 + $0x5c8] sm:$0xff]
    %v278 = vld [vmem:[#allocation7 + $0x5d0] sm:$0xff]
    %v279 = vld [vmem:[#allocation7 + $0x5d8] sm:$0xff]
    %v280 = vld [vmem:[#allocation7 + $0x5e0] sm:$0xff]
    %v281 = vld [vmem:[#allocation7 + $0x5e8] sm:$0xff]
    %v282 = vld [vmem:[#allocation7 + $0x5f0] sm:$0xff]
    %v283 = vld [vmem:[#allocation7 + $0x5f8] sm:$0xff]
    %v284 = vld [vmem:[#allocation7 + $0x600] sm:$0xff]
    %v285 = vld [vmem:[#allocation7 + $0x608] sm:$0xff]
    %v286 = vld [vmem:[#allocation7 + $0x610] sm:$0xff]
    %v287 = vld [vmem:[#allocation7 + $0x618] sm:$0xff]
    %v288 = vld [vmem:[#allocation7 + $0x620] sm:$0xff]
    %v289 = vld [vmem:[#allocation7 + $0x628] sm:$0xff]
    %v290 = vld [vmem:[#allocation7 + $0x630] sm:$0xff]
    %v291 = vld [vmem:[#allocation7 + $0x638] sm:$0xff]
    %v292 = vld [vmem:[#allocation7 + $0x640] sm:$0xff]
    %v293 = vld [vmem:[#allocation7 + $0x648] sm:$0xff]
    %v294 = vld [vmem:[#allocation7 + $0x650] sm:$0xff]
    %v295 = vld [vmem:[#allocation7 + $0x658] sm:$0xff]
    %v296 = vld [vmem:[#allocation7 + $0x660] sm:$0xff]
    %v297 = vld [vmem:[#allocation7 + $0x668] sm:$0xff]
    %v298 = vld [vmem:[#allocation7 + $0x670] sm:$0xff]
    %v299 = vld [vmem:[#allocation7 + $0x678] sm:$0xff]
    %v300 = vld [vmem:[#allocation7 + $0x680] sm:$0xff]
    %v301 = vld [vmem:[#allocation7 + $0x688] sm:$0xff]
    %v302 = vld [vmem:[#allocation7 + $0x690] sm:$0xff]
    %v303 = vld [vmem:[#allocation7 + $0x698] sm:$0xff]
    %v304 = vld [vmem:[#allocation7 + $0x6a0] sm:$0xff]
    %v305 = vld [vmem:[#allocation7 + $0x6a8] sm:$0xff]
    %v306 = vld [vmem:[#allocation7 + $0x6b0] sm:$0xff]
    %v307 = vld [vmem:[#allocation7 + $0x6b8] sm:$0xff]
    %v308 = vld [vmem:[#allocation7 + $0x6c0] sm:$0xff]
    %v309 = vld [vmem:[#allocation7 + $0x6c8] sm:$0xff]
    %v310 = vld [vmem:[#allocation7 + $0x6d0] sm:$0xff]
    %v311 = vld [vmem:[#allocation7 + $0x6d8] sm:$0xff]
    %v312 = vld [vmem:[#allocation7 + $0x6e0] sm:$0xff]
    %v313 = vld [vmem:[#allocation7 + $0x6e8] sm:$0xff]
    %v314 = vld [vmem:[#allocation7 + $0x6f0] sm:$0xff]
    %v315 = vld [vmem:[#allocation7 + $0x6f8] sm:$0xff]
    %v316 = vld [vmem:[#allocation7 + $0x700] sm:$0xff]
    %v317 = vld [vmem:[#allocation7 + $0x708] sm:$0xff]
    %v318 = vld [vmem:[#allocation7 + $0x710] sm:$0xff]
    %v319 = vld [vmem:[#allocation7 + $0x718] sm:$0xff]
    %v320 = vld [vmem:[#allocation7 + $0x720] sm:$0xff]
    %v321 = vld [vmem:[#allocation7 + $0x728] sm:$0xff]
    %v322 = vld [vmem:[#allocation7 + $0x730] sm:$0xff]
    %v323 = vld [vmem:[#allocation7 + $0x738] sm:$0xff]
    %v324 = vld [vmem:[#allocation7 + $0x740] sm:$0xff]
    %v325 = vld [vmem:[#allocation7 + $0x748] sm:$0xff]
    %v326 = vld [vmem:[#allocation7 + $0x750] sm:$0xff]
    %v327 = vld [vmem:[#allocation7 + $0x758] sm:$0xff]
    %v328 = vld [vmem:[#allocation7 + $0x760] sm:$0xff]
    %v329 = vld [vmem:[#allocation7 + $0x768] sm:$0xff]
    %v330 = vld [vmem:[#allocation7 + $0x770] sm:$0xff]
    %v331 = vld [vmem:[#allocation7 + $0x778] sm:$0xff]
    %v332 = vld [vmem:[#allocation7 + $0x780] sm:$0xff]
    %v333 = vld [vmem:[#allocation7 + $0x788] sm:$0xff]
    %v334 = vld [vmem:[#allocation7 + $0x790] sm:$0xff]
    %v335 = vld [vmem:[#allocation7 + $0x798] sm:$0xff]
    %v336 = vld [vmem:[#allocation7 + $0x7a0] sm:$0xff]
    %v337 = vld [vmem:[#allocation7 + $0x7a8] sm:$0xff]
    %v338 = vld [vmem:[#allocation7 + $0x7b0] sm:$0xff]
    %v339 = vld [vmem:[#allocation7 + $0x7b8] sm:$0xff]
    %v340 = vld [vmem:[#allocation7 + $0x7c0] sm:$0xff]
    %v341 = vld [vmem:[#allocation7 + $0x7c8] sm:$0xff]
    %v342 = vld [vmem:[#allocation7 + $0x7d0] sm:$0xff]
    %v343 = vld [vmem:[#allocation7 + $0x7d8] sm:$0xff]
    %v344 = vld [vmem:[#allocation7 + $0x7e0] sm:$0xff]
    %v345 = vld [vmem:[#allocation7 + $0x7e8] sm:$0xff]
    %v346 = vld [vmem:[#allocation7 + $0x7f0] sm:$0xff]
    %v347 = vld [vmem:[#allocation7 + $0x7f8] sm:$0xff]
    %v348 = vld [vmem:[#allocation7 + $0x800] sm:$0xff]
    %v349 = vld [vmem:[#allocation7 + $0x808] sm:$0xff]
    %v350 = vld [vmem:[#allocation7 + $0x810] sm:$0xff]
    %v351 = vld [vmem:[#allocation7 + $0x818] sm:$0xff]
    %v352 = vld [vmem:[#allocation7 + $0x820] sm:$0xff]
    %v353 = vld [vmem:[#allocation7 + $0x828] sm:$0xff]
    %v354 = vld [vmem:[#allocation7 + $0x830] sm:$0xff]
    %v355 = vld [vmem:[#allocation7 + $0x838] sm:$0xff]
    %v356 = vld [vmem:[#allocation7 + $0x840] sm:$0xff]
    %v357 = vld [vmem:[#allocation7 + $0x848] sm:$0xff]
    %v358 = vld [vmem:[#allocation7 + $0x850] sm:$0xff]
    %v359 = vld [vmem:[#allocation7 + $0x858] sm:$0xff]
    %v360 = vld [vmem:[#allocation7 + $0x860] sm:$0xff]
    %v361 = vld [vmem:[#allocation7 + $0x868] sm:$0xff]
    %v362 = vld [vmem:[#allocation7 + $0x870] sm:$0xff]
    %v363 = vld [vmem:[#allocation7 + $0x878] sm:$0xff]
    %v364 = vld [vmem:[#allocation7 + $0x880] sm:$0xff]
    %v365 = vld [vmem:[#allocation7 + $0x888] sm:$0xff]
    %v366 = vld [vmem:[#allocation7 + $0x890] sm:$0xff]
    %v367 = vld [vmem:[#allocation7 + $0x898] sm:$0xff]
    %v368 = vld [vmem:[#allocation7 + $0x8a0] sm:$0xff]
    %v369 = vld [vmem:[#allocation7 + $0x8a8] sm:$0xff]
    %v370 = vld [vmem:[#allocation7 + $0x8b0] sm:$0xff]
    %v371 = vld [vmem:[#allocation7 + $0x8b8] sm:$0xff]
    %v372 = vld [vmem:[#allocation7 + $0x8c0] sm:$0xff]
    %v373 = vld [vmem:[#allocation7 + $0x8c8] sm:$0xff]
    %v374 = vld [vmem:[#allocation7 + $0x8d0] sm:$0xff]
    %v375 = vld [vmem:[#allocation7 + $0x8d8] sm:$0xff]
    %v376 = vld [vmem:[#allocation7 + $0x8e0] sm:$0xff]
    %v377 = vld [vmem:[#allocation7 + $0x8e8] sm:$0xff]
    %v378 = vld [vmem:[#allocation7 + $0x8f0] sm:$0xff]
    %v379 = vld [vmem:[#allocation7 + $0x8f8] sm:$0xff]
    %v380 = vld [vmem:[#allocation7 + $0x900] sm:$0xff]
    %v381 = vld [vmem:[#allocation7 + $0x908] sm:$0xff]
    %v382 = vld [vmem:[#allocation7 + $0x910] sm:$0xff]
    %v383 = vld [vmem:[#allocation7 + $0x918] sm:$0xff]
    %v384 = vld [vmem:[#allocation7 + $0x920] sm:$0xff]
    %v385 = vld [vmem:[#allocation7 + $0x928] sm:$0xff]
    %v386 = vld [vmem:[#allocation7 + $0x930] sm:$0xff]
    %v387 = vld [vmem:[#allocation7 + $0x938] sm:$0xff]
    %v388 = vld [vmem:[#allocation7 + $0x940] sm:$0xff]
    %v389 = vld [vmem:[#allocation7 + $0x948] sm:$0xff]
    %v390 = vld [vmem:[#allocation7 + $0x950] sm:$0xff]
    %v391 = vld [vmem:[#allocation7 + $0x958] sm:$0xff]
    %v392 = vld [vmem:[#allocation7 + $0x960] sm:$0xff]
    %v393 = vld [vmem:[#allocation7 + $0x968] sm:$0xff]
    %v394 = vld [vmem:[#allocation7 + $0x970] sm:$0xff]
    %v395 = vld [vmem:[#allocation7 + $0x978] sm:$0xff]
    %v396 = vld [vmem:[#allocation7 + $0x980] sm:$0xff]
    %v397 = vld [vmem:[#allocation7 + $0x988] sm:$0xff]
    %v398 = vld [vmem:[#allocation7 + $0x990] sm:$0xff]
    %v399 = vld [vmem:[#allocation7 + $0x998] sm:$0xff]
    %v400 = vld [vmem:[#allocation7 + $0x9a0] sm:$0xff]
    %v401 = vld [vmem:[#allocation7 + $0x9a8] sm:$0xff]
    %v402 = vld [vmem:[#allocation7 + $0x9b0] sm:$0xff]
    %v403 = vld [vmem:[#allocation7 + $0x9b8] sm:$0xff]
    %v404 = vld [vmem:[#allocation7 + $0x9c0] sm:$0xff]
    %v405 = vld [vmem:[#allocation7 + $0x9c8] sm:$0xff]
    %v406 = vld [vmem:[#allocation7 + $0x9d0] sm:$0xff]
    %v407 = vld [vmem:[#allocation7 + $0x9d8] sm:$0xff]
    %v408 = vld [vmem:[#allocation7 + $0x9e0] sm:$0xff]
    %v409 = vld [vmem:[#allocation7 + $0x9e8] sm:$0xff]
    %v410 = vld [vmem:[#allocation7 + $0x9f0] sm:$0xff]
    %v411 = vld [vmem:[#allocation7 + $0x9f8] sm:$0xff]
    %v412 = vld [vmem:[#allocation7 + $0xa00] sm:$0xff]
    %v413 = vld [vmem:[#allocation7 + $0xa08] sm:$0xff]
    %v414 = vld [vmem:[#allocation7 + $0xa10] sm:$0xff]
    %v415 = vld [vmem:[#allocation7 + $0xa18] sm:$0xff]
    %v416 = vld [vmem:[#allocation7 + $0xa20] sm:$0xff]
    %v417 = vld [vmem:[#allocation7 + $0xa28] sm:$0xff]
    %v418 = vld [vmem:[#allocation7 + $0xa30] sm:$0xff]
    %v419 = vld [vmem:[#allocation7 + $0xa38] sm:$0xff]
    %v420 = vld [vmem:[#allocation7 + $0xa40] sm:$0xff]
    %v421 = vld [vmem:[#allocation7 + $0xa48] sm:$0xff]
    %v422 = vld [vmem:[#allocation7 + $0xa50] sm:$0xff]
    %v423 = vld [vmem:[#allocation7 + $0xa58] sm:$0xff]
    %v424 = vld [vmem:[#allocation7 + $0xa60] sm:$0xff]
    %v425 = vld [vmem:[#allocation7 + $0xa68] sm:$0xff]
    %v426 = vld [vmem:[#allocation7 + $0xa70] sm:$0xff]
    %v427 = vld [vmem:[#allocation7 + $0xa78] sm:$0xff]
    %v428 = vld [vmem:[#allocation7 + $0xa80] sm:$0xff]
    %v429 = vld [vmem:[#allocation7 + $0xa88] sm:$0xff]
    %v430 = vld [vmem:[#allocation7 + $0xa90] sm:$0xff]
    %v431 = vld [vmem:[#allocation7 + $0xa98] sm:$0xff]
    %v432 = vld [vmem:[#allocation7 + $0xaa0] sm:$0xff]
    %v433 = vld [vmem:[#allocation7 + $0xaa8] sm:$0xff]
    %v434 = vld [vmem:[#allocation7 + $0xab0] sm:$0xff]
    %v435 = vld [vmem:[#allocation7 + $0xab8] sm:$0xff]
    %v436 = vld [vmem:[#allocation7 + $0xac0] sm:$0xff]
    %v437 = vld [vmem:[#allocation7 + $0xac8] sm:$0xff]
    %v438 = vld [vmem:[#allocation7 + $0xad0] sm:$0xff]
    %v439 = vld [vmem:[#allocation7 + $0xad8] sm:$0xff]
    %v440 = vld [vmem:[#allocation7 + $0xae0] sm:$0xff]
    %v441 = vld [vmem:[#allocation7 + $0xae8] sm:$0xff]
    %v442 = vld [vmem:[#allocation7 + $0xaf0] sm:$0xff]
    %v443 = vld [vmem:[#allocation7 + $0xaf8] sm:$0xff]
    %v444 = vld [vmem:[#allocation7 + $0xb00] sm:$0xff]
    %v445 = vld [vmem:[#allocation7 + $0xb08] sm:$0xff]
    %v446 = vld [vmem:[#allocation7 + $0xb10] sm:$0xff]
    %v447 = vld [vmem:[#allocation7 + $0xb18] sm:$0xff]
    %v448 = vld [vmem:[#allocation7 + $0xb20] sm:$0xff]
    %v449 = vld [vmem:[#allocation7 + $0xb28] sm:$0xff]
    %v450 = vld [vmem:[#allocation7 + $0xb30] sm:$0xff]
    %v451 = vld [vmem:[#allocation7 + $0xb38] sm:$0xff]
    %v452 = vld [vmem:[#allocation7 + $0xb40] sm:$0xff]
    %v453 = vld [vmem:[#allocation7 + $0xb48] sm:$0xff]
    %v454 = vld [vmem:[#allocation7 + $0xb50] sm:$0xff]
    %v455 = vld [vmem:[#allocation7 + $0xb58] sm:$0xff]
    %v456 = vld [vmem:[#allocation7 + $0xb60] sm:$0xff]
    %v457 = vld [vmem:[#allocation7 + $0xb68] sm:$0xff]
    %v458 = vld [vmem:[#allocation7 + $0xb70] sm:$0xff]
    %v459 = vld [vmem:[#allocation7 + $0xb78] sm:$0xff]
    %v460 = vld [vmem:[#allocation7 + $0xb80] sm:$0xff]
    %v461 = vld [vmem:[#allocation7 + $0xb88] sm:$0xff]
    %v462 = vld [vmem:[#allocation7 + $0xb90] sm:$0xff]
    %v463 = vld [vmem:[#allocation7 + $0xb98] sm:$0xff]
    %v464 = vld [vmem:[#allocation7 + $0xba0] sm:$0xff]
    %v465 = vld [vmem:[#allocation7 + $0xba8] sm:$0xff]
    %v466 = vld [vmem:[#allocation7 + $0xbb0] sm:$0xff]
    %v467 = vld [vmem:[#allocation7 + $0xbb8] sm:$0xff]
    %v468 = vld [vmem:[#allocation7 + $0xbc0] sm:$0xff]
    %v469 = vld [vmem:[#allocation7 + $0xbc8] sm:$0xff]
    %v470 = vld [vmem:[#allocation7 + $0xbd0] sm:$0xff]
    %v471 = vld [vmem:[#allocation7 + $0xbd8] sm:$0xff]
    %v472 = vld [vmem:[#allocation7 + $0xbe0] sm:$0xff]
    %v473 = vld [vmem:[#allocation7 + $0xbe8] sm:$0xff]
    %v474 = vld [vmem:[#allocation7 + $0xbf0] sm:$0xff]
    %v475 = vld [vmem:[#allocation7 + $0xbf8] sm:$0xff]
    %v476 = vld [vmem:[#allocation7 + $0xc00] sm:$0xff]
    %v477 = vld [vmem:[#allocation7 + $0xc08] sm:$0xff]
    %v478 = vld [vmem:[#allocation7 + $0xc10] sm:$0xff]
    %v479 = vld [vmem:[#allocation7 + $0xc18] sm:$0xff]
    %v480 = vld [vmem:[#allocation7 + $0xc20] sm:$0xff]
    %v481 = vld [vmem:[#allocation7 + $0xc28] sm:$0xff]
    %v482 = vld [vmem:[#allocation7 + $0xc30] sm:$0xff]
    %v483 = vld [vmem:[#allocation7 + $0xc38] sm:$0xff]
    %v484 = vld [vmem:[#allocation7 + $0xc40] sm:$0xff]
    %v485 = vld [vmem:[#allocation7 + $0xc48] sm:$0xff]
    %v486 = vld [vmem:[#allocation7 + $0xc50] sm:$0xff]
    %v487 = vld [vmem:[#allocation7 + $0xc58] sm:$0xff]
    %v488 = vld [vmem:[#allocation7 + $0xc60] sm:$0xff]
    %v489 = vld [vmem:[#allocation7 + $0xc68] sm:$0xff]
    %v490 = vld [vmem:[#allocation7 + $0xc70] sm:$0xff]
    %v491 = vld [vmem:[#allocation7 + $0xc78] sm:$0xff]
    %v492 = vld [vmem:[#allocation7 + $0xc80] sm:$0xff]
    %v493 = vld [vmem:[#allocation7 + $0xc88] sm:$0xff]
    %v494 = vld [vmem:[#allocation7 + $0xc90] sm:$0xff]
    %v495 = vld [vmem:[#allocation7 + $0xc98] sm:$0xff]
    %v496 = vld [vmem:[#allocation7 + $0xca0] sm:$0xff]
    %v497 = vld [vmem:[#allocation7 + $0xca8] sm:$0xff]
    %v498 = vld [vmem:[#allocation7 + $0xcb0] sm:$0xff]
    %v499 = vld [vmem:[#allocation7 + $0xcb8] sm:$0xff]
    %v500 = vld [vmem:[#allocation7 + $0xcc0] sm:$0xff]
    %v501 = vld [vmem:[#allocation7 + $0xcc8] sm:$0xff]
    %v502 = vld [vmem:[#allocation7 + $0xcd0] sm:$0xff]
    %v503 = vld [vmem:[#allocation7 + $0xcd8] sm:$0xff]
    %v504 = vld [vmem:[#allocation7 + $0xce0] sm:$0xff]
    %v505 = vld [vmem:[#allocation7 + $0xce8] sm:$0xff]
    %v506 = vld [vmem:[#allocation7 + $0xcf0] sm:$0xff]
    %v507 = vld [vmem:[#allocation7 + $0xcf8] sm:$0xff]
    %v508 = vld [vmem:[#allocation7 + $0xd00] sm:$0xff]
    %v509 = vld [vmem:[#allocation7 + $0xd08] sm:$0xff]
    %v510 = vld [vmem:[#allocation7 + $0xd10] sm:$0xff]
    %v511 = vld [vmem:[#allocation7 + $0xd18] sm:$0xff]
    %v512 = vld [vmem:[#allocation7 + $0xd20] sm:$0xff]
    %v513 = vld [vmem:[#allocation7 + $0xd28] sm:$0xff]
    %v514 = vld [vmem:[#allocation7 + $0xd30] sm:$0xff]
    %v515 = vld [vmem:[#allocation7 + $0xd38] sm:$0xff]
    %v516 = vld [vmem:[#allocation7 + $0xd40] sm:$0xff]
    %v517 = vld [vmem:[#allocation7 + $0xd48] sm:$0xff]
    %v518 = vld [vmem:[#allocation7 + $0xd50] sm:$0xff]
    %v519 = vld [vmem:[#allocation7 + $0xd58] sm:$0xff]
    %v520 = vld [vmem:[#allocation7 + $0xd60] sm:$0xff]
    %v521 = vld [vmem:[#allocation7 + $0xd68] sm:$0xff]
    %v522 = vld [vmem:[#allocation7 + $0xd70] sm:$0xff]
    %v523 = vld [vmem:[#allocation7 + $0xd78] sm:$0xff]
    %v524 = vld [vmem:[#allocation7 + $0xd80] sm:$0xff]
    %v525 = vld [vmem:[#allocation7 + $0xd88] sm:$0xff]
    %v526 = vld [vmem:[#allocation7 + $0xd90] sm:$0xff]
    %v527 = vld [vmem:[#allocation7 + $0xd98] sm:$0xff]
    %v528 = vld [vmem:[#allocation7 + $0xda0] sm:$0xff]
    %v529 = vld [vmem:[#allocation7 + $0xda8] sm:$0xff]
    %v530 = vld [vmem:[#allocation7 + $0xdb0] sm:$0xff]
    %v531 = vld [vmem:[#allocation7 + $0xdb8] sm:$0xff]
    %v532 = vld [vmem:[#allocation7 + $0xdc0] sm:$0xff]
    %v533 = vld [vmem:[#allocation7 + $0xdc8] sm:$0xff]
    %v534 = vld [vmem:[#allocation7 + $0xdd0] sm:$0xff]
    %v535 = vld [vmem:[#allocation7 + $0xdd8] sm:$0xff]
    %v536 = vld [vmem:[#allocation7 + $0xde0] sm:$0xff]
    %v537 = vld [vmem:[#allocation7 + $0xde8] sm:$0xff]
    %v538 = vld [vmem:[#allocation7 + $0xdf0] sm:$0xff]
    %v539 = vld [vmem:[#allocation7 + $0xdf8] sm:$0xff]
    %v540 = vld [vmem:[#allocation7 + $0xe00] sm:$0xff]
    %v541 = vld [vmem:[#allocation7 + $0xe08] sm:$0xff]
    %v542 = vld [vmem:[#allocation7 + $0xe10] sm:$0xff]
    %v543 = vld [vmem:[#allocation7 + $0xe18] sm:$0xff]
    %v544 = vld [vmem:[#allocation7 + $0xe20] sm:$0xff]
    %v545 = vld [vmem:[#allocation7 + $0xe28] sm:$0xff]
    %v546 = vld [vmem:[#allocation7 + $0xe30] sm:$0xff]
    %v547 = vld [vmem:[#allocation7 + $0xe38] sm:$0xff]
    %v548 = vld [vmem:[#allocation7 + $0xe40] sm:$0xff]
    %v549 = vld [vmem:[#allocation7 + $0xe48] sm:$0xff]
    %v550 = vld [vmem:[#allocation7 + $0xe50] sm:$0xff]
    %v551 = vld [vmem:[#allocation7 + $0xe58] sm:$0xff]
    %v552 = vld [vmem:[#allocation7 + $0xe60] sm:$0xff]
    %v553 = vld [vmem:[#allocation7 + $0xe68] sm:$0xff]
    %v554 = vld [vmem:[#allocation7 + $0xe70] sm:$0xff]
    %v555 = vld [vmem:[#allocation7 + $0xe78] sm:$0xff]
    %v556 = vld [vmem:[#allocation7 + $0xe80] sm:$0xff]
    %v557 = vld [vmem:[#allocation7 + $0xe88] sm:$0xff]
    %v558 = vld [vmem:[#allocation7 + $0xe90] sm:$0xff]
    %v559 = vld [vmem:[#allocation7 + $0xe98] sm:$0xff]
    %v560 = vld [vmem:[#allocation7 + $0xea0] sm:$0xff]
    %v561 = vld [vmem:[#allocation7 + $0xea8] sm:$0xff]
    %v562 = vld [vmem:[#allocation7 + $0xeb0] sm:$0xff]
    %v563 = vld [vmem:[#allocation7 + $0xeb8] sm:$0xff]
    %v564 = vld [vmem:[#allocation7 + $0xec0] sm:$0xff]
    %v565 = vld [vmem:[#allocation7 + $0xec8] sm:$0xff]
    %v566 = vld [vmem:[#allocation7 + $0xed0] sm:$0xff]
    %v567 = vld [vmem:[#allocation7 + $0xed8] sm:$0xff]
    %v568 = vld [vmem:[#allocation7 + $0xee0] sm:$0xff]
    %v569 = vld [vmem:[#allocation7 + $0xee8] sm:$0xff]
    %v570 = vld [vmem:[#allocation7 + $0xef0] sm:$0xff]
    %v571 = vld [vmem:[#allocation7 + $0xef8] sm:$0xff]
    %v572 = vld [vmem:[#allocation7 + $0xf00] sm:$0xff]
    %v573 = vld [vmem:[#allocation7 + $0xf08] sm:$0xff]
    %v574 = vld [vmem:[#allocation7 + $0xf10] sm:$0xff]
    %v575 = vld [vmem:[#allocation7 + $0xf18] sm:$0xff]
    %v576 = vld [vmem:[#allocation7 + $0xf20] sm:$0xff]
    %v577 = vld [vmem:[#allocation7 + $0xf28] sm:$0xff]
    %v578 = vld [vmem:[#allocation7 + $0xf30] sm:$0xff]
    %v579 = vld [vmem:[#allocation7 + $0xf38] sm:$0xff]
    %v580 = vld [vmem:[#allocation7 + $0xf40] sm:$0xff]
    %v581 = vld [vmem:[#allocation7 + $0xf48] sm:$0xff]
    %v582 = vld [vmem:[#allocation7 + $0xf50] sm:$0xff]
    %v583 = vld [vmem:[#allocation7 + $0xf58] sm:$0xff]
    %v584 = vld [vmem:[#allocation7 + $0xf60] sm:$0xff]
    %v585 = vld [vmem:[#allocation7 + $0xf68] sm:$0xff]
    %v586 = vld [vmem:[#allocation7 + $0xf70] sm:$0xff]
    %v587 = vld [vmem:[#allocation7 + $0xf78] sm:$0xff]
    %v588 = vld [vmem:[#allocation7 + $0xf80] sm:$0xff]
    %v589 = vld [vmem:[#allocation7 + $0xf88] sm:$0xff]
    %v590 = vld [vmem:[#allocation7 + $0xf90] sm:$0xff]
    %v591 = vld [vmem:[#allocation7 + $0xf98] sm:$0xff]
    %v592 = vld [vmem:[#allocation7 + $0xfa0] sm:$0xff]
    %v593 = vld [vmem:[#allocation7 + $0xfa8] sm:$0xff]
    %v594 = vld [vmem:[#allocation7 + $0xfb0] sm:$0xff]
    %v595 = vld [vmem:[#allocation7 + $0xfb8] sm:$0xff]
    %v596 = vld [vmem:[#allocation7 + $0xfc0] sm:$0xff]
    %v597 = vld [vmem:[#allocation7 + $0xfc8] sm:$0xff]
    %v598 = vld [vmem:[#allocation7 + $0xfd0] sm:$0xff]
    %v599 = vld [vmem:[#allocation7 + $0xfd8] sm:$0xff]
    %v600 = vld [vmem:[#allocation7 + $0xfe0] sm:$0xff]
    %v601 = vld [vmem:[#allocation7 + $0xfe8] sm:$0xff]
    %v602 = vld [vmem:[#allocation7 + $0xff0] sm:$0xff]
    %v603 = vld [vmem:[#allocation7 + $0xff8] sm:$0xff]
    %v604 = vld [vmem:[#allocation7 + $0x1000] sm:$0xff]
    %v605 = vld [vmem:[#allocation7 + $0x1008] sm:$0xff]
    %v606 = vld [vmem:[#allocation7 + $0x1010] sm:$0xff]
    %v607 = vld [vmem:[#allocation7 + $0x1018] sm:$0xff]
    %v608 = vld [vmem:[#allocation7 + $0x1020] sm:$0xff]
    %v609 = vld [vmem:[#allocation7 + $0x1028] sm:$0xff]
    %v610 = vld [vmem:[#allocation7 + $0x1030] sm:$0xff]
    %v611 = vld [vmem:[#allocation7 + $0x1038] sm:$0xff]
    %v612 = vld [vmem:[#allocation7 + $0x1040] sm:$0xff]
    %v613 = vld [vmem:[#allocation7 + $0x1048] sm:$0xff]
    %v614 = vld [vmem:[#allocation7 + $0x1050] sm:$0xff]
    %v615 = vld [vmem:[#allocation7 + $0x1058] sm:$0xff]
    %v616 = vld [vmem:[#allocation7 + $0x1060] sm:$0xff]
    %v617 = vld [vmem:[#allocation7 + $0x1068] sm:$0xff]
    %v618 = vld [vmem:[#allocation7 + $0x1070] sm:$0xff]
    %v619 = vld [vmem:[#allocation7 + $0x1078] sm:$0xff]
    %v620 = vld [vmem:[#allocation7 + $0x1080] sm:$0xff]
    %v621 = vld [vmem:[#allocation7 + $0x1088] sm:$0xff]
    %v622 = vld [vmem:[#allocation7 + $0x1090] sm:$0xff]
    %v623 = vld [vmem:[#allocation7 + $0x1098] sm:$0xff]
    %v624 = vld [vmem:[#allocation7 + $0x10a0] sm:$0xff]
    %v625 = vld [vmem:[#allocation7 + $0x10a8] sm:$0xff]
    %v626 = vld [vmem:[#allocation7 + $0x10b0] sm:$0xff]
    %v627 = vld [vmem:[#allocation7 + $0x10b8] sm:$0xff]
    %v628 = vld [vmem:[#allocation7 + $0x10c0] sm:$0xff]
    %v629 = vld [vmem:[#allocation7 + $0x10c8] sm:$0xff]
    %v630 = vld [vmem:[#allocation7 + $0x10d0] sm:$0xff]
    %v631 = vld [vmem:[#allocation7 + $0x10d8] sm:$0xff]
    %v632 = vld [vmem:[#allocation7 + $0x10e0] sm:$0xff]
    %v633 = vld [vmem:[#allocation7 + $0x10e8] sm:$0xff]
    %v634 = vld [vmem:[#allocation7 + $0x10f0] sm:$0xff]
    %v635 = vld [vmem:[#allocation7 + $0x10f8] sm:$0xff]
    %v636 = vld [vmem:[#allocation7 + $0x1100] sm:$0xff]
    %v637 = vld [vmem:[#allocation7 + $0x1108] sm:$0xff]
    %v638 = vld [vmem:[#allocation7 + $0x1110] sm:$0xff]
    %v639 = vld [vmem:[#allocation7 + $0x1118] sm:$0xff]
    %v640 = vld [vmem:[#allocation7 + $0x1120] sm:$0xff]
    %v641 = vld [vmem:[#allocation7 + $0x1128] sm:$0xff]
    %v642 = vld [vmem:[#allocation7 + $0x1130] sm:$0xff]
    %v643 = vld [vmem:[#allocation7 + $0x1138] sm:$0xff]
    %v644 = vld [vmem:[#allocation7 + $0x1140] sm:$0xff]
    %v645 = vld [vmem:[#allocation7 + $0x1148] sm:$0xff]
    %v646 = vld [vmem:[#allocation7 + $0x1150] sm:$0xff]
    %v647 = vld [vmem:[#allocation7 + $0x1158] sm:$0xff]
    %v648 = vld [vmem:[#allocation7 + $0x1160] sm:$0xff]
    %v649 = vld [vmem:[#allocation7 + $0x1168] sm:$0xff]
    %v650 = vld [vmem:[#allocation7 + $0x1170] sm:$0xff]
    %v651 = vld [vmem:[#allocation7 + $0x1178] sm:$0xff]
    %v652 = vld [vmem:[#allocation7 + $0x1180] sm:$0xff]
    %v653 = vld [vmem:[#allocation7 + $0x1188] sm:$0xff]
    %v654 = vld [vmem:[#allocation7 + $0x1190] sm:$0xff]
    %v655 = vld [vmem:[#allocation7 + $0x1198] sm:$0xff]
    %v656 = vld [vmem:[#allocation7 + $0x11a0] sm:$0xff]
    %v657 = vld [vmem:[#allocation7 + $0x11a8] sm:$0xff]
    %v658 = vld [vmem:[#allocation7 + $0x11b0] sm:$0xff]
    %v659 = vld [vmem:[#allocation7 + $0x11b8] sm:$0xff]
    %v660 = vld [vmem:[#allocation7 + $0x11c0] sm:$0xff]
    %v661 = vld [vmem:[#allocation7 + $0x11c8] sm:$0xff]
    %v662 = vld [vmem:[#allocation7 + $0x11d0] sm:$0xff]
    %v663 = vld [vmem:[#allocation7 + $0x11d8] sm:$0xff]
    %v664 = vld [vmem:[#allocation7 + $0x11e0] sm:$0xff]
    %v665 = vld [vmem:[#allocation7 + $0x11e8] sm:$0xff]
    %v666 = vld [vmem:[#allocation7 + $0x11f0] sm:$0xff]
    %v667 = vld [vmem:[#allocation7 + $0x11f8] sm:$0xff]
    %668 = vmatprep.subr.mxu0 %v93
    %669 = vmatpush1.msra.mxu0 %v92
    %670 = vmatprep.subr.mxu0 %v111
    %671 = vmatpush1.msra.mxu0 %v110
    %672 = vmatprep.subr.mxu0 %v129
    %673 = vmatpush1.msra.mxu0 %v128
    %674 = vmatprep.subr.mxu0 %v147
    %675 = vmatpush1.msra.mxu0 %v146
    %676 = vmatprep.subr.mxu0 %v165
    %677 = vmatpush1.msra.mxu0 %v164
    %678 = vmatprep.subr.mxu0 %v183
    %679 = vmatpush1.msra.mxu0 %v182
    %680 = vmatprep.subr.mxu0 %v201
    %681 = vmatpush1.msra.mxu0 %v200
    %682 = vmatprep.subr.mxu0 %v219
    %683 = vmatpush1.msra.mxu0 %v218
    %684 = vmatprep.subr.mxu0 %v237
    %685 = vmatpush1.msra.mxu0 %v236
    %686 = vmatprep.subr.mxu0 %v255
    %687 = vmatpush1.msra.mxu0 %v254
    %688 = vmatprep.subr.mxu0 %v273
    %689 = vmatpush1.msra.mxu0 %v272
    %690 = vmatprep.subr.mxu0 %v291
    %691 = vmatpush1.msra.mxu0 %v290
    %692 = vmatprep.subr.mxu0 %v309
    %693 = vmatpush1.msra.mxu0 %v308
    %694 = vmatprep.subr.mxu0 %v327
    %695 = vmatpush1.msra.mxu0 %v326
    %696 = vmatprep.subr.mxu0 %v345
    %697 = vmatpush1.msra.mxu0 %v344
    %698 = vmatprep.subr.mxu0 %v363
    %699 = vmatpush1.msra.mxu0 %v362
    %700 = vmatprep.subr.mxu0 %v381
    %701 = vmatpush1.msra.mxu0 %v380
    %702 = vmatprep.subr.mxu0 %v399
    %703 = vmatpush1.msra.mxu0 %v398
    %704 = vmatprep.subr.mxu0 %v417
    %705 = vmatpush1.msra.mxu0 %v416
    %706 = vmatprep.subr.mxu0 %v435
    %707 = vmatpush1.msra.mxu0 %v434
    %708 = vmatprep.subr.mxu0 %v453
    %709 = vmatpush1.msra.mxu0 %v452
    %710 = vmatprep.subr.mxu0 %v471
    %711 = vmatpush1.msra.mxu0 %v470
    %712 = vmatprep.subr.mxu0 %v489
    %713 = vmatpush1.msra.mxu0 %v488
    %714 = vmatprep.subr.mxu0 %v507
    %715 = vmatpush1.msra.mxu0 %v506
    %716 = vmatprep.subr.mxu0 %v525
    %717 = vmatpush1.msra.mxu0 %v524
    %718 = vmatprep.subr.mxu0 %v543
    %719 = vmatpush1.msra.mxu0 %v542
    %720 = vmatprep.subr.mxu0 %v561
    %721 = vmatpush1.msra.mxu0 %v560
    %722 = vmatprep.subr.mxu0 %v579
    %723 = vmatpush1.msra.mxu0 %v578
    %724 = vmatprep.subr.mxu0 %v597
    %725 = vmatpush1.msra.mxu0 %v596
    %726 = vmatprep.subr.mxu0 %v615
    %727 = vmatpush1.msra.mxu0 %v614
    %728 = vmatprep.subr.mxu0 %v633
    %729 = vmatpush1.msra.mxu0 %v632
    %730 = vmatprep.subr.mxu0 %v651
    %731 = vmatpush1.msra.mxu0 %v650
    %732 = vmatprep.mubr.f32.mxu0 %v91
    %733 = vmatmul.mubr.f32.gmra.mrb[0].mxu0 %v90
    %v734 = vpop.f32.mrb[0].mxu0
    %v735 = vadd.f32 0.0, %v734
    %v736 = vpop.f32.mrb[0].mxu0
    %v737 = vadd.f32 0.0, %v736
    %738 = vdwg.mxu0
    %739 = vmatprep.subr.mxu0 %v95
    %740 = vmatpush1.msra.mxu0 %v94
    %741 = vmatprep.subr.mxu0 %v113
    %742 = vmatpush1.msra.mxu0 %v112
    %743 = vmatprep.subr.mxu0 %v131
    %744 = vmatpush1.msra.mxu0 %v130
    %745 = vmatprep.subr.mxu0 %v149
    %746 = vmatpush1.msra.mxu0 %v148
    %747 = vmatprep.subr.mxu0 %v167
    %748 = vmatpush1.msra.mxu0 %v166
    %749 = vmatprep.subr.mxu0 %v185
    %750 = vmatpush1.msra.mxu0 %v184
    %751 = vmatprep.subr.mxu0 %v203
    %752 = vmatpush1.msra.mxu0 %v202
    %753 = vmatprep.subr.mxu0 %v221
    %754 = vmatpush1.msra.mxu0 %v220
    %755 = vmatprep.subr.mxu0 %v239
    %756 = vmatpush1.msra.mxu0 %v238
    %757 = vmatprep.subr.mxu0 %v257
    %758 = vmatpush1.msra.mxu0 %v256
    %759 = vmatprep.subr.mxu0 %v275
    %760 = vmatpush1.msra.mxu0 %v274
    %761 = vmatprep.subr.mxu0 %v293
    %762 = vmatpush1.msra.mxu0 %v292
    %763 = vmatprep.subr.mxu0 %v311
    %764 = vmatpush1.msra.mxu0 %v310
    %765 = vmatprep.subr.mxu0 %v329
    %766 = vmatpush1.msra.mxu0 %v328
    %767 = vmatprep.subr.mxu0 %v347
    %768 = vmatpush1.msra.mxu0 %v346
    %769 = vmatprep.subr.mxu0 %v365
    %770 = vmatpush1.msra.mxu0 %v364
    %771 = vmatprep.subr.mxu0 %v383
    %772 = vmatpush1.msra.mxu0 %v382
    %773 = vmatprep.subr.mxu0 %v401
    %774 = vmatpush1.msra.mxu0 %v400
    %775 = vmatprep.subr.mxu0 %v419
    %776 = vmatpush1.msra.mxu0 %v418
    %777 = vmatprep.subr.mxu0 %v437
    %778 = vmatpush1.msra.mxu0 %v436
    %779 = vmatprep.subr.mxu0 %v455
    %780 = vmatpush1.msra.mxu0 %v454
    %781 = vmatprep.subr.mxu0 %v473
    %782 = vmatpush1.msra.mxu0 %v472
    %783 = vmatprep.subr.mxu0 %v491
    %784 = vmatpush1.msra.mxu0 %v490
    %785 = vmatprep.subr.mxu0 %v509
    %786 = vmatpush1.msra.mxu0 %v508
    %787 = vmatprep.subr.mxu0 %v527
    %788 = vmatpush1.msra.mxu0 %v526
    %789 = vmatprep.subr.mxu0 %v545
    %790 = vmatpush1.msra.mxu0 %v544
    %791 = vmatprep.subr.mxu0 %v563
    %792 = vmatpush1.msra.mxu0 %v562
    %793 = vmatprep.subr.mxu0 %v581
    %794 = vmatpush1.msra.mxu0 %v580
    %795 = vmatprep.subr.mxu0 %v599
    %796 = vmatpush1.msra.mxu0 %v598
    %797 = vmatprep.subr.mxu0 %v617
    %798 = vmatpush1.msra.mxu0 %v616
    %799 = vmatprep.subr.mxu0 %v635
    %800 = vmatpush1.msra.mxu0 %v634
    %801 = vmatprep.subr.mxu0 %v653
    %802 = vmatpush1.msra.mxu0 %v652
    %803 = vmatprep.mubr.f32.mxu0 %v91
    %804 = vmatmul.mubr.f32.gmra.mrb[0].mxu0 %v90
    %v805 = vpop.f32.mrb[0].mxu0
    %v806 = vadd.f32 0.0, %v805
    %v807 = vpop.f32.mrb[0].mxu0
    %v808 = vadd.f32 0.0, %v807
    %809 = vdwg.mxu0
    %810 = vmatprep.subr.mxu0 %v97
    %811 = vmatpush1.msra.mxu0 %v96
    %812 = vmatprep.subr.mxu0 %v115
    %813 = vmatpush1.msra.mxu0 %v114
    %814 = vmatprep.subr.mxu0 %v133
    %815 = vmatpush1.msra.mxu0 %v132
    %816 = vmatprep.subr.mxu0 %v151
    %817 = vmatpush1.msra.mxu0 %v150
    %818 = vmatprep.subr.mxu0 %v169
    %819 = vmatpush1.msra.mxu0 %v168
    %820 = vmatprep.subr.mxu0 %v187
    %821 = vmatpush1.msra.mxu0 %v186
    %822 = vmatprep.subr.mxu0 %v205
    %823 = vmatpush1.msra.mxu0 %v204
    %824 = vmatprep.subr.mxu0 %v223
    %825 = vmatpush1.msra.mxu0 %v222
    %826 = vmatprep.subr.mxu0 %v241
    %827 = vmatpush1.msra.mxu0 %v240
    %828 = vmatprep.subr.mxu0 %v259
    %829 = vmatpush1.msra.mxu0 %v258
    %830 = vmatprep.subr.mxu0 %v277
    %831 = vmatpush1.msra.mxu0 %v276
    %832 = vmatprep.subr.mxu0 %v295
    %833 = vmatpush1.msra.mxu0 %v294
    %834 = vmatprep.subr.mxu0 %v313
    %835 = vmatpush1.msra.mxu0 %v312
    %836 = vmatprep.subr.mxu0 %v331
    %837 = vmatpush1.msra.mxu0 %v330
    %838 = vmatprep.subr.mxu0 %v349
    %839 = vmatpush1.msra.mxu0 %v348
    %840 = vmatprep.subr.mxu0 %v367
    %841 = vmatpush1.msra.mxu0 %v366
    %842 = vmatprep.subr.mxu0 %v385
    %843 = vmatpush1.msra.mxu0 %v384
    %844 = vmatprep.subr.mxu0 %v403
    %845 = vmatpush1.msra.mxu0 %v402
    %846 = vmatprep.subr.mxu0 %v421
    %847 = vmatpush1.msra.mxu0 %v420
    %848 = vmatprep.subr.mxu0 %v439
    %849 = vmatpush1.msra.mxu0 %v438
    %850 = vmatprep.subr.mxu0 %v457
    %851 = vmatpush1.msra.mxu0 %v456
    %852 = vmatprep.subr.mxu0 %v475
    %853 = vmatpush1.msra.mxu0 %v474
    %854 = vmatprep.subr.mxu0 %v493
    %855 = vmatpush1.msra.mxu0 %v492
    %856 = vmatprep.subr.mxu0 %v511
    %857 = vmatpush1.msra.mxu0 %v510
    %858 = vmatprep.subr.mxu0 %v529
    %859 = vmatpush1.msra.mxu0 %v528
    %860 = vmatprep.subr.mxu0 %v547
    %861 = vmatpush1.msra.mxu0 %v546
    %862 = vmatprep.subr.mxu0 %v565
    %863 = vmatpush1.msra.mxu0 %v564
    %864 = vmatprep.subr.mxu0 %v583
    %865 = vmatpush1.msra.mxu0 %v582
    %866 = vmatprep.subr.mxu0 %v601
    %867 = vmatpush1.msra.mxu0 %v600
    %868 = vmatprep.subr.mxu0 %v619
    %869 = vmatpush1.msra.mxu0 %v618
    %870 = vmatprep.subr.mxu0 %v637
    %871 = vmatpush1.msra.mxu0 %v636
    %872 = vmatprep.subr.mxu0 %v655
    %873 = vmatpush1.msra.mxu0 %v654
    %874 = vmatprep.mubr.f32.mxu0 %v91
    %875 = vmatmul.mubr.f32.gmra.mrb[0].mxu0 %v90
    %v876 = vpop.f32.mrb[0].mxu0
    %v877 = vadd.f32 0.0, %v876
    %v878 = vpop.f32.mrb[0].mxu0
    %v879 = vadd.f32 0.0, %v878
    %880 = vdwg.mxu0
    %881 = vmatprep.subr.mxu0 %v99
    %882 = vmatpush1.msra.mxu0 %v98
    %883 = vmatprep.subr.mxu0 %v117
    %884 = vmatpush1.msra.mxu0 %v116
    %885 = vmatprep.subr.mxu0 %v135
    %886 = vmatpush1.msra.mxu0 %v134
    %887 = vmatprep.subr.mxu0 %v153
    %888 = vmatpush1.msra.mxu0 %v152
    %889 = vmatprep.subr.mxu0 %v171
    %890 = vmatpush1.msra.mxu0 %v170
    %891 = vmatprep.subr.mxu0 %v189
    %892 = vmatpush1.msra.mxu0 %v188
    %893 = vmatprep.subr.mxu0 %v207
    %894 = vmatpush1.msra.mxu0 %v206
    %895 = vmatprep.subr.mxu0 %v225
    %896 = vmatpush1.msra.mxu0 %v224
    %897 = vmatprep.subr.mxu0 %v243
    %898 = vmatpush1.msra.mxu0 %v242
    %899 = vmatprep.subr.mxu0 %v261
    %900 = vmatpush1.msra.mxu0 %v260
    %901 = vmatprep.subr.mxu0 %v279
    %902 = vmatpush1.msra.mxu0 %v278
    %903 = vmatprep.subr.mxu0 %v297
    %904 = vmatpush1.msra.mxu0 %v296
    %905 = vmatprep.subr.mxu0 %v315
    %906 = vmatpush1.msra.mxu0 %v314
    %907 = vmatprep.subr.mxu0 %v333
    %908 = vmatpush1.msra.mxu0 %v332
    %909 = vmatprep.subr.mxu0 %v351
    %910 = vmatpush1.msra.mxu0 %v350
    %911 = vmatprep.subr.mxu0 %v369
    %912 = vmatpush1.msra.mxu0 %v368
    %913 = vmatprep.subr.mxu0 %v387
    %914 = vmatpush1.msra.mxu0 %v386
    %915 = vmatprep.subr.mxu0 %v405
    %916 = vmatpush1.msra.mxu0 %v404
    %917 = vmatprep.subr.mxu0 %v423
    %918 = vmatpush1.msra.mxu0 %v422
    %919 = vmatprep.subr.mxu0 %v441
    %920 = vmatpush1.msra.mxu0 %v440
    %921 = vmatprep.subr.mxu0 %v459
    %922 = vmatpush1.msra.mxu0 %v458
    %923 = vmatprep.subr.mxu0 %v477
    %924 = vmatpush1.msra.mxu0 %v476
    %925 = vmatprep.subr.mxu0 %v495
    %926 = vmatpush1.msra.mxu0 %v494
    %927 = vmatprep.subr.mxu0 %v513
    %928 = vmatpush1.msra.mxu0 %v512
    %929 = vmatprep.subr.mxu0 %v531
    %930 = vmatpush1.msra.mxu0 %v530
    %931 = vmatprep.subr.mxu0 %v549
    %932 = vmatpush1.msra.mxu0 %v548
    %933 = vmatprep.subr.mxu0 %v567
    %934 = vmatpush1.msra.mxu0 %v566
    %935 = vmatprep.subr.mxu0 %v585
    %936 = vmatpush1.msra.mxu0 %v584
    %937 = vmatprep.subr.mxu0 %v603
    %938 = vmatpush1.msra.mxu0 %v602
    %939 = vmatprep.subr.mxu0 %v621
    %940 = vmatpush1.msra.mxu0 %v620
    %941 = vmatprep.subr.mxu0 %v639
    %942 = vmatpush1.msra.mxu0 %v638
    %943 = vmatprep.subr.mxu0 %v657
    %944 = vmatpush1.msra.mxu0 %v656
    %945 = vmatprep.mubr.f32.mxu0 %v91
    %946 = vmatmul.mubr.f32.gmra.mrb[0].mxu0 %v90
    %v947 = vpop.f32.mrb[0].mxu0
    %v948 = vadd.f32 0.0, %v947
    %v949 = vpop.f32.mrb[0].mxu0
    %v950 = vadd.f32 0.0, %v949
    %951 = vdwg.mxu0
    %952 = vmatprep.subr.mxu0 %v101
    %953 = vmatpush1.msra.mxu0 %v100
    %954 = vmatprep.subr.mxu0 %v119
    %955 = vmatpush1.msra.mxu0 %v118
    %956 = vmatprep.subr.mxu0 %v137
    %957 = vmatpush1.msra.mxu0 %v136
    %958 = vmatprep.subr.mxu0 %v155
    %959 = vmatpush1.msra.mxu0 %v154
    %960 = vmatprep.subr.mxu0 %v173
    %961 = vmatpush1.msra.mxu0 %v172
    %962 = vmatprep.subr.mxu0 %v191
    %963 = vmatpush1.msra.mxu0 %v190
    %964 = vmatprep.subr.mxu0 %v209
    %965 = vmatpush1.msra.mxu0 %v208
    %966 = vmatprep.subr.mxu0 %v227
    %967 = vmatpush1.msra.mxu0 %v226
    %968 = vmatprep.subr.mxu0 %v245
    %969 = vmatpush1.msra.mxu0 %v244
    %970 = vmatprep.subr.mxu0 %v263
    %971 = vmatpush1.msra.mxu0 %v262
    %972 = vmatprep.subr.mxu0 %v281
    %973 = vmatpush1.msra.mxu0 %v280
    %974 = vmatprep.subr.mxu0 %v299
    %975 = vmatpush1.msra.mxu0 %v298
    %976 = vmatprep.subr.mxu0 %v317
    %977 = vmatpush1.msra.mxu0 %v316
    %978 = vmatprep.subr.mxu0 %v335
    %979 = vmatpush1.msra.mxu0 %v334
    %980 = vmatprep.subr.mxu0 %v353
    %981 = vmatpush1.msra.mxu0 %v352
    %982 = vmatprep.subr.mxu0 %v371
    %983 = vmatpush1.msra.mxu0 %v370
    %984 = vmatprep.subr.mxu0 %v389
    %985 = vmatpush1.msra.mxu0 %v388
    %986 = vmatprep.subr.mxu0 %v407
    %987 = vmatpush1.msra.mxu0 %v406
    %988 = vmatprep.subr.mxu0 %v425
    %989 = vmatpush1.msra.mxu0 %v424
    %990 = vmatprep.subr.mxu0 %v443
    %991 = vmatpush1.msra.mxu0 %v442
    %992 = vmatprep.subr.mxu0 %v461
    %993 = vmatpush1.msra.mxu0 %v460
    %994 = vmatprep.subr.mxu0 %v479
    %995 = vmatpush1.msra.mxu0 %v478
    %996 = vmatprep.subr.mxu0 %v497
    %997 = vmatpush1.msra.mxu0 %v496
    %998 = vmatprep.subr.mxu0 %v515
    %999 = vmatpush1.msra.mxu0 %v514
    %1000 = vmatprep.subr.mxu0 %v533
    %1001 = vmatpush1.msra.mxu0 %v532
    %1002 = vmatprep.subr.mxu0 %v551
    %1003 = vmatpush1.msra.mxu0 %v550
    %1004 = vmatprep.subr.mxu0 %v569
    %1005 = vmatpush1.msra.mxu0 %v568
    %1006 = vmatprep.subr.mxu0 %v587
    %1007 = vmatpush1.msra.mxu0 %v586
    %1008 = vmatprep.subr.mxu0 %v605
    %1009 = vmatpush1.msra.mxu0 %v604
    %1010 = vmatprep.subr.mxu0 %v623
    %1011 = vmatpush1.msra.mxu0 %v622
    %1012 = vmatprep.subr.mxu0 %v641
    %1013 = vmatpush1.msra.mxu0 %v640
    %1014 = vmatprep.subr.mxu0 %v659
    %1015 = vmatpush1.msra.mxu0 %v658
    %1016 = vmatprep.mubr.f32.mxu0 %v91
    %1017 = vmatmul.mubr.f32.gmra.mrb[0].mxu0 %v90
    %v1018 = vpop.f32.mrb[0].mxu0
    %v1019 = vadd.f32 0.0, %v1018
    %v1020 = vpop.f32.mrb[0].mxu0
    %v1021 = vadd.f32 0.0, %v1020
    %1022 = vdwg.mxu0
    %1023 = vmatprep.subr.mxu0 %v103
    %1024 = vmatpush1.msra.mxu0 %v102
    %1025 = vmatprep.subr.mxu0 %v121
    %1026 = vmatpush1.msra.mxu0 %v120
    %1027 = vmatprep.subr.mxu0 %v139
    %1028 = vmatpush1.msra.mxu0 %v138
    %1029 = vmatprep.subr.mxu0 %v157
    %1030 = vmatpush1.msra.mxu0 %v156
    %1031 = vmatprep.subr.mxu0 %v175
    %1032 = vmatpush1.msra.mxu0 %v174
    %1033 = vmatprep.subr.mxu0 %v193
    %1034 = vmatpush1.msra.mxu0 %v192
    %1035 = vmatprep.subr.mxu0 %v211
    %1036 = vmatpush1.msra.mxu0 %v210
    %1037 = vmatprep.subr.mxu0 %v229
    %1038 = vmatpush1.msra.mxu0 %v228
    %1039 = vmatprep.subr.mxu0 %v247
    %1040 = vmatpush1.msra.mxu0 %v246
    %1041 = vmatprep.subr.mxu0 %v265
    %1042 = vmatpush1.msra.mxu0 %v264
    %1043 = vmatprep.subr.mxu0 %v283
    %1044 = vmatpush1.msra.mxu0 %v282
    %1045 = vmatprep.subr.mxu0 %v301
    %1046 = vmatpush1.msra.mxu0 %v300
    %1047 = vmatprep.subr.mxu0 %v319
    %1048 = vmatpush1.msra.mxu0 %v318
    %1049 = vmatprep.subr.mxu0 %v337
    %1050 = vmatpush1.msra.mxu0 %v336
    %1051 = vmatprep.subr.mxu0 %v355
    %1052 = vmatpush1.msra.mxu0 %v354
    %1053 = vmatprep.subr.mxu0 %v373
    %1054 = vmatpush1.msra.mxu0 %v372
    %1055 = vmatprep.subr.mxu0 %v391
    %1056 = vmatpush1.msra.mxu0 %v390
    %1057 = vmatprep.subr.mxu0 %v409
    %1058 = vmatpush1.msra.mxu0 %v408
    %1059 = vmatprep.subr.mxu0 %v427
    %1060 = vmatpush1.msra.mxu0 %v426
    %1061 = vmatprep.subr.mxu0 %v445
    %1062 = vmatpush1.msra.mxu0 %v444
    %1063 = vmatprep.subr.mxu0 %v463
    %1064 = vmatpush1.msra.mxu0 %v462
    %1065 = vmatprep.subr.mxu0 %v481
    %1066 = vmatpush1.msra.mxu0 %v480
    %1067 = vmatprep.subr.mxu0 %v499
    %1068 = vmatpush1.msra.mxu0 %v498
    %1069 = vmatprep.subr.mxu0 %v517
    %1070 = vmatpush1.msra.mxu0 %v516
    %1071 = vmatprep.subr.mxu0 %v535
    %1072 = vmatpush1.msra.mxu0 %v534
    %1073 = vmatprep.subr.mxu0 %v553
    %1074 = vmatpush1.msra.mxu0 %v552
    %1075 = vmatprep.subr.mxu0 %v571
    %1076 = vmatpush1.msra.mxu0 %v570
    %1077 = vmatprep.subr.mxu0 %v589
    %1078 = vmatpush1.msra.mxu0 %v588
    %1079 = vmatprep.subr.mxu0 %v607
    %1080 = vmatpush1.msra.mxu0 %v606
    %1081 = vmatprep.subr.mxu0 %v625
    %1082 = vmatpush1.msra.mxu0 %v624
    %1083 = vmatprep.subr.mxu0 %v643
    %1084 = vmatpush1.msra.mxu0 %v642
    %1085 = vmatprep.subr.mxu0 %v661
    %1086 = vmatpush1.msra.mxu0 %v660
    %1087 = vmatprep.mubr.f32.mxu0 %v91
    %1088 = vmatmul.mubr.f32.gmra.mrb[0].mxu0 %v90
    %v1089 = vpop.f32.mrb[0].mxu0
    %v1090 = vadd.f32 0.0, %v1089
    %v1091 = vpop.f32.mrb[0].mxu0
    %v1092 = vadd.f32 0.0, %v1091
    %1093 = vdwg.mxu0
    %1094 = vmatprep.subr.mxu0 %v105
    %1095 = vmatpush1.msra.mxu0 %v104
    %1096 = vmatprep.subr.mxu0 %v123
    %1097 = vmatpush1.msra.mxu0 %v122
    %1098 = vmatprep.subr.mxu0 %v141
    %1099 = vmatpush1.msra.mxu0 %v140
    %1100 = vmatprep.subr.mxu0 %v159
    %1101 = vmatpush1.msra.mxu0 %v158
    %1102 = vmatprep.subr.mxu0 %v177
    %1103 = vmatpush1.msra.mxu0 %v176
    %1104 = vmatprep.subr.mxu0 %v195
    %1105 = vmatpush1.msra.mxu0 %v194
    %1106 = vmatprep.subr.mxu0 %v213
    %1107 = vmatpush1.msra.mxu0 %v212
    %1108 = vmatprep.subr.mxu0 %v231
    %1109 = vmatpush1.msra.mxu0 %v230
    %1110 = vmatprep.subr.mxu0 %v249
    %1111 = vmatpush1.msra.mxu0 %v248
    %1112 = vmatprep.subr.mxu0 %v267
    %1113 = vmatpush1.msra.mxu0 %v266
    %1114 = vmatprep.subr.mxu0 %v285
    %1115 = vmatpush1.msra.mxu0 %v284
    %1116 = vmatprep.subr.mxu0 %v303
    %1117 = vmatpush1.msra.mxu0 %v302
    %1118 = vmatprep.subr.mxu0 %v321
    %1119 = vmatpush1.msra.mxu0 %v320
    %1120 = vmatprep.subr.mxu0 %v339
    %1121 = vmatpush1.msra.mxu0 %v338
    %1122 = vmatprep.subr.mxu0 %v357
    %1123 = vmatpush1.msra.mxu0 %v356
    %1124 = vmatprep.subr.mxu0 %v375
    %1125 = vmatpush1.msra.mxu0 %v374
    %1126 = vmatprep.subr.mxu0 %v393
    %1127 = vmatpush1.msra.mxu0 %v392
    %1128 = vmatprep.subr.mxu0 %v411
    %1129 = vmatpush1.msra.mxu0 %v410
    %1130 = vmatprep.subr.mxu0 %v429
    %1131 = vmatpush1.msra.mxu0 %v428
    %1132 = vmatprep.subr.mxu0 %v447
    %1133 = vmatpush1.msra.mxu0 %v446
    %1134 = vmatprep.subr.mxu0 %v465
    %1135 = vmatpush1.msra.mxu0 %v464
    %1136 = vmatprep.subr.mxu0 %v483
    %1137 = vmatpush1.msra.mxu0 %v482
    %1138 = vmatprep.subr.mxu0 %v501
    %1139 = vmatpush1.msra.mxu0 %v500
    %1140 = vmatprep.subr.mxu0 %v519
    %1141 = vmatpush1.msra.mxu0 %v518
    %1142 = vmatprep.subr.mxu0 %v537
    %1143 = vmatpush1.msra.mxu0 %v536
    %1144 = vmatprep.subr.mxu0 %v555
    %1145 = vmatpush1.msra.mxu0 %v554
    %1146 = vmatprep.subr.mxu0 %v573
    %1147 = vmatpush1.msra.mxu0 %v572
    %1148 = vmatprep.subr.mxu0 %v591
    %1149 = vmatpush1.msra.mxu0 %v590
    %1150 = vmatprep.subr.mxu0 %v609
    %1151 = vmatpush1.msra.mxu0 %v608
    %1152 = vmatprep.subr.mxu0 %v627
    %1153 = vmatpush1.msra.mxu0 %v626
    %1154 = vmatprep.subr.mxu0 %v645
    %1155 = vmatpush1.msra.mxu0 %v644
    %1156 = vmatprep.subr.mxu0 %v663
    %1157 = vmatpush1.msra.mxu0 %v662
    %1158 = vmatprep.mubr.f32.mxu0 %v91
    %1159 = vmatmul.mubr.f32.gmra.mrb[0].mxu0 %v90
    %v1160 = vpop.f32.mrb[0].mxu0
    %v1161 = vadd.f32 0.0, %v1160
    %v1162 = vpop.f32.mrb[0].mxu0
    %v1163 = vadd.f32 0.0, %v1162
    %1164 = vdwg.mxu0
    %1165 = vmatprep.subr.mxu0 %v107
    %1166 = vmatpush1.msra.mxu0 %v106
    %1167 = vmatprep.subr.mxu0 %v125
    %1168 = vmatpush1.msra.mxu0 %v124
    %1169 = vmatprep.subr.mxu0 %v143
    %1170 = vmatpush1.msra.mxu0 %v142
    %1171 = vmatprep.subr.mxu0 %v161
    %1172 = vmatpush1.msra.mxu0 %v160
    %1173 = vmatprep.subr.mxu0 %v179
    %1174 = vmatpush1.msra.mxu0 %v178
    %1175 = vmatprep.subr.mxu0 %v197
    %1176 = vmatpush1.msra.mxu0 %v196
    %1177 = vmatprep.subr.mxu0 %v215
    %1178 = vmatpush1.msra.mxu0 %v214
    %1179 = vmatprep.subr.mxu0 %v233
    %1180 = vmatpush1.msra.mxu0 %v232
    %1181 = vmatprep.subr.mxu0 %v251
    %1182 = vmatpush1.msra.mxu0 %v250
    %1183 = vmatprep.subr.mxu0 %v269
    %1184 = vmatpush1.msra.mxu0 %v268
    %1185 = vmatprep.subr.mxu0 %v287
    %1186 = vmatpush1.msra.mxu0 %v286
    %1187 = vmatprep.subr.mxu0 %v305
    %1188 = vmatpush1.msra.mxu0 %v304
    %1189 = vmatprep.subr.mxu0 %v323
    %1190 = vmatpush1.msra.mxu0 %v322
    %1191 = vmatprep.subr.mxu0 %v341
    %1192 = vmatpush1.msra.mxu0 %v340
    %1193 = vmatprep.subr.mxu0 %v359
    %1194 = vmatpush1.msra.mxu0 %v358
    %1195 = vmatprep.subr.mxu0 %v377
    %1196 = vmatpush1.msra.mxu0 %v376
    %1197 = vmatprep.subr.mxu0 %v395
    %1198 = vmatpush1.msra.mxu0 %v394
    %1199 = vmatprep.subr.mxu0 %v413
    %1200 = vmatpush1.msra.mxu0 %v412
    %1201 = vmatprep.subr.mxu0 %v431
    %1202 = vmatpush1.msra.mxu0 %v430
    %1203 = vmatprep.subr.mxu0 %v449
    %1204 = vmatpush1.msra.mxu0 %v448
    %1205 = vmatprep.subr.mxu0 %v467
    %1206 = vmatpush1.msra.mxu0 %v466
    %1207 = vmatprep.subr.mxu0 %v485
    %1208 = vmatpush1.msra.mxu0 %v484
    %1209 = vmatprep.subr.mxu0 %v503
    %1210 = vmatpush1.msra.mxu0 %v502
    %1211 = vmatprep.subr.mxu0 %v521
    %1212 = vmatpush1.msra.mxu0 %v520
    %1213 = vmatprep.subr.mxu0 %v539
    %1214 = vmatpush1.msra.mxu0 %v538
    %1215 = vmatprep.subr.mxu0 %v557
    %1216 = vmatpush1.msra.mxu0 %v556
    %1217 = vmatprep.subr.mxu0 %v575
    %1218 = vmatpush1.msra.mxu0 %v574
    %1219 = vmatprep.subr.mxu0 %v593
    %1220 = vmatpush1.msra.mxu0 %v592
    %1221 = vmatprep.subr.mxu0 %v611
    %1222 = vmatpush1.msra.mxu0 %v610
    %1223 = vmatprep.subr.mxu0 %v629
    %1224 = vmatpush1.msra.mxu0 %v628
    %1225 = vmatprep.subr.mxu0 %v647
    %1226 = vmatpush1.msra.mxu0 %v646
    %1227 = vmatprep.subr.mxu0 %v665
    %1228 = vmatpush1.msra.mxu0 %v664
    %1229 = vmatprep.mubr.f32.mxu0 %v91
    %1230 = vmatmul.mubr.f32.gmra.mrb[0].mxu0 %v90
    %v1231 = vpop.f32.mrb[0].mxu0
    %v1232 = vadd.f32 0.0, %v1231
    %v1233 = vpop.f32.mrb[0].mxu0
    %v1234 = vadd.f32 0.0, %v1233
    %1235 = vdwg.mxu0
    %1236 = vmatprep.subr.mxu0 %v109
    %1237 = vmatpush1.msra.mxu0 %v108
    %1238 = vmatprep.subr.mxu0 %v127
    %1239 = vmatpush1.msra.mxu0 %v126
    %1240 = vmatprep.subr.mxu0 %v145
    %1241 = vmatpush1.msra.mxu0 %v144
    %1242 = vmatprep.subr.mxu0 %v163
    %1243 = vmatpush1.msra.mxu0 %v162
    %1244 = vmatprep.subr.mxu0 %v181
    %1245 = vmatpush1.msra.mxu0 %v180
    %1246 = vmatprep.subr.mxu0 %v199
    %1247 = vmatpush1.msra.mxu0 %v198
    %1248 = vmatprep.subr.mxu0 %v217
    %1249 = vmatpush1.msra.mxu0 %v216
    %1250 = vmatprep.subr.mxu0 %v235
    %1251 = vmatpush1.msra.mxu0 %v234
    %1252 = vmatprep.subr.mxu0 %v253
    %1253 = vmatpush1.msra.mxu0 %v252
    %1254 = vmatprep.subr.mxu0 %v271
    %1255 = vmatpush1.msra.mxu0 %v270
    %1256 = vmatprep.subr.mxu0 %v289
    %1257 = vmatpush1.msra.mxu0 %v288
    %1258 = vmatprep.subr.mxu0 %v307
    %1259 = vmatpush1.msra.mxu0 %v306
    %1260 = vmatprep.subr.mxu0 %v325
    %1261 = vmatpush1.msra.mxu0 %v324
    %1262 = vmatprep.subr.mxu0 %v343
    %1263 = vmatpush1.msra.mxu0 %v342
    %1264 = vmatprep.subr.mxu0 %v361
    %1265 = vmatpush1.msra.mxu0 %v360
    %1266 = vmatprep.subr.mxu0 %v379
    %1267 = vmatpush1.msra.mxu0 %v378
    %1268 = vmatprep.subr.mxu0 %v397
    %1269 = vmatpush1.msra.mxu0 %v396
    %1270 = vmatprep.subr.mxu0 %v415
    %1271 = vmatpush1.msra.mxu0 %v414
    %1272 = vmatprep.subr.mxu0 %v433
    %1273 = vmatpush1.msra.mxu0 %v432
    %1274 = vmatprep.subr.mxu0 %v451
    %1275 = vmatpush1.msra.mxu0 %v450
    %1276 = vmatprep.subr.mxu0 %v469
    %1277 = vmatpush1.msra.mxu0 %v468
    %1278 = vmatprep.subr.mxu0 %v487
    %1279 = vmatpush1.msra.mxu0 %v486
    %1280 = vmatprep.subr.mxu0 %v505
    %1281 = vmatpush1.msra.mxu0 %v504
    %1282 = vmatprep.subr.mxu0 %v523
    %1283 = vmatpush1.msra.mxu0 %v522
    %1284 = vmatprep.subr.mxu0 %v541
    %1285 = vmatpush1.msra.mxu0 %v540
    %1286 = vmatprep.subr.mxu0 %v559
    %1287 = vmatpush1.msra.mxu0 %v558
    %1288 = vmatprep.subr.mxu0 %v577
    %1289 = vmatpush1.msra.mxu0 %v576
    %1290 = vmatprep.subr.mxu0 %v595
    %1291 = vmatpush1.msra.mxu0 %v594
    %1292 = vmatprep.subr.mxu0 %v613
    %1293 = vmatpush1.msra.mxu0 %v612
    %1294 = vmatprep.subr.mxu0 %v631
    %1295 = vmatpush1.msra.mxu0 %v630
    %1296 = vmatprep.subr.mxu0 %v649
    %1297 = vmatpush1.msra.mxu0 %v648
    %1298 = vmatprep.subr.mxu0 %v667
    %1299 = vmatpush1.msra.mxu0 %v666
    %1300 = vmatprep.mubr.f32.mxu0 %v91
    %1301 = vmatmul.mubr.f32.gmra.mrb[0].mxu0 %v90
    %v1302 = vpop.f32.mrb[0].mxu0
    %v1303 = vadd.f32 0.0, %v1302
    %v1304 = vpop.f32.mrb[0].mxu0
    %v1305 = vadd.f32 0.0, %v1304
    %1306 = vdwg.mxu0
    %v1307 = vld [vmem:[#allocation5] sm:$0xff]
    %v1308 = vld [vmem:[%s2] sm:$0xff]
    %1310 = vset.pattern.permute.xlu0 0
    %1311 = vperm.xlu0 %1310, %v1308
    %v1312 = vpop.permute.xlu0 %1311
    %vm1314 = vcmask 588800
    %v1316 = vsel %vm1314, %v1307, 0
    %1318 = vmatprep.subr.mxu0 %v737
    %1319 = vmatpush1.msra.mxu0 %v735
    %1320 = vmatprep.subr.mxu0 %v808
    %1321 = vmatpush1.msra.mxu0 %v806
    %1322 = vmatprep.subr.mxu0 %v879
    %1323 = vmatpush1.msra.mxu0 %v877
    %1324 = vmatprep.subr.mxu0 %v950
    %1325 = vmatpush1.msra.mxu0 %v948
    %1326 = vmatprep.subr.mxu0 %v1021
    %1327 = vmatpush1.msra.mxu0 %v1019
    %1328 = vmatprep.subr.mxu0 %v1092
    %1329 = vmatpush1.msra.mxu0 %v1090
    %1330 = vmatprep.subr.mxu0 %v1163
    %1331 = vmatpush1.msra.mxu0 %v1161
    %1332 = vmatprep.subr.mxu0 %v1234
    %1333 = vmatpush1.msra.mxu0 %v1232
    %1334 = vmatprep.subr.mxu0 %v1305
    %1335 = vmatpush1.msra.mxu0 %v1303
    %1336 = vmatprep.subr.mxu0 0.0
    %1337 = vmatpush1.msra.mxu0 0.0
    %1338 = vmatprep.subr.mxu0 0.0
    %1339 = vmatpush1.msra.mxu0 0.0
    %1340 = vmatprep.subr.mxu0 0.0
    %1341 = vmatpush1.msra.mxu0 0.0
    %1342 = vmatprep.subr.mxu0 0.0
    %1343 = vmatpush1.msra.mxu0 0.0
    %1344 = vmatprep.subr.mxu0 0.0
    %1345 = vmatpush1.msra.mxu0 0.0
    %1346 = vmatprep.subr.mxu0 0.0
    %1347 = vmatpush1.msra.mxu0 0.0
    %1348 = vmatprep.subr.mxu0 0.0
    %1349 = vmatpush1.msra.mxu0 0.0
    %1350 = vmatprep.subr.mxu0 0.0
    %1351 = vmatpush1.msra.mxu0 0.0
    %1352 = vmatprep.subr.mxu0 0.0
    %1353 = vmatpush1.msra.mxu0 0.0
    %1354 = vmatprep.subr.mxu0 0.0
    %1355 = vmatpush1.msra.mxu0 0.0
    %1356 = vmatprep.subr.mxu0 0.0
    %1357 = vmatpush1.msra.mxu0 0.0
    %1358 = vmatprep.subr.mxu0 0.0
    %1359 = vmatpush1.msra.mxu0 0.0
    %1360 = vmatprep.subr.mxu0 0.0
    %1361 = vmatpush1.msra.mxu0 0.0
    %1362 = vmatprep.subr.mxu0 0.0
    %1363 = vmatpush1.msra.mxu0 0.0
    %1364 = vmatprep.subr.mxu0 0.0
    %1365 = vmatpush1.msra.mxu0 0.0
    %1366 = vmatprep.subr.mxu0 0.0
    %1367 = vmatpush1.msra.mxu0 0.0
    %1368 = vmatprep.subr.mxu0 0.0
    %1369 = vmatpush1.msra.mxu0 0.0
    %1370 = vmatprep.subr.mxu0 0.0
    %1371 = vmatpush1.msra.mxu0 0.0
    %1372 = vmatprep.subr.mxu0 0.0
    %1373 = vmatpush1.msra.mxu0 0.0
    %1374 = vmatprep.subr.mxu0 0.0
    %1375 = vmatpush1.msra.mxu0 0.0
    %1376 = vmatprep.subr.mxu0 0.0
    %1377 = vmatpush1.msra.mxu0 0.0
    %1378 = vmatprep.subr.mxu0 0.0
    %1379 = vmatpush1.msra.mxu0 0.0
    %1380 = vmatprep.subr.mxu0 0.0
    %1381 = vmatpush1.msra.mxu0 0.0
    %1382 = vmatprep.mubr.f32.mxu0 0.0
    %1383 = vmatmul.mubr.f32.gmra.mrb[0].mxu0 %v1316
    %v1384 = vpop.f32.mrb[0].mxu0
    %v1385 = vadd.f32 %v1312, %v1384
    %v1386 = vpop.f32.mrb[0].mxu0
    %v1387 = vadd.f32 %v1312, %v1386
    %1388 = vdwg.mxu0
    %v1389 = vmax.f32 %v1385, 0.0
    %v1390 = vmax.f32 %v1387, 0.0
    %1391 = vmatprep.subr.mxu0 %v93
    %1392 = vmatpush1.msra.mxu0 %v92
    %1393 = vmatprep.subr.mxu0 %v111
    %1394 = vmatpush1.msra.mxu0 %v110
    %1395 = vmatprep.subr.mxu0 %v129
    %1396 = vmatpush1.msra.mxu0 %v128
    %1397 = vmatprep.subr.mxu0 %v147
    %1398 = vmatpush1.msra.mxu0 %v146
    %1399 = vmatprep.subr.mxu0 %v165
    %1400 = vmatpush1.msra.mxu0 %v164
    %1401 = vmatprep.subr.mxu0 %v183
    %1402 = vmatpush1.msra.mxu0 %v182
    %1403 = vmatprep.subr.mxu0 %v201
    %1404 = vmatpush1.msra.mxu0 %v200
    %1405 = vmatprep.subr.mxu0 %v219
    %1406 = vmatpush1.msra.mxu0 %v218
    %1407 = vmatprep.subr.mxu0 %v237
    %1408 = vmatpush1.msra.mxu0 %v236
    %1409 = vmatprep.subr.mxu0 %v255
    %1410 = vmatpush1.msra.mxu0 %v254
    %1411 = vmatprep.subr.mxu0 %v273
    %1412 = vmatpush1.msra.mxu0 %v272
    %1413 = vmatprep.subr.mxu0 %v291
    %1414 = vmatpush1.msra.mxu0 %v290
    %1415 = vmatprep.subr.mxu0 %v309
    %1416 = vmatpush1.msra.mxu0 %v308
    %1417 = vmatprep.subr.mxu0 %v327
    %1418 = vmatpush1.msra.mxu0 %v326
    %1419 = vmatprep.subr.mxu0 %v345
    %1420 = vmatpush1.msra.mxu0 %v344
    %1421 = vmatprep.subr.mxu0 %v363
    %1422 = vmatpush1.msra.mxu0 %v362
    %1423 = vmatprep.subr.mxu0 %v381
    %1424 = vmatpush1.msra.mxu0 %v380
    %1425 = vmatprep.subr.mxu0 %v399
    %1426 = vmatpush1.msra.mxu0 %v398
    %1427 = vmatprep.subr.mxu0 %v417
    %1428 = vmatpush1.msra.mxu0 %v416
    %1429 = vmatprep.subr.mxu0 %v435
    %1430 = vmatpush1.msra.mxu0 %v434
    %1431 = vmatprep.subr.mxu0 %v453
    %1432 = vmatpush1.msra.mxu0 %v452
    %1433 = vmatprep.subr.mxu0 %v471
    %1434 = vmatpush1.msra.mxu0 %v470
    %1435 = vmatprep.subr.mxu0 %v489
    %1436 = vmatpush1.msra.mxu0 %v488
    %1437 = vmatprep.subr.mxu0 %v507
    %1438 = vmatpush1.msra.mxu0 %v506
    %1439 = vmatprep.subr.mxu0 %v525
    %1440 = vmatpush1.msra.mxu0 %v524
    %1441 = vmatprep.subr.mxu0 %v543
    %1442 = vmatpush1.msra.mxu0 %v542
    %1443 = vmatprep.subr.mxu0 %v561
    %1444 = vmatpush1.msra.mxu0 %v560
    %1445 = vmatprep.subr.mxu0 %v579
    %1446 = vmatpush1.msra.mxu0 %v578
    %1447 = vmatprep.subr.mxu0 %v597
    %1448 = vmatpush1.msra.mxu0 %v596
    %1449 = vmatprep.subr.mxu0 %v615
    %1450 = vmatpush1.msra.mxu0 %v614
    %1451 = vmatprep.subr.mxu0 %v633
    %1452 = vmatpush1.msra.mxu0 %v632
    %1453 = vmatprep.subr.mxu0 %v651
    %1454 = vmatpush1.msra.mxu0 %v650
    %1455 = vmatprep.mubr.f32.mxu0 %v1390
    %1456 = vmatmul.mubr.f32.gmra.mrb[0].mxu0 %v1389
    %v1457 = vpop.f32.mrb[0].mxu0
    %v1458 = vadd.f32 0.0, %v1457
    %v1459 = vpop.f32.mrb[0].mxu0
    %v1460 = vadd.f32 0.0, %v1459
    %1461 = vdwg.mxu0
    %1462 = vmatprep.subr.mxu0 %v95
    %1463 = vmatpush1.msra.mxu0 %v94
    %1464 = vmatprep.subr.mxu0 %v113
    %1465 = vmatpush1.msra.mxu0 %v112
    %1466 = vmatprep.subr.mxu0 %v131
    %1467 = vmatpush1.msra.mxu0 %v130
    %1468 = vmatprep.subr.mxu0 %v149
    %1469 = vmatpush1.msra.mxu0 %v148
    %1470 = vmatprep.subr.mxu0 %v167
    %1471 = vmatpush1.msra.mxu0 %v166
    %1472 = vmatprep.subr.mxu0 %v185
    %1473 = vmatpush1.msra.mxu0 %v184
    %1474 = vmatprep.subr.mxu0 %v203
    %1475 = vmatpush1.msra.mxu0 %v202
    %1476 = vmatprep.subr.mxu0 %v221
    %1477 = vmatpush1.msra.mxu0 %v220
    %1478 = vmatprep.subr.mxu0 %v239
    %1479 = vmatpush1.msra.mxu0 %v238
    %1480 = vmatprep.subr.mxu0 %v257
    %1481 = vmatpush1.msra.mxu0 %v256
    %1482 = vmatprep.subr.mxu0 %v275
    %1483 = vmatpush1.msra.mxu0 %v274
    %1484 = vmatprep.subr.mxu0 %v293
    %1485 = vmatpush1.msra.mxu0 %v292
    %1486 = vmatprep.subr.mxu0 %v311
    %1487 = vmatpush1.msra.mxu0 %v310
    %1488 = vmatprep.subr.mxu0 %v329
    %1489 = vmatpush1.msra.mxu0 %v328
    %1490 = vmatprep.subr.mxu0 %v347
    %1491 = vmatpush1.msra.mxu0 %v346
    %1492 = vmatprep.subr.mxu0 %v365
    %1493 = vmatpush1.msra.mxu0 %v364
    %1494 = vmatprep.subr.mxu0 %v383
    %1495 = vmatpush1.msra.mxu0 %v382
    %1496 = vmatprep.subr.mxu0 %v401
    %1497 = vmatpush1.msra.mxu0 %v400
    %1498 = vmatprep.subr.mxu0 %v419
    %1499 = vmatpush1.msra.mxu0 %v418
    %1500 = vmatprep.subr.mxu0 %v437
    %1501 = vmatpush1.msra.mxu0 %v436
    %1502 = vmatprep.subr.mxu0 %v455
    %1503 = vmatpush1.msra.mxu0 %v454
    %1504 = vmatprep.subr.mxu0 %v473
    %1505 = vmatpush1.msra.mxu0 %v472
    %1506 = vmatprep.subr.mxu0 %v491
    %1507 = vmatpush1.msra.mxu0 %v490
    %1508 = vmatprep.subr.mxu0 %v509
    %1509 = vmatpush1.msra.mxu0 %v508
    %1510 = vmatprep.subr.mxu0 %v527
    %1511 = vmatpush1.msra.mxu0 %v526
    %1512 = vmatprep.subr.mxu0 %v545
    %1513 = vmatpush1.msra.mxu0 %v544
    %1514 = vmatprep.subr.mxu0 %v563
    %1515 = vmatpush1.msra.mxu0 %v562
    %1516 = vmatprep.subr.mxu0 %v581
    %1517 = vmatpush1.msra.mxu0 %v580
    %1518 = vmatprep.subr.mxu0 %v599
    %1519 = vmatpush1.msra.mxu0 %v598
    %1520 = vmatprep.subr.mxu0 %v617
    %1521 = vmatpush1.msra.mxu0 %v616
    %1522 = vmatprep.subr.mxu0 %v635
    %1523 = vmatpush1.msra.mxu0 %v634
    %1524 = vmatprep.subr.mxu0 %v653
    %1525 = vmatpush1.msra.mxu0 %v652
    %1526 = vmatprep.mubr.f32.mxu0 %v1390
    %1527 = vmatmul.mubr.f32.gmra.mrb[0].mxu0 %v1389
    %v1528 = vpop.f32.mrb[0].mxu0
    %v1529 = vadd.f32 0.0, %v1528
    %v1530 = vpop.f32.mrb[0].mxu0
    %v1531 = vadd.f32 0.0, %v1530
    %1532 = vdwg.mxu0
    %1533 = vmatprep.subr.mxu0 %v97
    %1534 = vmatpush1.msra.mxu0 %v96
    %1535 = vmatprep.subr.mxu0 %v115
    %1536 = vmatpush1.msra.mxu0 %v114
    %1537 = vmatprep.subr.mxu0 %v133
    %1538 = vmatpush1.msra.mxu0 %v132
    %1539 = vmatprep.subr.mxu0 %v151
    %1540 = vmatpush1.msra.mxu0 %v150
    %1541 = vmatprep.subr.mxu0 %v169
    %1542 = vmatpush1.msra.mxu0 %v168
    %1543 = vmatprep.subr.mxu0 %v187
    %1544 = vmatpush1.msra.mxu0 %v186
    %1545 = vmatprep.subr.mxu0 %v205
    %1546 = vmatpush1.msra.mxu0 %v204
    %1547 = vmatprep.subr.mxu0 %v223
    %1548 = vmatpush1.msra.mxu0 %v222
    %1549 = vmatprep.subr.mxu0 %v241
    %1550 = vmatpush1.msra.mxu0 %v240
    %1551 = vmatprep.subr.mxu0 %v259
    %1552 = vmatpush1.msra.mxu0 %v258
    %1553 = vmatprep.subr.mxu0 %v277
    %1554 = vmatpush1.msra.mxu0 %v276
    %1555 = vmatprep.subr.mxu0 %v295
    %1556 = vmatpush1.msra.mxu0 %v294
    %1557 = vmatprep.subr.mxu0 %v313
    %1558 = vmatpush1.msra.mxu0 %v312
    %1559 = vmatprep.subr.mxu0 %v331
    %1560 = vmatpush1.msra.mxu0 %v330
    %1561 = vmatprep.subr.mxu0 %v349
    %1562 = vmatpush1.msra.mxu0 %v348
    %1563 = vmatprep.subr.mxu0 %v367
    %1564 = vmatpush1.msra.mxu0 %v366
    %1565 = vmatprep.subr.mxu0 %v385
    %1566 = vmatpush1.msra.mxu0 %v384
    %1567 = vmatprep.subr.mxu0 %v403
    %1568 = vmatpush1.msra.mxu0 %v402
    %1569 = vmatprep.subr.mxu0 %v421
    %1570 = vmatpush1.msra.mxu0 %v420
    %1571 = vmatprep.subr.mxu0 %v439
    %1572 = vmatpush1.msra.mxu0 %v438
    %1573 = vmatprep.subr.mxu0 %v457
    %1574 = vmatpush1.msra.mxu0 %v456
    %1575 = vmatprep.subr.mxu0 %v475
    %1576 = vmatpush1.msra.mxu0 %v474
    %1577 = vmatprep.subr.mxu0 %v493
    %1578 = vmatpush1.msra.mxu0 %v492
    %1579 = vmatprep.subr.mxu0 %v511
    %1580 = vmatpush1.msra.mxu0 %v510
    %1581 = vmatprep.subr.mxu0 %v529
    %1582 = vmatpush1.msra.mxu0 %v528
    %1583 = vmatprep.subr.mxu0 %v547
    %1584 = vmatpush1.msra.mxu0 %v546
    %1585 = vmatprep.subr.mxu0 %v565
    %1586 = vmatpush1.msra.mxu0 %v564
    %1587 = vmatprep.subr.mxu0 %v583
    %1588 = vmatpush1.msra.mxu0 %v582
    %1589 = vmatprep.subr.mxu0 %v601
    %1590 = vmatpush1.msra.mxu0 %v600
    %1591 = vmatprep.subr.mxu0 %v619
    %1592 = vmatpush1.msra.mxu0 %v618
    %1593 = vmatprep.subr.mxu0 %v637
    %1594 = vmatpush1.msra.mxu0 %v636
    %1595 = vmatprep.subr.mxu0 %v655
    %1596 = vmatpush1.msra.mxu0 %v654
    %1597 = vmatprep.mubr.f32.mxu0 %v1390
    %1598 = vmatmul.mubr.f32.gmra.mrb[0].mxu0 %v1389
    %v1599 = vpop.f32.mrb[0].mxu0
    %v1600 = vadd.f32 0.0, %v1599
    %v1601 = vpop.f32.mrb[0].mxu0
    %v1602 = vadd.f32 0.0, %v1601
    %1603 = vdwg.mxu0
    %1604 = vmatprep.subr.mxu0 %v99
    %1605 = vmatpush1.msra.mxu0 %v98
    %1606 = vmatprep.subr.mxu0 %v117
    %1607 = vmatpush1.msra.mxu0 %v116
    %1608 = vmatprep.subr.mxu0 %v135
    %1609 = vmatpush1.msra.mxu0 %v134
    %1610 = vmatprep.subr.mxu0 %v153
    %1611 = vmatpush1.msra.mxu0 %v152
    %1612 = vmatprep.subr.mxu0 %v171
    %1613 = vmatpush1.msra.mxu0 %v170
    %1614 = vmatprep.subr.mxu0 %v189
    %1615 = vmatpush1.msra.mxu0 %v188
    %1616 = vmatprep.subr.mxu0 %v207
    %1617 = vmatpush1.msra.mxu0 %v206
    %1618 = vmatprep.subr.mxu0 %v225
    %1619 = vmatpush1.msra.mxu0 %v224
    %1620 = vmatprep.subr.mxu0 %v243
    %1621 = vmatpush1.msra.mxu0 %v242
    %1622 = vmatprep.subr.mxu0 %v261
    %1623 = vmatpush1.msra.mxu0 %v260
    %1624 = vmatprep.subr.mxu0 %v279
    %1625 = vmatpush1.msra.mxu0 %v278
    %1626 = vmatprep.subr.mxu0 %v297
    %1627 = vmatpush1.msra.mxu0 %v296
    %1628 = vmatprep.subr.mxu0 %v315
    %1629 = vmatpush1.msra.mxu0 %v314
    %1630 = vmatprep.subr.mxu0 %v333
    %1631 = vmatpush1.msra.mxu0 %v332
    %1632 = vmatprep.subr.mxu0 %v351
    %1633 = vmatpush1.msra.mxu0 %v350
    %1634 = vmatprep.subr.mxu0 %v369
    %1635 = vmatpush1.msra.mxu0 %v368
    %1636 = vmatprep.subr.mxu0 %v387
    %1637 = vmatpush1.msra.mxu0 %v386
    %1638 = vmatprep.subr.mxu0 %v405
    %1639 = vmatpush1.msra.mxu0 %v404
    %1640 = vmatprep.subr.mxu0 %v423
    %1641 = vmatpush1.msra.mxu0 %v422
    %1642 = vmatprep.subr.mxu0 %v441
    %1643 = vmatpush1.msra.mxu0 %v440
    %1644 = vmatprep.subr.mxu0 %v459
    %1645 = vmatpush1.msra.mxu0 %v458
    %1646 = vmatprep.subr.mxu0 %v477
    %1647 = vmatpush1.msra.mxu0 %v476
    %1648 = vmatprep.subr.mxu0 %v495
    %1649 = vmatpush1.msra.mxu0 %v494
    %1650 = vmatprep.subr.mxu0 %v513
    %1651 = vmatpush1.msra.mxu0 %v512
    %1652 = vmatprep.subr.mxu0 %v531
    %1653 = vmatpush1.msra.mxu0 %v530
    %1654 = vmatprep.subr.mxu0 %v549
    %1655 = vmatpush1.msra.mxu0 %v548
    %1656 = vmatprep.subr.mxu0 %v567
    %1657 = vmatpush1.msra.mxu0 %v566
    %1658 = vmatprep.subr.mxu0 %v585
    %1659 = vmatpush1.msra.mxu0 %v584
    %1660 = vmatprep.subr.mxu0 %v603
    %1661 = vmatpush1.msra.mxu0 %v602
    %1662 = vmatprep.subr.mxu0 %v621
    %1663 = vmatpush1.msra.mxu0 %v620
    %1664 = vmatprep.subr.mxu0 %v639
    %1665 = vmatpush1.msra.mxu0 %v638
    %1666 = vmatprep.subr.mxu0 %v657
    %1667 = vmatpush1.msra.mxu0 %v656
    %1668 = vmatprep.mubr.f32.mxu0 %v1390
    %1669 = vmatmul.mubr.f32.gmra.mrb[0].mxu0 %v1389
    %v1670 = vpop.f32.mrb[0].mxu0
    %v1671 = vadd.f32 0.0, %v1670
    %v1672 = vpop.f32.mrb[0].mxu0
    %v1673 = vadd.f32 0.0, %v1672
    %1674 = vdwg.mxu0
    %1675 = vmatprep.subr.mxu0 %v101
    %1676 = vmatpush1.msra.mxu0 %v100
    %1677 = vmatprep.subr.mxu0 %v119
    %1678 = vmatpush1.msra.mxu0 %v118
    %1679 = vmatprep.subr.mxu0 %v137
    %1680 = vmatpush1.msra.mxu0 %v136
    %1681 = vmatprep.subr.mxu0 %v155
    %1682 = vmatpush1.msra.mxu0 %v154
    %1683 = vmatprep.subr.mxu0 %v173
    %1684 = vmatpush1.msra.mxu0 %v172
    %1685 = vmatprep.subr.mxu0 %v191
    %1686 = vmatpush1.msra.mxu0 %v190
    %1687 = vmatprep.subr.mxu0 %v209
    %1688 = vmatpush1.msra.mxu0 %v208
    %1689 = vmatprep.subr.mxu0 %v227
    %1690 = vmatpush1.msra.mxu0 %v226
    %1691 = vmatprep.subr.mxu0 %v245
    %1692 = vmatpush1.msra.mxu0 %v244
    %1693 = vmatprep.subr.mxu0 %v263
    %1694 = vmatpush1.msra.mxu0 %v262
    %1695 = vmatprep.subr.mxu0 %v281
    %1696 = vmatpush1.msra.mxu0 %v280
    %1697 = vmatprep.subr.mxu0 %v299
    %1698 = vmatpush1.msra.mxu0 %v298
    %1699 = vmatprep.subr.mxu0 %v317
    %1700 = vmatpush1.msra.mxu0 %v316
    %1701 = vmatprep.subr.mxu0 %v335
    %1702 = vmatpush1.msra.mxu0 %v334
    %1703 = vmatprep.subr.mxu0 %v353
    %1704 = vmatpush1.msra.mxu0 %v352
    %1705 = vmatprep.subr.mxu0 %v371
    %1706 = vmatpush1.msra.mxu0 %v370
    %1707 = vmatprep.subr.mxu0 %v389
    %1708 = vmatpush1.msra.mxu0 %v388
    %1709 = vmatprep.subr.mxu0 %v407
    %1710 = vmatpush1.msra.mxu0 %v406
    %1711 = vmatprep.subr.mxu0 %v425
    %1712 = vmatpush1.msra.mxu0 %v424
    %1713 = vmatprep.subr.mxu0 %v443
    %1714 = vmatpush1.msra.mxu0 %v442
    %1715 = vmatprep.subr.mxu0 %v461
    %1716 = vmatpush1.msra.mxu0 %v460
    %1717 = vmatprep.subr.mxu0 %v479
    %1718 = vmatpush1.msra.mxu0 %v478
    %1719 = vmatprep.subr.mxu0 %v497
    %1720 = vmatpush1.msra.mxu0 %v496
    %1721 = vmatprep.subr.mxu0 %v515
    %1722 = vmatpush1.msra.mxu0 %v514
    %1723 = vmatprep.subr.mxu0 %v533
    %1724 = vmatpush1.msra.mxu0 %v532
    %1725 = vmatprep.subr.mxu0 %v551
    %1726 = vmatpush1.msra.mxu0 %v550
    %1727 = vmatprep.subr.mxu0 %v569
    %1728 = vmatpush1.msra.mxu0 %v568
    %1729 = vmatprep.subr.mxu0 %v587
    %1730 = vmatpush1.msra.mxu0 %v586
    %1731 = vmatprep.subr.mxu0 %v605
    %1732 = vmatpush1.msra.mxu0 %v604
    %1733 = vmatprep.subr.mxu0 %v623
    %1734 = vmatpush1.msra.mxu0 %v622
    %1735 = vmatprep.subr.mxu0 %v641
    %1736 = vmatpush1.msra.mxu0 %v640
    %1737 = vmatprep.subr.mxu0 %v659
    %1738 = vmatpush1.msra.mxu0 %v658
    %1739 = vmatprep.mubr.f32.mxu0 %v1390
    %1740 = vmatmul.mubr.f32.gmra.mrb[0].mxu0 %v1389
    %v1741 = vpop.f32.mrb[0].mxu0
    %v1742 = vadd.f32 0.0, %v1741
    %v1743 = vpop.f32.mrb[0].mxu0
    %v1744 = vadd.f32 0.0, %v1743
    %1745 = vdwg.mxu0
    %1746 = vmatprep.subr.mxu0 %v103
    %1747 = vmatpush1.msra.mxu0 %v102
    %1748 = vmatprep.subr.mxu0 %v121
    %1749 = vmatpush1.msra.mxu0 %v120
    %1750 = vmatprep.subr.mxu0 %v139
    %1751 = vmatpush1.msra.mxu0 %v138
    %1752 = vmatprep.subr.mxu0 %v157
    %1753 = vmatpush1.msra.mxu0 %v156
    %1754 = vmatprep.subr.mxu0 %v175
    %1755 = vmatpush1.msra.mxu0 %v174
    %1756 = vmatprep.subr.mxu0 %v193
    %1757 = vmatpush1.msra.mxu0 %v192
    %1758 = vmatprep.subr.mxu0 %v211
    %1759 = vmatpush1.msra.mxu0 %v210
    %1760 = vmatprep.subr.mxu0 %v229
    %1761 = vmatpush1.msra.mxu0 %v228
    %1762 = vmatprep.subr.mxu0 %v247
    %1763 = vmatpush1.msra.mxu0 %v246
    %1764 = vmatprep.subr.mxu0 %v265
    %1765 = vmatpush1.msra.mxu0 %v264
    %1766 = vmatprep.subr.mxu0 %v283
    %1767 = vmatpush1.msra.mxu0 %v282
    %1768 = vmatprep.subr.mxu0 %v301
    %1769 = vmatpush1.msra.mxu0 %v300
    %1770 = vmatprep.subr.mxu0 %v319
    %1771 = vmatpush1.msra.mxu0 %v318
    %1772 = vmatprep.subr.mxu0 %v337
    %1773 = vmatpush1.msra.mxu0 %v336
    %1774 = vmatprep.subr.mxu0 %v355
    %1775 = vmatpush1.msra.mxu0 %v354
    %1776 = vmatprep.subr.mxu0 %v373
    %1777 = vmatpush1.msra.mxu0 %v372
    %1778 = vmatprep.subr.mxu0 %v391
    %1779 = vmatpush1.msra.mxu0 %v390
    %1780 = vmatprep.subr.mxu0 %v409
    %1781 = vmatpush1.msra.mxu0 %v408
    %1782 = vmatprep.subr.mxu0 %v427
    %1783 = vmatpush1.msra.mxu0 %v426
    %1784 = vmatprep.subr.mxu0 %v445
    %1785 = vmatpush1.msra.mxu0 %v444
    %1786 = vmatprep.subr.mxu0 %v463
    %1787 = vmatpush1.msra.mxu0 %v462
    %1788 = vmatprep.subr.mxu0 %v481
    %1789 = vmatpush1.msra.mxu0 %v480
    %1790 = vmatprep.subr.mxu0 %v499
    %1791 = vmatpush1.msra.mxu0 %v498
    %1792 = vmatprep.subr.mxu0 %v517
    %1793 = vmatpush1.msra.mxu0 %v516
    %1794 = vmatprep.subr.mxu0 %v535
    %1795 = vmatpush1.msra.mxu0 %v534
    %1796 = vmatprep.subr.mxu0 %v553
    %1797 = vmatpush1.msra.mxu0 %v552
    %1798 = vmatprep.subr.mxu0 %v571
    %1799 = vmatpush1.msra.mxu0 %v570
    %1800 = vmatprep.subr.mxu0 %v589
    %1801 = vmatpush1.msra.mxu0 %v588
    %1802 = vmatprep.subr.mxu0 %v607
    %1803 = vmatpush1.msra.mxu0 %v606
    %1804 = vmatprep.subr.mxu0 %v625
    %1805 = vmatpush1.msra.mxu0 %v624
    %1806 = vmatprep.subr.mxu0 %v643
    %1807 = vmatpush1.msra.mxu0 %v642
    %1808 = vmatprep.subr.mxu0 %v661
    %1809 = vmatpush1.msra.mxu0 %v660
    %1810 = vmatprep.mubr.f32.mxu0 %v1390
    %1811 = vmatmul.mubr.f32.gmra.mrb[0].mxu0 %v1389
    %v1812 = vpop.f32.mrb[0].mxu0
    %v1813 = vadd.f32 0.0, %v1812
    %v1814 = vpop.f32.mrb[0].mxu0
    %v1815 = vadd.f32 0.0, %v1814
    %1816 = vdwg.mxu0
    %1817 = vmatprep.subr.mxu0 %v105
    %1818 = vmatpush1.msra.mxu0 %v104
    %1819 = vmatprep.subr.mxu0 %v123
    %1820 = vmatpush1.msra.mxu0 %v122
    %1821 = vmatprep.subr.mxu0 %v141
    %1822 = vmatpush1.msra.mxu0 %v140
    %1823 = vmatprep.subr.mxu0 %v159
    %1824 = vmatpush1.msra.mxu0 %v158
    %1825 = vmatprep.subr.mxu0 %v177
    %1826 = vmatpush1.msra.mxu0 %v176
    %1827 = vmatprep.subr.mxu0 %v195
    %1828 = vmatpush1.msra.mxu0 %v194
    %1829 = vmatprep.subr.mxu0 %v213
    %1830 = vmatpush1.msra.mxu0 %v212
    %1831 = vmatprep.subr.mxu0 %v231
    %1832 = vmatpush1.msra.mxu0 %v230
    %1833 = vmatprep.subr.mxu0 %v249
    %1834 = vmatpush1.msra.mxu0 %v248
    %1835 = vmatprep.subr.mxu0 %v267
    %1836 = vmatpush1.msra.mxu0 %v266
    %1837 = vmatprep.subr.mxu0 %v285
    %1838 = vmatpush1.msra.mxu0 %v284
    %1839 = vmatprep.subr.mxu0 %v303
    %1840 = vmatpush1.msra.mxu0 %v302
    %1841 = vmatprep.subr.mxu0 %v321
    %1842 = vmatpush1.msra.mxu0 %v320
    %1843 = vmatprep.subr.mxu0 %v339
    %1844 = vmatpush1.msra.mxu0 %v338
    %1845 = vmatprep.subr.mxu0 %v357
    %1846 = vmatpush1.msra.mxu0 %v356
    %1847 = vmatprep.subr.mxu0 %v375
    %1848 = vmatpush1.msra.mxu0 %v374
    %1849 = vmatprep.subr.mxu0 %v393
    %1850 = vmatpush1.msra.mxu0 %v392
    %1851 = vmatprep.subr.mxu0 %v411
    %1852 = vmatpush1.msra.mxu0 %v410
    %1853 = vmatprep.subr.mxu0 %v429
    %1854 = vmatpush1.msra.mxu0 %v428
    %1855 = vmatprep.subr.mxu0 %v447
    %1856 = vmatpush1.msra.mxu0 %v446
    %1857 = vmatprep.subr.mxu0 %v465
    %1858 = vmatpush1.msra.mxu0 %v464
    %1859 = vmatprep.subr.mxu0 %v483
    %1860 = vmatpush1.msra.mxu0 %v482
    %1861 = vmatprep.subr.mxu0 %v501
    %1862 = vmatpush1.msra.mxu0 %v500
    %1863 = vmatprep.subr.mxu0 %v519
    %1864 = vmatpush1.msra.mxu0 %v518
    %1865 = vmatprep.subr.mxu0 %v537
    %1866 = vmatpush1.msra.mxu0 %v536
    %1867 = vmatprep.subr.mxu0 %v555
    %1868 = vmatpush1.msra.mxu0 %v554
    %1869 = vmatprep.subr.mxu0 %v573
    %1870 = vmatpush1.msra.mxu0 %v572
    %1871 = vmatprep.subr.mxu0 %v591
    %1872 = vmatpush1.msra.mxu0 %v590
    %1873 = vmatprep.subr.mxu0 %v609
    %1874 = vmatpush1.msra.mxu0 %v608
    %1875 = vmatprep.subr.mxu0 %v627
    %1876 = vmatpush1.msra.mxu0 %v626
    %1877 = vmatprep.subr.mxu0 %v645
    %1878 = vmatpush1.msra.mxu0 %v644
    %1879 = vmatprep.subr.mxu0 %v663
    %1880 = vmatpush1.msra.mxu0 %v662
    %1881 = vmatprep.mubr.f32.mxu0 %v1390
    %1882 = vmatmul.mubr.f32.gmra.mrb[0].mxu0 %v1389
    %v1883 = vpop.f32.mrb[0].mxu0
    %v1884 = vadd.f32 0.0, %v1883
    %v1885 = vpop.f32.mrb[0].mxu0
    %v1886 = vadd.f32 0.0, %v1885
    %1887 = vdwg.mxu0
    %1888 = vmatprep.subr.mxu0 %v107
    %1889 = vmatpush1.msra.mxu0 %v106
    %1890 = vmatprep.subr.mxu0 %v125
    %1891 = vmatpush1.msra.mxu0 %v124
    %1892 = vmatprep.subr.mxu0 %v143
    %1893 = vmatpush1.msra.mxu0 %v142
    %1894 = vmatprep.subr.mxu0 %v161
    %1895 = vmatpush1.msra.mxu0 %v160
    %1896 = vmatprep.subr.mxu0 %v179
    %1897 = vmatpush1.msra.mxu0 %v178
    %1898 = vmatprep.subr.mxu0 %v197
    %1899 = vmatpush1.msra.mxu0 %v196
    %1900 = vmatprep.subr.mxu0 %v215
    %1901 = vmatpush1.msra.mxu0 %v214
    %1902 = vmatprep.subr.mxu0 %v233
    %1903 = vmatpush1.msra.mxu0 %v232
    %1904 = vmatprep.subr.mxu0 %v251
    %1905 = vmatpush1.msra.mxu0 %v250
    %1906 = vmatprep.subr.mxu0 %v269
    %1907 = vmatpush1.msra.mxu0 %v268
    %1908 = vmatprep.subr.mxu0 %v287
    %1909 = vmatpush1.msra.mxu0 %v286
    %1910 = vmatprep.subr.mxu0 %v305
    %1911 = vmatpush1.msra.mxu0 %v304
    %1912 = vmatprep.subr.mxu0 %v323
    %1913 = vmatpush1.msra.mxu0 %v322
    %1914 = vmatprep.subr.mxu0 %v341
    %1915 = vmatpush1.msra.mxu0 %v340
    %1916 = vmatprep.subr.mxu0 %v359
    %1917 = vmatpush1.msra.mxu0 %v358
    %1918 = vmatprep.subr.mxu0 %v377
    %1919 = vmatpush1.msra.mxu0 %v376
    %1920 = vmatprep.subr.mxu0 %v395
    %1921 = vmatpush1.msra.mxu0 %v394
    %1922 = vmatprep.subr.mxu0 %v413
    %1923 = vmatpush1.msra.mxu0 %v412
    %1924 = vmatprep.subr.mxu0 %v431
    %1925 = vmatpush1.msra.mxu0 %v430
    %1926 = vmatprep.subr.mxu0 %v449
    %1927 = vmatpush1.msra.mxu0 %v448
    %1928 = vmatprep.subr.mxu0 %v467
    %1929 = vmatpush1.msra.mxu0 %v466
    %1930 = vmatprep.subr.mxu0 %v485
    %1931 = vmatpush1.msra.mxu0 %v484
    %1932 = vmatprep.subr.mxu0 %v503
    %1933 = vmatpush1.msra.mxu0 %v502
    %1934 = vmatprep.subr.mxu0 %v521
    %1935 = vmatpush1.msra.mxu0 %v520
    %1936 = vmatprep.subr.mxu0 %v539
    %1937 = vmatpush1.msra.mxu0 %v538
    %1938 = vmatprep.subr.mxu0 %v557
    %1939 = vmatpush1.msra.mxu0 %v556
    %1940 = vmatprep.subr.mxu0 %v575
    %1941 = vmatpush1.msra.mxu0 %v574
    %1942 = vmatprep.subr.mxu0 %v593
    %1943 = vmatpush1.msra.mxu0 %v592
    %1944 = vmatprep.subr.mxu0 %v611
    %1945 = vmatpush1.msra.mxu0 %v610
    %1946 = vmatprep.subr.mxu0 %v629
    %1947 = vmatpush1.msra.mxu0 %v628
    %1948 = vmatprep.subr.mxu0 %v647
    %1949 = vmatpush1.msra.mxu0 %v646
    %1950 = vmatprep.subr.mxu0 %v665
    %1951 = vmatpush1.msra.mxu0 %v664
    %1952 = vmatprep.mubr.f32.mxu0 %v1390
    %1953 = vmatmul.mubr.f32.gmra.mrb[0].mxu0 %v1389
    %v1954 = vpop.f32.mrb[0].mxu0
    %v1955 = vadd.f32 0.0, %v1954
    %v1956 = vpop.f32.mrb[0].mxu0
    %v1957 = vadd.f32 0.0, %v1956
    %1958 = vdwg.mxu0
    %1959 = vmatprep.subr.mxu0 %v109
    %1960 = vmatpush1.msra.mxu0 %v108
    %1961 = vmatprep.subr.mxu0 %v127
    %1962 = vmatpush1.msra.mxu0 %v126
    %1963 = vmatprep.subr.mxu0 %v145
    %1964 = vmatpush1.msra.mxu0 %v144
    %1965 = vmatprep.subr.mxu0 %v163
    %1966 = vmatpush1.msra.mxu0 %v162
    %1967 = vmatprep.subr.mxu0 %v181
    %1968 = vmatpush1.msra.mxu0 %v180
    %1969 = vmatprep.subr.mxu0 %v199
    %1970 = vmatpush1.msra.mxu0 %v198
    %1971 = vmatprep.subr.mxu0 %v217
    %1972 = vmatpush1.msra.mxu0 %v216
    %1973 = vmatprep.subr.mxu0 %v235
    %1974 = vmatpush1.msra.mxu0 %v234
    %1975 = vmatprep.subr.mxu0 %v253
    %1976 = vmatpush1.msra.mxu0 %v252
    %1977 = vmatprep.subr.mxu0 %v271
    %1978 = vmatpush1.msra.mxu0 %v270
    %1979 = vmatprep.subr.mxu0 %v289
    %1980 = vmatpush1.msra.mxu0 %v288
    %1981 = vmatprep.subr.mxu0 %v307
    %1982 = vmatpush1.msra.mxu0 %v306
    %1983 = vmatprep.subr.mxu0 %v325
    %1984 = vmatpush1.msra.mxu0 %v324
    %1985 = vmatprep.subr.mxu0 %v343
    %1986 = vmatpush1.msra.mxu0 %v342
    %1987 = vmatprep.subr.mxu0 %v361
    %1988 = vmatpush1.msra.mxu0 %v360
    %1989 = vmatprep.subr.mxu0 %v379
    %1990 = vmatpush1.msra.mxu0 %v378
    %1991 = vmatprep.subr.mxu0 %v397
    %1992 = vmatpush1.msra.mxu0 %v396
    %1993 = vmatprep.subr.mxu0 %v415
    %1994 = vmatpush1.msra.mxu0 %v414
    %1995 = vmatprep.subr.mxu0 %v433
    %1996 = vmatpush1.msra.mxu0 %v432
    %1997 = vmatprep.subr.mxu0 %v451
    %1998 = vmatpush1.msra.mxu0 %v450
    %1999 = vmatprep.subr.mxu0 %v469
    %2000 = vmatpush1.msra.mxu0 %v468
    %2001 = vmatprep.subr.mxu0 %v487
    %2002 = vmatpush1.msra.mxu0 %v486
    %2003 = vmatprep.subr.mxu0 %v505
    %2004 = vmatpush1.msra.mxu0 %v504
    %2005 = vmatprep.subr.mxu0 %v523
    %2006 = vmatpush1.msra.mxu0 %v522
    %2007 = vmatprep.subr.mxu0 %v541
    %2008 = vmatpush1.msra.mxu0 %v540
    %2009 = vmatprep.subr.mxu0 %v559
    %2010 = vmatpush1.msra.mxu0 %v558
    %2011 = vmatprep.subr.mxu0 %v577
    %2012 = vmatpush1.msra.mxu0 %v576
    %2013 = vmatprep.subr.mxu0 %v595
    %2014 = vmatpush1.msra.mxu0 %v594
    %2015 = vmatprep.subr.mxu0 %v613
    %2016 = vmatpush1.msra.mxu0 %v612
    %2017 = vmatprep.subr.mxu0 %v631
    %2018 = vmatpush1.msra.mxu0 %v630
    %2019 = vmatprep.subr.mxu0 %v649
    %2020 = vmatpush1.msra.mxu0 %v648
    %2021 = vmatprep.subr.mxu0 %v667
    %2022 = vmatpush1.msra.mxu0 %v666
    %2023 = vmatprep.mubr.f32.mxu0 %v1390
    %2024 = vmatmul.mubr.f32.gmra.mrb[0].mxu0 %v1389
    %v2025 = vpop.f32.mrb[0].mxu0
    %v2026 = vadd.f32 0.0, %v2025
    %v2027 = vpop.f32.mrb[0].mxu0
    %v2028 = vadd.f32 0.0, %v2027
    %2029 = vdwg.mxu0
    %s2030 = scalar_lea.vmem [#allocation5], 8
    %v2031 = vld [vmem:[%s2030] sm:$0xff]
    %s2032 = scalar_lea.vmem %s2, 8
    %v2033 = vld [vmem:[%s2032] sm:$0xff]
    %2035 = vset.pattern.permute.xlu0 0
    %2036 = vperm.xlu0 %2035, %v2033
    %v2037 = vpop.permute.xlu0 %2036
    %v2040 = vsel %vm1314, %v2031, 0
    %2042 = vmatprep.subr.mxu0 %v1460
    %2043 = vmatpush1.msra.mxu0 %v1458
    %2044 = vmatprep.subr.mxu0 %v1531
    %2045 = vmatpush1.msra.mxu0 %v1529
    %2046 = vmatprep.subr.mxu0 %v1602
    %2047 = vmatpush1.msra.mxu0 %v1600
    %2048 = vmatprep.subr.mxu0 %v1673
    %2049 = vmatpush1.msra.mxu0 %v1671
    %2050 = vmatprep.subr.mxu0 %v1744
    %2051 = vmatpush1.msra.mxu0 %v1742
    %2052 = vmatprep.subr.mxu0 %v1815
    %2053 = vmatpush1.msra.mxu0 %v1813
    %2054 = vmatprep.subr.mxu0 %v1886
    %2055 = vmatpush1.msra.mxu0 %v1884
    %2056 = vmatprep.subr.mxu0 %v1957
    %2057 = vmatpush1.msra.mxu0 %v1955
    %2058 = vmatprep.subr.mxu0 %v2028
    %2059 = vmatpush1.msra.mxu0 %v2026
    %2060 = vmatprep.subr.mxu0 0.0
    %2061 = vmatpush1.msra.mxu0 0.0
    %2062 = vmatprep.subr.mxu0 0.0
    %2063 = vmatpush1.msra.mxu0 0.0
    %2064 = vmatprep.subr.mxu0 0.0
    %2065 = vmatpush1.msra.mxu0 0.0
    %2066 = vmatprep.subr.mxu0 0.0
    %2067 = vmatpush1.msra.mxu0 0.0
    %2068 = vmatprep.subr.mxu0 0.0
    %2069 = vmatpush1.msra.mxu0 0.0
    %2070 = vmatprep.subr.mxu0 0.0
    %2071 = vmatpush1.msra.mxu0 0.0
    %2072 = vmatprep.subr.mxu0 0.0
    %2073 = vmatpush1.msra.mxu0 0.0
    %2074 = vmatprep.subr.mxu0 0.0
    %2075 = vmatpush1.msra.mxu0 0.0
    %2076 = vmatprep.subr.mxu0 0.0
    %2077 = vmatpush1.msra.mxu0 0.0
    %2078 = vmatprep.subr.mxu0 0.0
    %2079 = vmatpush1.msra.mxu0 0.0
    %2080 = vmatprep.subr.mxu0 0.0
    %2081 = vmatpush1.msra.mxu0 0.0
    %2082 = vmatprep.subr.mxu0 0.0
    %2083 = vmatpush1.msra.mxu0 0.0
    %2084 = vmatprep.subr.mxu0 0.0
    %2085 = vmatpush1.msra.mxu0 0.0
    %2086 = vmatprep.subr.mxu0 0.0
    %2087 = vmatpush1.msra.mxu0 0.0
    %2088 = vmatprep.subr.mxu0 0.0
    %2089 = vmatpush1.msra.mxu0 0.0
    %2090 = vmatprep.subr.mxu0 0.0
    %2091 = vmatpush1.msra.mxu0 0.0
    %2092 = vmatprep.subr.mxu0 0.0
    %2093 = vmatpush1.msra.mxu0 0.0
    %2094 = vmatprep.subr.mxu0 0.0
    %2095 = vmatpush1.msra.mxu0 0.0
    %2096 = vmatprep.subr.mxu0 0.0
    %2097 = vmatpush1.msra.mxu0 0.0
    %2098 = vmatprep.subr.mxu0 0.0
    %2099 = vmatpush1.msra.mxu0 0.0
    %2100 = vmatprep.subr.mxu0 0.0
    %2101 = vmatpush1.msra.mxu0 0.0
    %2102 = vmatprep.subr.mxu0 0.0
    %2103 = vmatpush1.msra.mxu0 0.0
    %2104 = vmatprep.subr.mxu0 0.0
    %2105 = vmatpush1.msra.mxu0 0.0
    %2106 = vmatprep.mubr.f32.mxu0 0.0
    %2107 = vmatmul.mubr.f32.gmra.mrb[0].mxu0 %v2040
    %v2108 = vpop.f32.mrb[0].mxu0
    %v2109 = vadd.f32 %v2037, %v2108
    %v2110 = vpop.f32.mrb[0].mxu0
    %v2111 = vadd.f32 %v2037, %v2110
    %2112 = vdwg.mxu0
    %v2113 = vmax.f32 %v2109, 0.0
    %v2114 = vmax.f32 %v2111, 0.0
    %2115 = vmatprep.subr.mxu0 %v93
    %2116 = vmatpush1.msra.mxu0 %v92
    %2117 = vmatprep.subr.mxu0 %v111
    %2118 = vmatpush1.msra.mxu0 %v110
    %2119 = vmatprep.subr.mxu0 %v129
    %2120 = vmatpush1.msra.mxu0 %v128
    %2121 = vmatprep.subr.mxu0 %v147
    %2122 = vmatpush1.msra.mxu0 %v146
    %2123 = vmatprep.subr.mxu0 %v165
    %2124 = vmatpush1.msra.mxu0 %v164
    %2125 = vmatprep.subr.mxu0 %v183
    %2126 = vmatpush1.msra.mxu0 %v182
    %2127 = vmatprep.subr.mxu0 %v201
    %2128 = vmatpush1.msra.mxu0 %v200
    %2129 = vmatprep.subr.mxu0 %v219
    %2130 = vmatpush1.msra.mxu0 %v218
    %2131 = vmatprep.subr.mxu0 %v237
    %2132 = vmatpush1.msra.mxu0 %v236
    %2133 = vmatprep.subr.mxu0 %v255
    %2134 = vmatpush1.msra.mxu0 %v254
    %2135 = vmatprep.subr.mxu0 %v273
    %2136 = vmatpush1.msra.mxu0 %v272
    %2137 = vmatprep.subr.mxu0 %v291
    %2138 = vmatpush1.msra.mxu0 %v290
    %2139 = vmatprep.subr.mxu0 %v309
    %2140 = vmatpush1.msra.mxu0 %v308
    %2141 = vmatprep.subr.mxu0 %v327
    %2142 = vmatpush1.msra.mxu0 %v326
    %2143 = vmatprep.subr.mxu0 %v345
    %2144 = vmatpush1.msra.mxu0 %v344
    %2145 = vmatprep.subr.mxu0 %v363
    %2146 = vmatpush1.msra.mxu0 %v362
    %2147 = vmatprep.subr.mxu0 %v381
    %2148 = vmatpush1.msra.mxu0 %v380
    %2149 = vmatprep.subr.mxu0 %v399
    %2150 = vmatpush1.msra.mxu0 %v398
    %2151 = vmatprep.subr.mxu0 %v417
    %2152 = vmatpush1.msra.mxu0 %v416
    %2153 = vmatprep.subr.mxu0 %v435
    %2154 = vmatpush1.msra.mxu0 %v434
    %2155 = vmatprep.subr.mxu0 %v453
    %2156 = vmatpush1.msra.mxu0 %v452
    %2157 = vmatprep.subr.mxu0 %v471
    %2158 = vmatpush1.msra.mxu0 %v470
    %2159 = vmatprep.subr.mxu0 %v489
    %2160 = vmatpush1.msra.mxu0 %v488
    %2161 = vmatprep.subr.mxu0 %v507
    %2162 = vmatpush1.msra.mxu0 %v506
    %2163 = vmatprep.subr.mxu0 %v525
    %2164 = vmatpush1.msra.mxu0 %v524
    %2165 = vmatprep.subr.mxu0 %v543
    %2166 = vmatpush1.msra.mxu0 %v542
    %2167 = vmatprep.subr.mxu0 %v561
    %2168 = vmatpush1.msra.mxu0 %v560
    %2169 = vmatprep.subr.mxu0 %v579
    %2170 = vmatpush1.msra.mxu0 %v578
    %2171 = vmatprep.subr.mxu0 %v597
    %2172 = vmatpush1.msra.mxu0 %v596
    %2173 = vmatprep.subr.mxu0 %v615
    %2174 = vmatpush1.msra.mxu0 %v614
    %2175 = vmatprep.subr.mxu0 %v633
    %2176 = vmatpush1.msra.mxu0 %v632
    %2177 = vmatprep.subr.mxu0 %v651
    %2178 = vmatpush1.msra.mxu0 %v650
    %2179 = vmatprep.mubr.f32.mxu0 %v2114
    %2180 = vmatmul.mubr.f32.gmra.mrb[0].mxu0 %v2113
    %v2181 = vpop.f32.mrb[0].mxu0
    %v2182 = vadd.f32 0.0, %v2181
    %v2183 = vpop.f32.mrb[0].mxu0
    %v2184 = vadd.f32 0.0, %v2183
    %2185 = vdwg.mxu0
    %2186 = vmatprep.subr.mxu0 %v95
    %2187 = vmatpush1.msra.mxu0 %v94
    %2188 = vmatprep.subr.mxu0 %v113
    %2189 = vmatpush1.msra.mxu0 %v112
    %2190 = vmatprep.subr.mxu0 %v131
    %2191 = vmatpush1.msra.mxu0 %v130
    %2192 = vmatprep.subr.mxu0 %v149
    %2193 = vmatpush1.msra.mxu0 %v148
    %2194 = vmatprep.subr.mxu0 %v167
    %2195 = vmatpush1.msra.mxu0 %v166
    %2196 = vmatprep.subr.mxu0 %v185
    %2197 = vmatpush1.msra.mxu0 %v184
    %2198 = vmatprep.subr.mxu0 %v203
    %2199 = vmatpush1.msra.mxu0 %v202
    %2200 = vmatprep.subr.mxu0 %v221
    %2201 = vmatpush1.msra.mxu0 %v220
    %2202 = vmatprep.subr.mxu0 %v239
    %2203 = vmatpush1.msra.mxu0 %v238
    %2204 = vmatprep.subr.mxu0 %v257
    %2205 = vmatpush1.msra.mxu0 %v256
    %2206 = vmatprep.subr.mxu0 %v275
    %2207 = vmatpush1.msra.mxu0 %v274
    %2208 = vmatprep.subr.mxu0 %v293
    %2209 = vmatpush1.msra.mxu0 %v292
    %2210 = vmatprep.subr.mxu0 %v311
    %2211 = vmatpush1.msra.mxu0 %v310
    %2212 = vmatprep.subr.mxu0 %v329
    %2213 = vmatpush1.msra.mxu0 %v328
    %2214 = vmatprep.subr.mxu0 %v347
    %2215 = vmatpush1.msra.mxu0 %v346
    %2216 = vmatprep.subr.mxu0 %v365
    %2217 = vmatpush1.msra.mxu0 %v364
    %2218 = vmatprep.subr.mxu0 %v383
    %2219 = vmatpush1.msra.mxu0 %v382
    %2220 = vmatprep.subr.mxu0 %v401
    %2221 = vmatpush1.msra.mxu0 %v400
    %2222 = vmatprep.subr.mxu0 %v419
    %2223 = vmatpush1.msra.mxu0 %v418
    %2224 = vmatprep.subr.mxu0 %v437
    %2225 = vmatpush1.msra.mxu0 %v436
    %2226 = vmatprep.subr.mxu0 %v455
    %2227 = vmatpush1.msra.mxu0 %v454
    %2228 = vmatprep.subr.mxu0 %v473
    %2229 = vmatpush1.msra.mxu0 %v472
    %2230 = vmatprep.subr.mxu0 %v491
    %2231 = vmatpush1.msra.mxu0 %v490
    %2232 = vmatprep.subr.mxu0 %v509
    %2233 = vmatpush1.msra.mxu0 %v508
    %2234 = vmatprep.subr.mxu0 %v527
    %2235 = vmatpush1.msra.mxu0 %v526
    %2236 = vmatprep.subr.mxu0 %v545
    %2237 = vmatpush1.msra.mxu0 %v544
    %2238 = vmatprep.subr.mxu0 %v563
    %2239 = vmatpush1.msra.mxu0 %v562
    %2240 = vmatprep.subr.mxu0 %v581
    %2241 = vmatpush1.msra.mxu0 %v580
    %2242 = vmatprep.subr.mxu0 %v599
    %2243 = vmatpush1.msra.mxu0 %v598
    %2244 = vmatprep.subr.mxu0 %v617
    %2245 = vmatpush1.msra.mxu0 %v616
    %2246 = vmatprep.subr.mxu0 %v635
    %2247 = vmatpush1.msra.mxu0 %v634
    %2248 = vmatprep.subr.mxu0 %v653
    %2249 = vmatpush1.msra.mxu0 %v652
    %2250 = vmatprep.mubr.f32.mxu0 %v2114
    %2251 = vmatmul.mubr.f32.gmra.mrb[0].mxu0 %v2113
    %v2252 = vpop.f32.mrb[0].mxu0
    %v2253 = vadd.f32 0.0, %v2252
    %v2254 = vpop.f32.mrb[0].mxu0
    %v2255 = vadd.f32 0.0, %v2254
    %2256 = vdwg.mxu0
    %2257 = vmatprep.subr.mxu0 %v97
    %2258 = vmatpush1.msra.mxu0 %v96
    %2259 = vmatprep.subr.mxu0 %v115
    %2260 = vmatpush1.msra.mxu0 %v114
    %2261 = vmatprep.subr.mxu0 %v133
    %2262 = vmatpush1.msra.mxu0 %v132
    %2263 = vmatprep.subr.mxu0 %v151
    %2264 = vmatpush1.msra.mxu0 %v150
    %2265 = vmatprep.subr.mxu0 %v169
    %2266 = vmatpush1.msra.mxu0 %v168
    %2267 = vmatprep.subr.mxu0 %v187
    %2268 = vmatpush1.msra.mxu0 %v186
    %2269 = vmatprep.subr.mxu0 %v205
    %2270 = vmatpush1.msra.mxu0 %v204
    %2271 = vmatprep.subr.mxu0 %v223
    %2272 = vmatpush1.msra.mxu0 %v222
    %2273 = vmatprep.subr.mxu0 %v241
    %2274 = vmatpush1.msra.mxu0 %v240
    %2275 = vmatprep.subr.mxu0 %v259
    %2276 = vmatpush1.msra.mxu0 %v258
    %2277 = vmatprep.subr.mxu0 %v277
    %2278 = vmatpush1.msra.mxu0 %v276
    %2279 = vmatprep.subr.mxu0 %v295
    %2280 = vmatpush1.msra.mxu0 %v294
    %2281 = vmatprep.subr.mxu0 %v313
    %2282 = vmatpush1.msra.mxu0 %v312
    %2283 = vmatprep.subr.mxu0 %v331
    %2284 = vmatpush1.msra.mxu0 %v330
    %2285 = vmatprep.subr.mxu0 %v349
    %2286 = vmatpush1.msra.mxu0 %v348
    %2287 = vmatprep.subr.mxu0 %v367
    %2288 = vmatpush1.msra.mxu0 %v366
    %2289 = vmatprep.subr.mxu0 %v385
    %2290 = vmatpush1.msra.mxu0 %v384
    %2291 = vmatprep.subr.mxu0 %v403
    %2292 = vmatpush1.msra.mxu0 %v402
    %2293 = vmatprep.subr.mxu0 %v421
    %2294 = vmatpush1.msra.mxu0 %v420
    %2295 = vmatprep.subr.mxu0 %v439
    %2296 = vmatpush1.msra.mxu0 %v438
    %2297 = vmatprep.subr.mxu0 %v457
    %2298 = vmatpush1.msra.mxu0 %v456
    %2299 = vmatprep.subr.mxu0 %v475
    %2300 = vmatpush1.msra.mxu0 %v474
    %2301 = vmatprep.subr.mxu0 %v493
    %2302 = vmatpush1.msra.mxu0 %v492
    %2303 = vmatprep.subr.mxu0 %v511
    %2304 = vmatpush1.msra.mxu0 %v510
    %2305 = vmatprep.subr.mxu0 %v529
    %2306 = vmatpush1.msra.mxu0 %v528
    %2307 = vmatprep.subr.mxu0 %v547
    %2308 = vmatpush1.msra.mxu0 %v546
    %2309 = vmatprep.subr.mxu0 %v565
    %2310 = vmatpush1.msra.mxu0 %v564
    %2311 = vmatprep.subr.mxu0 %v583
    %2312 = vmatpush1.msra.mxu0 %v582
    %2313 = vmatprep.subr.mxu0 %v601
    %2314 = vmatpush1.msra.mxu0 %v600
    %2315 = vmatprep.subr.mxu0 %v619
    %2316 = vmatpush1.msra.mxu0 %v618
    %2317 = vmatprep.subr.mxu0 %v637
    %2318 = vmatpush1.msra.mxu0 %v636
    %2319 = vmatprep.subr.mxu0 %v655
    %2320 = vmatpush1.msra.mxu0 %v654
    %2321 = vmatprep.mubr.f32.mxu0 %v2114
    %2322 = vmatmul.mubr.f32.gmra.mrb[0].mxu0 %v2113
    %v2323 = vpop.f32.mrb[0].mxu0
    %v2324 = vadd.f32 0.0, %v2323
    %v2325 = vpop.f32.mrb[0].mxu0
    %v2326 = vadd.f32 0.0, %v2325
    %2327 = vdwg.mxu0
    %2328 = vmatprep.subr.mxu0 %v99
    %2329 = vmatpush1.msra.mxu0 %v98
    %2330 = vmatprep.subr.mxu0 %v117
    %2331 = vmatpush1.msra.mxu0 %v116
    %2332 = vmatprep.subr.mxu0 %v135
    %2333 = vmatpush1.msra.mxu0 %v134
    %2334 = vmatprep.subr.mxu0 %v153
    %2335 = vmatpush1.msra.mxu0 %v152
    %2336 = vmatprep.subr.mxu0 %v171
    %2337 = vmatpush1.msra.mxu0 %v170
    %2338 = vmatprep.subr.mxu0 %v189
    %2339 = vmatpush1.msra.mxu0 %v188
    %2340 = vmatprep.subr.mxu0 %v207
    %2341 = vmatpush1.msra.mxu0 %v206
    %2342 = vmatprep.subr.mxu0 %v225
    %2343 = vmatpush1.msra.mxu0 %v224
    %2344 = vmatprep.subr.mxu0 %v243
    %2345 = vmatpush1.msra.mxu0 %v242
    %2346 = vmatprep.subr.mxu0 %v261
    %2347 = vmatpush1.msra.mxu0 %v260
    %2348 = vmatprep.subr.mxu0 %v279
    %2349 = vmatpush1.msra.mxu0 %v278
    %2350 = vmatprep.subr.mxu0 %v297
    %2351 = vmatpush1.msra.mxu0 %v296
    %2352 = vmatprep.subr.mxu0 %v315
    %2353 = vmatpush1.msra.mxu0 %v314
    %2354 = vmatprep.subr.mxu0 %v333
    %2355 = vmatpush1.msra.mxu0 %v332
    %2356 = vmatprep.subr.mxu0 %v351
    %2357 = vmatpush1.msra.mxu0 %v350
    %2358 = vmatprep.subr.mxu0 %v369
    %2359 = vmatpush1.msra.mxu0 %v368
    %2360 = vmatprep.subr.mxu0 %v387
    %2361 = vmatpush1.msra.mxu0 %v386
    %2362 = vmatprep.subr.mxu0 %v405
    %2363 = vmatpush1.msra.mxu0 %v404
    %2364 = vmatprep.subr.mxu0 %v423
    %2365 = vmatpush1.msra.mxu0 %v422
    %2366 = vmatprep.subr.mxu0 %v441
    %2367 = vmatpush1.msra.mxu0 %v440
    %2368 = vmatprep.subr.mxu0 %v459
    %2369 = vmatpush1.msra.mxu0 %v458
    %2370 = vmatprep.subr.mxu0 %v477
    %2371 = vmatpush1.msra.mxu0 %v476
    %2372 = vmatprep.subr.mxu0 %v495
    %2373 = vmatpush1.msra.mxu0 %v494
    %2374 = vmatprep.subr.mxu0 %v513
    %2375 = vmatpush1.msra.mxu0 %v512
    %2376 = vmatprep.subr.mxu0 %v531
    %2377 = vmatpush1.msra.mxu0 %v530
    %2378 = vmatprep.subr.mxu0 %v549
    %2379 = vmatpush1.msra.mxu0 %v548
    %2380 = vmatprep.subr.mxu0 %v567
    %2381 = vmatpush1.msra.mxu0 %v566
    %2382 = vmatprep.subr.mxu0 %v585
    %2383 = vmatpush1.msra.mxu0 %v584
    %2384 = vmatprep.subr.mxu0 %v603
    %2385 = vmatpush1.msra.mxu0 %v602
    %2386 = vmatprep.subr.mxu0 %v621
    %2387 = vmatpush1.msra.mxu0 %v620
    %2388 = vmatprep.subr.mxu0 %v639
    %2389 = vmatpush1.msra.mxu0 %v638
    %2390 = vmatprep.subr.mxu0 %v657
    %2391 = vmatpush1.msra.mxu0 %v656
    %2392 = vmatprep.mubr.f32.mxu0 %v2114
    %2393 = vmatmul.mubr.f32.gmra.mrb[0].mxu0 %v2113
    %v2394 = vpop.f32.mrb[0].mxu0
    %v2395 = vadd.f32 0.0, %v2394
    %v2396 = vpop.f32.mrb[0].mxu0
    %v2397 = vadd.f32 0.0, %v2396
    %2398 = vdwg.mxu0
    %2399 = vmatprep.subr.mxu0 %v101
    %2400 = vmatpush1.msra.mxu0 %v100
    %2401 = vmatprep.subr.mxu0 %v119
    %2402 = vmatpush1.msra.mxu0 %v118
    %2403 = vmatprep.subr.mxu0 %v137
    %2404 = vmatpush1.msra.mxu0 %v136
    %2405 = vmatprep.subr.mxu0 %v155
    %2406 = vmatpush1.msra.mxu0 %v154
    %2407 = vmatprep.subr.mxu0 %v173
    %2408 = vmatpush1.msra.mxu0 %v172
    %2409 = vmatprep.subr.mxu0 %v191
    %2410 = vmatpush1.msra.mxu0 %v190
    %2411 = vmatprep.subr.mxu0 %v209
    %2412 = vmatpush1.msra.mxu0 %v208
    %2413 = vmatprep.subr.mxu0 %v227
    %2414 = vmatpush1.msra.mxu0 %v226
    %2415 = vmatprep.subr.mxu0 %v245
    %2416 = vmatpush1.msra.mxu0 %v244
    %2417 = vmatprep.subr.mxu0 %v263
    %2418 = vmatpush1.msra.mxu0 %v262
    %2419 = vmatprep.subr.mxu0 %v281
    %2420 = vmatpush1.msra.mxu0 %v280
    %2421 = vmatprep.subr.mxu0 %v299
    %2422 = vmatpush1.msra.mxu0 %v298
    %2423 = vmatprep.subr.mxu0 %v317
    %2424 = vmatpush1.msra.mxu0 %v316
    %2425 = vmatprep.subr.mxu0 %v335
    %2426 = vmatpush1.msra.mxu0 %v334
    %2427 = vmatprep.subr.mxu0 %v353
    %2428 = vmatpush1.msra.mxu0 %v352
    %2429 = vmatprep.subr.mxu0 %v371
    %2430 = vmatpush1.msra.mxu0 %v370
    %2431 = vmatprep.subr.mxu0 %v389
    %2432 = vmatpush1.msra.mxu0 %v388
    %2433 = vmatprep.subr.mxu0 %v407
    %2434 = vmatpush1.msra.mxu0 %v406
    %2435 = vmatprep.subr.mxu0 %v425
    %2436 = vmatpush1.msra.mxu0 %v424
    %2437 = vmatprep.subr.mxu0 %v443
    %2438 = vmatpush1.msra.mxu0 %v442
    %2439 = vmatprep.subr.mxu0 %v461
    %2440 = vmatpush1.msra.mxu0 %v460
    %2441 = vmatprep.subr.mxu0 %v479
    %2442 = vmatpush1.msra.mxu0 %v478
    %2443 = vmatprep.subr.mxu0 %v497
    %2444 = vmatpush1.msra.mxu0 %v496
    %2445 = vmatprep.subr.mxu0 %v515
    %2446 = vmatpush1.msra.mxu0 %v514
    %2447 = vmatprep.subr.mxu0 %v533
    %2448 = vmatpush1.msra.mxu0 %v532
    %2449 = vmatprep.subr.mxu0 %v551
    %2450 = vmatpush1.msra.mxu0 %v550
    %2451 = vmatprep.subr.mxu0 %v569
    %2452 = vmatpush1.msra.mxu0 %v568
    %2453 = vmatprep.subr.mxu0 %v587
    %2454 = vmatpush1.msra.mxu0 %v586
    %2455 = vmatprep.subr.mxu0 %v605
    %2456 = vmatpush1.msra.mxu0 %v604
    %2457 = vmatprep.subr.mxu0 %v623
    %2458 = vmatpush1.msra.mxu0 %v622
    %2459 = vmatprep.subr.mxu0 %v641
    %2460 = vmatpush1.msra.mxu0 %v640
    %2461 = vmatprep.subr.mxu0 %v659
    %2462 = vmatpush1.msra.mxu0 %v658
    %2463 = vmatprep.mubr.f32.mxu0 %v2114
    %2464 = vmatmul.mubr.f32.gmra.mrb[0].mxu0 %v2113
    %v2465 = vpop.f32.mrb[0].mxu0
    %v2466 = vadd.f32 0.0, %v2465
    %v2467 = vpop.f32.mrb[0].mxu0
    %v2468 = vadd.f32 0.0, %v2467
    %2469 = vdwg.mxu0
    %2470 = vmatprep.subr.mxu0 %v103
    %2471 = vmatpush1.msra.mxu0 %v102
    %2472 = vmatprep.subr.mxu0 %v121
    %2473 = vmatpush1.msra.mxu0 %v120
    %2474 = vmatprep.subr.mxu0 %v139
    %2475 = vmatpush1.msra.mxu0 %v138
    %2476 = vmatprep.subr.mxu0 %v157
    %2477 = vmatpush1.msra.mxu0 %v156
    %2478 = vmatprep.subr.mxu0 %v175
    %2479 = vmatpush1.msra.mxu0 %v174
    %2480 = vmatprep.subr.mxu0 %v193
    %2481 = vmatpush1.msra.mxu0 %v192
    %2482 = vmatprep.subr.mxu0 %v211
    %2483 = vmatpush1.msra.mxu0 %v210
    %2484 = vmatprep.subr.mxu0 %v229
    %2485 = vmatpush1.msra.mxu0 %v228
    %2486 = vmatprep.subr.mxu0 %v247
    %2487 = vmatpush1.msra.mxu0 %v246
    %2488 = vmatprep.subr.mxu0 %v265
    %2489 = vmatpush1.msra.mxu0 %v264
    %2490 = vmatprep.subr.mxu0 %v283
    %2491 = vmatpush1.msra.mxu0 %v282
    %2492 = vmatprep.subr.mxu0 %v301
    %2493 = vmatpush1.msra.mxu0 %v300
    %2494 = vmatprep.subr.mxu0 %v319
    %2495 = vmatpush1.msra.mxu0 %v318
    %2496 = vmatprep.subr.mxu0 %v337
    %2497 = vmatpush1.msra.mxu0 %v336
    %2498 = vmatprep.subr.mxu0 %v355
    %2499 = vmatpush1.msra.mxu0 %v354
    %2500 = vmatprep.subr.mxu0 %v373
    %2501 = vmatpush1.msra.mxu0 %v372
    %2502 = vmatprep.subr.mxu0 %v391
    %2503 = vmatpush1.msra.mxu0 %v390
    %2504 = vmatprep.subr.mxu0 %v409
    %2505 = vmatpush1.msra.mxu0 %v408
    %2506 = vmatprep.subr.mxu0 %v427
    %2507 = vmatpush1.msra.mxu0 %v426
    %2508 = vmatprep.subr.mxu0 %v445
    %2509 = vmatpush1.msra.mxu0 %v444
    %2510 = vmatprep.subr.mxu0 %v463
    %2511 = vmatpush1.msra.mxu0 %v462
    %2512 = vmatprep.subr.mxu0 %v481
    %2513 = vmatpush1.msra.mxu0 %v480
    %2514 = vmatprep.subr.mxu0 %v499
    %2515 = vmatpush1.msra.mxu0 %v498
    %2516 = vmatprep.subr.mxu0 %v517
    %2517 = vmatpush1.msra.mxu0 %v516
    %2518 = vmatprep.subr.mxu0 %v535
    %2519 = vmatpush1.msra.mxu0 %v534
    %2520 = vmatprep.subr.mxu0 %v553
    %2521 = vmatpush1.msra.mxu0 %v552
    %2522 = vmatprep.subr.mxu0 %v571
    %2523 = vmatpush1.msra.mxu0 %v570
    %2524 = vmatprep.subr.mxu0 %v589
    %2525 = vmatpush1.msra.mxu0 %v588
    %2526 = vmatprep.subr.mxu0 %v607
    %2527 = vmatpush1.msra.mxu0 %v606
    %2528 = vmatprep.subr.mxu0 %v625
    %2529 = vmatpush1.msra.mxu0 %v624
    %2530 = vmatprep.subr.mxu0 %v643
    %2531 = vmatpush1.msra.mxu0 %v642
    %2532 = vmatprep.subr.mxu0 %v661
    %2533 = vmatpush1.msra.mxu0 %v660
    %2534 = vmatprep.mubr.f32.mxu0 %v2114
    %2535 = vmatmul.mubr.f32.gmra.mrb[0].mxu0 %v2113
    %v2536 = vpop.f32.mrb[0].mxu0
    %v2537 = vadd.f32 0.0, %v2536
    %v2538 = vpop.f32.mrb[0].mxu0
    %v2539 = vadd.f32 0.0, %v2538
    %2540 = vdwg.mxu0
    %2541 = vmatprep.subr.mxu0 %v105
    %2542 = vmatpush1.msra.mxu0 %v104
    %2543 = vmatprep.subr.mxu0 %v123
    %2544 = vmatpush1.msra.mxu0 %v122
    %2545 = vmatprep.subr.mxu0 %v141
    %2546 = vmatpush1.msra.mxu0 %v140
    %2547 = vmatprep.subr.mxu0 %v159
    %2548 = vmatpush1.msra.mxu0 %v158
    %2549 = vmatprep.subr.mxu0 %v177
    %2550 = vmatpush1.msra.mxu0 %v176
    %2551 = vmatprep.subr.mxu0 %v195
    %2552 = vmatpush1.msra.mxu0 %v194
    %2553 = vmatprep.subr.mxu0 %v213
    %2554 = vmatpush1.msra.mxu0 %v212
    %2555 = vmatprep.subr.mxu0 %v231
    %2556 = vmatpush1.msra.mxu0 %v230
    %2557 = vmatprep.subr.mxu0 %v249
    %2558 = vmatpush1.msra.mxu0 %v248
    %2559 = vmatprep.subr.mxu0 %v267
    %2560 = vmatpush1.msra.mxu0 %v266
    %2561 = vmatprep.subr.mxu0 %v285
    %2562 = vmatpush1.msra.mxu0 %v284
    %2563 = vmatprep.subr.mxu0 %v303
    %2564 = vmatpush1.msra.mxu0 %v302
    %2565 = vmatprep.subr.mxu0 %v321
    %2566 = vmatpush1.msra.mxu0 %v320
    %2567 = vmatprep.subr.mxu0 %v339
    %2568 = vmatpush1.msra.mxu0 %v338
    %2569 = vmatprep.subr.mxu0 %v357
    %2570 = vmatpush1.msra.mxu0 %v356
    %2571 = vmatprep.subr.mxu0 %v375
    %2572 = vmatpush1.msra.mxu0 %v374
    %2573 = vmatprep.subr.mxu0 %v393
    %2574 = vmatpush1.msra.mxu0 %v392
    %2575 = vmatprep.subr.mxu0 %v411
    %2576 = vmatpush1.msra.mxu0 %v410
    %2577 = vmatprep.subr.mxu0 %v429
    %2578 = vmatpush1.msra.mxu0 %v428
    %2579 = vmatprep.subr.mxu0 %v447
    %2580 = vmatpush1.msra.mxu0 %v446
    %2581 = vmatprep.subr.mxu0 %v465
    %2582 = vmatpush1.msra.mxu0 %v464
    %2583 = vmatprep.subr.mxu0 %v483
    %2584 = vmatpush1.msra.mxu0 %v482
    %2585 = vmatprep.subr.mxu0 %v501
    %2586 = vmatpush1.msra.mxu0 %v500
    %2587 = vmatprep.subr.mxu0 %v519
    %2588 = vmatpush1.msra.mxu0 %v518
    %2589 = vmatprep.subr.mxu0 %v537
    %2590 = vmatpush1.msra.mxu0 %v536
    %2591 = vmatprep.subr.mxu0 %v555
    %2592 = vmatpush1.msra.mxu0 %v554
    %2593 = vmatprep.subr.mxu0 %v573
    %2594 = vmatpush1.msra.mxu0 %v572
    %2595 = vmatprep.subr.mxu0 %v591
    %2596 = vmatpush1.msra.mxu0 %v590
    %2597 = vmatprep.subr.mxu0 %v609
    %2598 = vmatpush1.msra.mxu0 %v608
    %2599 = vmatprep.subr.mxu0 %v627
    %2600 = vmatpush1.msra.mxu0 %v626
    %2601 = vmatprep.subr.mxu0 %v645
    %2602 = vmatpush1.msra.mxu0 %v644
    %2603 = vmatprep.subr.mxu0 %v663
    %2604 = vmatpush1.msra.mxu0 %v662
    %2605 = vmatprep.mubr.f32.mxu0 %v2114
    %2606 = vmatmul.mubr.f32.gmra.mrb[0].mxu0 %v2113
    %v2607 = vpop.f32.mrb[0].mxu0
    %v2608 = vadd.f32 0.0, %v2607
    %v2609 = vpop.f32.mrb[0].mxu0
    %v2610 = vadd.f32 0.0, %v2609
    %2611 = vdwg.mxu0
    %2612 = vmatprep.subr.mxu0 %v107
    %2613 = vmatpush1.msra.mxu0 %v106
    %2614 = vmatprep.subr.mxu0 %v125
    %2615 = vmatpush1.msra.mxu0 %v124
    %2616 = vmatprep.subr.mxu0 %v143
    %2617 = vmatpush1.msra.mxu0 %v142
    %2618 = vmatprep.subr.mxu0 %v161
    %2619 = vmatpush1.msra.mxu0 %v160
    %2620 = vmatprep.subr.mxu0 %v179
    %2621 = vmatpush1.msra.mxu0 %v178
    %2622 = vmatprep.subr.mxu0 %v197
    %2623 = vmatpush1.msra.mxu0 %v196
    %2624 = vmatprep.subr.mxu0 %v215
    %2625 = vmatpush1.msra.mxu0 %v214
    %2626 = vmatprep.subr.mxu0 %v233
    %2627 = vmatpush1.msra.mxu0 %v232
    %2628 = vmatprep.subr.mxu0 %v251
    %2629 = vmatpush1.msra.mxu0 %v250
    %2630 = vmatprep.subr.mxu0 %v269
    %2631 = vmatpush1.msra.mxu0 %v268
    %2632 = vmatprep.subr.mxu0 %v287
    %2633 = vmatpush1.msra.mxu0 %v286
    %2634 = vmatprep.subr.mxu0 %v305
    %2635 = vmatpush1.msra.mxu0 %v304
    %2636 = vmatprep.subr.mxu0 %v323
    %2637 = vmatpush1.msra.mxu0 %v322
    %2638 = vmatprep.subr.mxu0 %v341
    %2639 = vmatpush1.msra.mxu0 %v340
    %2640 = vmatprep.subr.mxu0 %v359
    %2641 = vmatpush1.msra.mxu0 %v358
    %2642 = vmatprep.subr.mxu0 %v377
    %2643 = vmatpush1.msra.mxu0 %v376
    %2644 = vmatprep.subr.mxu0 %v395
    %2645 = vmatpush1.msra.mxu0 %v394
    %2646 = vmatprep.subr.mxu0 %v413
    %2647 = vmatpush1.msra.mxu0 %v412
    %2648 = vmatprep.subr.mxu0 %v431
    %2649 = vmatpush1.msra.mxu0 %v430
    %2650 = vmatprep.subr.mxu0 %v449
    %2651 = vmatpush1.msra.mxu0 %v448
    %2652 = vmatprep.subr.mxu0 %v467
    %2653 = vmatpush1.msra.mxu0 %v466
    %2654 = vmatprep.subr.mxu0 %v485
    %2655 = vmatpush1.msra.mxu0 %v484
    %2656 = vmatprep.subr.mxu0 %v503
    %2657 = vmatpush1.msra.mxu0 %v502
    %2658 = vmatprep.subr.mxu0 %v521
    %2659 = vmatpush1.msra.mxu0 %v520
    %2660 = vmatprep.subr.mxu0 %v539
    %2661 = vmatpush1.msra.mxu0 %v538
    %2662 = vmatprep.subr.mxu0 %v557
    %2663 = vmatpush1.msra.mxu0 %v556
    %2664 = vmatprep.subr.mxu0 %v575
    %2665 = vmatpush1.msra.mxu0 %v574
    %2666 = vmatprep.subr.mxu0 %v593
    %2667 = vmatpush1.msra.mxu0 %v592
    %2668 = vmatprep.subr.mxu0 %v611
    %2669 = vmatpush1.msra.mxu0 %v610
    %2670 = vmatprep.subr.mxu0 %v629
    %2671 = vmatpush1.msra.mxu0 %v628
    %2672 = vmatprep.subr.mxu0 %v647
    %2673 = vmatpush1.msra.mxu0 %v646
    %2674 = vmatprep.subr.mxu0 %v665
    %2675 = vmatpush1.msra.mxu0 %v664
    %2676 = vmatprep.mubr.f32.mxu0 %v2114
    %2677 = vmatmul.mubr.f32.gmra.mrb[0].mxu0 %v2113
    %v2678 = vpop.f32.mrb[0].mxu0
    %v2679 = vadd.f32 0.0, %v2678
    %v2680 = vpop.f32.mrb[0].mxu0
    %v2681 = vadd.f32 0.0, %v2680
    %2682 = vdwg.mxu0
    %2683 = vmatprep.subr.mxu0 %v109
    %2684 = vmatpush1.msra.mxu0 %v108
    %2685 = vmatprep.subr.mxu0 %v127
    %2686 = vmatpush1.msra.mxu0 %v126
    %2687 = vmatprep.subr.mxu0 %v145
    %2688 = vmatpush1.msra.mxu0 %v144
    %2689 = vmatprep.subr.mxu0 %v163
    %2690 = vmatpush1.msra.mxu0 %v162
    %2691 = vmatprep.subr.mxu0 %v181
    %2692 = vmatpush1.msra.mxu0 %v180
    %2693 = vmatprep.subr.mxu0 %v199
    %2694 = vmatpush1.msra.mxu0 %v198
    %2695 = vmatprep.subr.mxu0 %v217
    %2696 = vmatpush1.msra.mxu0 %v216
    %2697 = vmatprep.subr.mxu0 %v235
    %2698 = vmatpush1.msra.mxu0 %v234
    %2699 = vmatprep.subr.mxu0 %v253
    %2700 = vmatpush1.msra.mxu0 %v252
    %2701 = vmatprep.subr.mxu0 %v271
    %2702 = vmatpush1.msra.mxu0 %v270
    %2703 = vmatprep.subr.mxu0 %v289
    %2704 = vmatpush1.msra.mxu0 %v288
    %2705 = vmatprep.subr.mxu0 %v307
    %2706 = vmatpush1.msra.mxu0 %v306
    %2707 = vmatprep.subr.mxu0 %v325
    %2708 = vmatpush1.msra.mxu0 %v324
    %2709 = vmatprep.subr.mxu0 %v343
    %2710 = vmatpush1.msra.mxu0 %v342
    %2711 = vmatprep.subr.mxu0 %v361
    %2712 = vmatpush1.msra.mxu0 %v360
    %2713 = vmatprep.subr.mxu0 %v379
    %2714 = vmatpush1.msra.mxu0 %v378
    %2715 = vmatprep.subr.mxu0 %v397
    %2716 = vmatpush1.msra.mxu0 %v396
    %2717 = vmatprep.subr.mxu0 %v415
    %2718 = vmatpush1.msra.mxu0 %v414
    %2719 = vmatprep.subr.mxu0 %v433
    %2720 = vmatpush1.msra.mxu0 %v432
    %2721 = vmatprep.subr.mxu0 %v451
    %2722 = vmatpush1.msra.mxu0 %v450
    %2723 = vmatprep.subr.mxu0 %v469
    %2724 = vmatpush1.msra.mxu0 %v468
    %2725 = vmatprep.subr.mxu0 %v487
    %2726 = vmatpush1.msra.mxu0 %v486
    %2727 = vmatprep.subr.mxu0 %v505
    %2728 = vmatpush1.msra.mxu0 %v504
    %2729 = vmatprep.subr.mxu0 %v523
    %2730 = vmatpush1.msra.mxu0 %v522
    %2731 = vmatprep.subr.mxu0 %v541
    %2732 = vmatpush1.msra.mxu0 %v540
    %2733 = vmatprep.subr.mxu0 %v559
    %2734 = vmatpush1.msra.mxu0 %v558
    %2735 = vmatprep.subr.mxu0 %v577
    %2736 = vmatpush1.msra.mxu0 %v576
    %2737 = vmatprep.subr.mxu0 %v595
    %2738 = vmatpush1.msra.mxu0 %v594
    %2739 = vmatprep.subr.mxu0 %v613
    %2740 = vmatpush1.msra.mxu0 %v612
    %2741 = vmatprep.subr.mxu0 %v631
    %2742 = vmatpush1.msra.mxu0 %v630
    %2743 = vmatprep.subr.mxu0 %v649
    %2744 = vmatpush1.msra.mxu0 %v648
    %2745 = vmatprep.subr.mxu0 %v667
    %2746 = vmatpush1.msra.mxu0 %v666
    %2747 = vmatprep.mubr.f32.mxu0 %v2114
    %2748 = vmatmul.mubr.f32.gmra.mrb[0].mxu0 %v2113
    %v2749 = vpop.f32.mrb[0].mxu0
    %v2750 = vadd.f32 0.0, %v2749
    %v2751 = vpop.f32.mrb[0].mxu0
    %v2752 = vadd.f32 0.0, %v2751
    %2753 = vdwg.mxu0
    %s2754 = scalar_lea.vmem [#allocation5], 16
    %v2755 = vld [vmem:[%s2754] sm:$0xff]
    %s2756 = scalar_lea.vmem %s2, 16
    %v2757 = vld [vmem:[%s2756] sm:$0xff]
    %2759 = vset.pattern.permute.xlu0 0
    %2760 = vperm.xlu0 %2759, %v2757
    %v2761 = vpop.permute.xlu0 %2760
    %v2764 = vsel %vm1314, %v2755, 0
    %2766 = vmatprep.subr.mxu0 %v2184
    %2767 = vmatpush1.msra.mxu0 %v2182
    %2768 = vmatprep.subr.mxu0 %v2255
    %2769 = vmatpush1.msra.mxu0 %v2253
    %2770 = vmatprep.subr.mxu0 %v2326
    %2771 = vmatpush1.msra.mxu0 %v2324
    %2772 = vmatprep.subr.mxu0 %v2397
    %2773 = vmatpush1.msra.mxu0 %v2395
    %2774 = vmatprep.subr.mxu0 %v2468
    %2775 = vmatpush1.msra.mxu0 %v2466
    %2776 = vmatprep.subr.mxu0 %v2539
    %2777 = vmatpush1.msra.mxu0 %v2537
    %2778 = vmatprep.subr.mxu0 %v2610
    %2779 = vmatpush1.msra.mxu0 %v2608
    %2780 = vmatprep.subr.mxu0 %v2681
    %2781 = vmatpush1.msra.mxu0 %v2679
    %2782 = vmatprep.subr.mxu0 %v2752
    %2783 = vmatpush1.msra.mxu0 %v2750
    %2784 = vmatprep.subr.mxu0 0.0
    %2785 = vmatpush1.msra.mxu0 0.0
    %2786 = vmatprep.subr.mxu0 0.0
    %2787 = vmatpush1.msra.mxu0 0.0
    %2788 = vmatprep.subr.mxu0 0.0
    %2789 = vmatpush1.msra.mxu0 0.0
    %2790 = vmatprep.subr.mxu0 0.0
    %2791 = vmatpush1.msra.mxu0 0.0
    %2792 = vmatprep.subr.mxu0 0.0
    %2793 = vmatpush1.msra.mxu0 0.0
    %2794 = vmatprep.subr.mxu0 0.0
    %2795 = vmatpush1.msra.mxu0 0.0
    %2796 = vmatprep.subr.mxu0 0.0
    %2797 = vmatpush1.msra.mxu0 0.0
    %2798 = vmatprep.subr.mxu0 0.0
    %2799 = vmatpush1.msra.mxu0 0.0
    %2800 = vmatprep.subr.mxu0 0.0
    %2801 = vmatpush1.msra.mxu0 0.0
    %2802 = vmatprep.subr.mxu0 0.0
    %2803 = vmatpush1.msra.mxu0 0.0
    %2804 = vmatprep.subr.mxu0 0.0
    %2805 = vmatpush1.msra.mxu0 0.0
    %2806 = vmatprep.subr.mxu0 0.0
    %2807 = vmatpush1.msra.mxu0 0.0
    %2808 = vmatprep.subr.mxu0 0.0
    %2809 = vmatpush1.msra.mxu0 0.0
    %2810 = vmatprep.subr.mxu0 0.0
    %2811 = vmatpush1.msra.mxu0 0.0
    %2812 = vmatprep.subr.mxu0 0.0
    %2813 = vmatpush1.msra.mxu0 0.0
    %2814 = vmatprep.subr.mxu0 0.0
    %2815 = vmatpush1.msra.mxu0 0.0
    %2816 = vmatprep.subr.mxu0 0.0
    %2817 = vmatpush1.msra.mxu0 0.0
    %2818 = vmatprep.subr.mxu0 0.0
    %2819 = vmatpush1.msra.mxu0 0.0
    %2820 = vmatprep.subr.mxu0 0.0
    %2821 = vmatpush1.msra.mxu0 0.0
    %2822 = vmatprep.subr.mxu0 0.0
    %2823 = vmatpush1.msra.mxu0 0.0
    %2824 = vmatprep.subr.mxu0 0.0
    %2825 = vmatpush1.msra.mxu0 0.0
    %2826 = vmatprep.subr.mxu0 0.0
    %2827 = vmatpush1.msra.mxu0 0.0
    %2828 = vmatprep.subr.mxu0 0.0
    %2829 = vmatpush1.msra.mxu0 0.0
    %2830 = vmatprep.mubr.f32.mxu0 0.0
    %2831 = vmatmul.mubr.f32.gmra.mrb[0].mxu0 %v2764
    %v2832 = vpop.f32.mrb[0].mxu0
    %v2833 = vadd.f32 %v2761, %v2832
    %v2834 = vpop.f32.mrb[0].mxu0
    %v2835 = vadd.f32 %v2761, %v2834
    %2836 = vdwg.mxu0
    %v2837 = vmax.f32 %v2833, 0.0
    %v2838 = vmax.f32 %v2835, 0.0
    %v2839 = vld [vmem:[#allocation8] sm:$0xff]
    %v2840 = vld [vmem:[#allocation8 + $0x8] sm:$0xff]
    %v2841 = vld [vmem:[#allocation8 + $0x10] sm:$0xff]
    %v2842 = vld [vmem:[#allocation8 + $0x18] sm:$0xff]
    %v2843 = vld [vmem:[#allocation8 + $0x20] sm:$0xff]
    %v2844 = vld [vmem:[#allocation8 + $0x28] sm:$0xff]
    %v2845 = vld [vmem:[#allocation8 + $0x30] sm:$0xff]
    %v2846 = vld [vmem:[#allocation8 + $0x38] sm:$0xff]
    %v2847 = vld [vmem:[#allocation8 + $0x40] sm:$0xff]
    %v2848 = vld [vmem:[#allocation8 + $0x48] sm:$0xff]
    %v2849 = vld [vmem:[#allocation8 + $0x50] sm:$0xff]
    %v2850 = vld [vmem:[#allocation8 + $0x58] sm:$0xff]
    %v2851 = vld [vmem:[#allocation8 + $0x60] sm:$0xff]
    %v2852 = vld [vmem:[#allocation8 + $0x68] sm:$0xff]
    %v2853 = vld [vmem:[#allocation8 + $0x70] sm:$0xff]
    %v2854 = vld [vmem:[#allocation8 + $0x78] sm:$0xff]
    %v2855 = vld [vmem:[#allocation8 + $0x80] sm:$0xff]
    %v2856 = vld [vmem:[#allocation8 + $0x88] sm:$0xff]
    %v2857 = vld [vmem:[#allocation8 + $0x90] sm:$0xff]
    %v2858 = vld [vmem:[#allocation8 + $0x98] sm:$0xff]
    %v2859 = vld [vmem:[#allocation8 + $0xa0] sm:$0xff]
    %v2860 = vld [vmem:[#allocation8 + $0xa8] sm:$0xff]
    %v2861 = vld [vmem:[#allocation8 + $0xb0] sm:$0xff]
    %v2862 = vld [vmem:[#allocation8 + $0xb8] sm:$0xff]
    %v2863 = vld [vmem:[#allocation8 + $0xc0] sm:$0xff]
    %v2864 = vld [vmem:[#allocation8 + $0xc8] sm:$0xff]
    %v2865 = vld [vmem:[#allocation8 + $0xd0] sm:$0xff]
    %v2866 = vld [vmem:[#allocation8 + $0xd8] sm:$0xff]
    %v2867 = vld [vmem:[#allocation8 + $0xe0] sm:$0xff]
    %v2868 = vld [vmem:[#allocation8 + $0xe8] sm:$0xff]
    %v2869 = vld [vmem:[#allocation8 + $0xf0] sm:$0xff]
    %v2870 = vld [vmem:[#allocation8 + $0xf8] sm:$0xff]
    %v2871 = vld [vmem:[#allocation8 + $0x100] sm:$0xff]
    %v2872 = vld [vmem:[#allocation8 + $0x108] sm:$0xff]
    %v2873 = vld [vmem:[#allocation8 + $0x110] sm:$0xff]
    %v2874 = vld [vmem:[#allocation8 + $0x118] sm:$0xff]
    %v2875 = vld [vmem:[#allocation8 + $0x120] sm:$0xff]
    %v2876 = vld [vmem:[#allocation8 + $0x128] sm:$0xff]
    %v2877 = vld [vmem:[#allocation8 + $0x130] sm:$0xff]
    %v2878 = vld [vmem:[#allocation8 + $0x138] sm:$0xff]
    %v2879 = vld [vmem:[#allocation8 + $0x140] sm:$0xff]
    %v2880 = vld [vmem:[#allocation8 + $0x148] sm:$0xff]
    %v2881 = vld [vmem:[#allocation8 + $0x150] sm:$0xff]
    %v2882 = vld [vmem:[#allocation8 + $0x158] sm:$0xff]
    %v2883 = vld [vmem:[#allocation8 + $0x160] sm:$0xff]
    %v2884 = vld [vmem:[#allocation8 + $0x168] sm:$0xff]
    %v2885 = vld [vmem:[#allocation8 + $0x170] sm:$0xff]
    %v2886 = vld [vmem:[#allocation8 + $0x178] sm:$0xff]
    %v2887 = vld [vmem:[#allocation8 + $0x180] sm:$0xff]
    %v2888 = vld [vmem:[#allocation8 + $0x188] sm:$0xff]
    %v2889 = vld [vmem:[#allocation8 + $0x190] sm:$0xff]
    %v2890 = vld [vmem:[#allocation8 + $0x198] sm:$0xff]
    %v2891 = vld [vmem:[#allocation8 + $0x1a0] sm:$0xff]
    %v2892 = vld [vmem:[#allocation8 + $0x1a8] sm:$0xff]
    %v2893 = vld [vmem:[#allocation8 + $0x1b0] sm:$0xff]
    %v2894 = vld [vmem:[#allocation8 + $0x1b8] sm:$0xff]
    %v2895 = vld [vmem:[#allocation8 + $0x1c0] sm:$0xff]
    %v2896 = vld [vmem:[#allocation8 + $0x1c8] sm:$0xff]
    %v2897 = vld [vmem:[#allocation8 + $0x1d0] sm:$0xff]
    %v2898 = vld [vmem:[#allocation8 + $0x1d8] sm:$0xff]
    %v2899 = vld [vmem:[#allocation8 + $0x1e0] sm:$0xff]
    %v2900 = vld [vmem:[#allocation8 + $0x1e8] sm:$0xff]
    %v2901 = vld [vmem:[#allocation8 + $0x1f0] sm:$0xff]
    %v2902 = vld [vmem:[#allocation8 + $0x1f8] sm:$0xff]
    %v2903 = vld [vmem:[#allocation8 + $0x200] sm:$0xff]
    %v2904 = vld [vmem:[#allocation8 + $0x208] sm:$0xff]
    %v2905 = vld [vmem:[#allocation8 + $0x210] sm:$0xff]
    %v2906 = vld [vmem:[#allocation8 + $0x218] sm:$0xff]
    %v2907 = vld [vmem:[#allocation8 + $0x220] sm:$0xff]
    %v2908 = vld [vmem:[#allocation8 + $0x228] sm:$0xff]
    %v2909 = vld [vmem:[#allocation8 + $0x230] sm:$0xff]
    %v2910 = vld [vmem:[#allocation8 + $0x238] sm:$0xff]
    %v2911 = vld [vmem:[#allocation8 + $0x240] sm:$0xff]
    %v2912 = vld [vmem:[#allocation8 + $0x248] sm:$0xff]
    %v2913 = vld [vmem:[#allocation8 + $0x250] sm:$0xff]
    %v2914 = vld [vmem:[#allocation8 + $0x258] sm:$0xff]
    %v2915 = vld [vmem:[#allocation8 + $0x260] sm:$0xff]
    %v2916 = vld [vmem:[#allocation8 + $0x268] sm:$0xff]
    %v2917 = vld [vmem:[#allocation8 + $0x270] sm:$0xff]
    %v2918 = vld [vmem:[#allocation8 + $0x278] sm:$0xff]
    %v2919 = vld [vmem:[#allocation8 + $0x280] sm:$0xff]
    %v2920 = vld [vmem:[#allocation8 + $0x288] sm:$0xff]
    %v2921 = vld [vmem:[#allocation8 + $0x290] sm:$0xff]
    %v2922 = vld [vmem:[#allocation8 + $0x298] sm:$0xff]
    %v2923 = vld [vmem:[#allocation8 + $0x2a0] sm:$0xff]
    %v2924 = vld [vmem:[#allocation8 + $0x2a8] sm:$0xff]
    %v2925 = vld [vmem:[#allocation8 + $0x2b0] sm:$0xff]
    %v2926 = vld [vmem:[#allocation8 + $0x2b8] sm:$0xff]
    %v2927 = vld [vmem:[#allocation8 + $0x2c0] sm:$0xff]
    %v2928 = vld [vmem:[#allocation8 + $0x2c8] sm:$0xff]
    %v2929 = vld [vmem:[#allocation8 + $0x2d0] sm:$0xff]
    %v2930 = vld [vmem:[#allocation8 + $0x2d8] sm:$0xff]
    %v2931 = vld [vmem:[#allocation8 + $0x2e0] sm:$0xff]
    %v2932 = vld [vmem:[#allocation8 + $0x2e8] sm:$0xff]
    %v2933 = vld [vmem:[#allocation8 + $0x2f0] sm:$0xff]
    %v2934 = vld [vmem:[#allocation8 + $0x2f8] sm:$0xff]
    %v2935 = vld [vmem:[#allocation8 + $0x300] sm:$0xff]
    %v2936 = vld [vmem:[#allocation8 + $0x308] sm:$0xff]
    %v2937 = vld [vmem:[#allocation8 + $0x310] sm:$0xff]
    %v2938 = vld [vmem:[#allocation8 + $0x318] sm:$0xff]
    %v2939 = vld [vmem:[#allocation8 + $0x320] sm:$0xff]
    %v2940 = vld [vmem:[#allocation8 + $0x328] sm:$0xff]
    %v2941 = vld [vmem:[#allocation8 + $0x330] sm:$0xff]
    %v2942 = vld [vmem:[#allocation8 + $0x338] sm:$0xff]
    %v2943 = vld [vmem:[#allocation8 + $0x340] sm:$0xff]
    %v2944 = vld [vmem:[#allocation8 + $0x348] sm:$0xff]
    %v2945 = vld [vmem:[#allocation8 + $0x350] sm:$0xff]
    %v2946 = vld [vmem:[#allocation8 + $0x358] sm:$0xff]
    %v2947 = vld [vmem:[#allocation8 + $0x360] sm:$0xff]
    %v2948 = vld [vmem:[#allocation8 + $0x368] sm:$0xff]
    %v2949 = vld [vmem:[#allocation8 + $0x370] sm:$0xff]
    %v2950 = vld [vmem:[#allocation8 + $0x378] sm:$0xff]
    %v2951 = vld [vmem:[#allocation8 + $0x380] sm:$0xff]
    %v2952 = vld [vmem:[#allocation8 + $0x388] sm:$0xff]
    %v2953 = vld [vmem:[#allocation8 + $0x390] sm:$0xff]
    %v2954 = vld [vmem:[#allocation8 + $0x398] sm:$0xff]
    %v2955 = vld [vmem:[#allocation8 + $0x3a0] sm:$0xff]
    %v2956 = vld [vmem:[#allocation8 + $0x3a8] sm:$0xff]
    %v2957 = vld [vmem:[#allocation8 + $0x3b0] sm:$0xff]
    %v2958 = vld [vmem:[#allocation8 + $0x3b8] sm:$0xff]
    %v2959 = vld [vmem:[#allocation8 + $0x3c0] sm:$0xff]
    %v2960 = vld [vmem:[#allocation8 + $0x3c8] sm:$0xff]
    %v2961 = vld [vmem:[#allocation8 + $0x3d0] sm:$0xff]
    %v2962 = vld [vmem:[#allocation8 + $0x3d8] sm:$0xff]
    %v2963 = vld [vmem:[#allocation8 + $0x3e0] sm:$0xff]
    %v2964 = vld [vmem:[#allocation8 + $0x3e8] sm:$0xff]
    %v2965 = vld [vmem:[#allocation8 + $0x3f0] sm:$0xff]
    %v2966 = vld [vmem:[#allocation8 + $0x3f8] sm:$0xff]
    %v2967 = vld [vmem:[#allocation8 + $0x400] sm:$0xff]
    %v2968 = vld [vmem:[#allocation8 + $0x408] sm:$0xff]
    %v2969 = vld [vmem:[#allocation8 + $0x410] sm:$0xff]
    %v2970 = vld [vmem:[#allocation8 + $0x418] sm:$0xff]
    %v2971 = vld [vmem:[#allocation8 + $0x420] sm:$0xff]
    %v2972 = vld [vmem:[#allocation8 + $0x428] sm:$0xff]
    %v2973 = vld [vmem:[#allocation8 + $0x430] sm:$0xff]
    %v2974 = vld [vmem:[#allocation8 + $0x438] sm:$0xff]
    %v2975 = vld [vmem:[#allocation8 + $0x440] sm:$0xff]
    %v2976 = vld [vmem:[#allocation8 + $0x448] sm:$0xff]
    %v2977 = vld [vmem:[#allocation8 + $0x450] sm:$0xff]
    %v2978 = vld [vmem:[#allocation8 + $0x458] sm:$0xff]
    %v2979 = vld [vmem:[#allocation8 + $0x460] sm:$0xff]
    %v2980 = vld [vmem:[#allocation8 + $0x468] sm:$0xff]
    %v2981 = vld [vmem:[#allocation8 + $0x470] sm:$0xff]
    %v2982 = vld [vmem:[#allocation8 + $0x478] sm:$0xff]
    %v2983 = vld [vmem:[#allocation8 + $0x480] sm:$0xff]
    %v2984 = vld [vmem:[#allocation8 + $0x488] sm:$0xff]
    %v2985 = vld [vmem:[#allocation8 + $0x490] sm:$0xff]
    %v2986 = vld [vmem:[#allocation8 + $0x498] sm:$0xff]
    %v2987 = vld [vmem:[#allocation8 + $0x4a0] sm:$0xff]
    %v2988 = vld [vmem:[#allocation8 + $0x4a8] sm:$0xff]
    %v2989 = vld [vmem:[#allocation8 + $0x4b0] sm:$0xff]
    %v2990 = vld [vmem:[#allocation8 + $0x4b8] sm:$0xff]
    %v2991 = vld [vmem:[#allocation8 + $0x4c0] sm:$0xff]
    %v2992 = vld [vmem:[#allocation8 + $0x4c8] sm:$0xff]
    %v2993 = vld [vmem:[#allocation8 + $0x4d0] sm:$0xff]
    %v2994 = vld [vmem:[#allocation8 + $0x4d8] sm:$0xff]
    %v2995 = vld [vmem:[#allocation8 + $0x4e0] sm:$0xff]
    %v2996 = vld [vmem:[#allocation8 + $0x4e8] sm:$0xff]
    %v2997 = vld [vmem:[#allocation8 + $0x4f0] sm:$0xff]
    %v2998 = vld [vmem:[#allocation8 + $0x4f8] sm:$0xff]
    %v2999 = vld [vmem:[#allocation8 + $0x500] sm:$0xff]
    %v3000 = vld [vmem:[#allocation8 + $0x508] sm:$0xff]
    %v3001 = vld [vmem:[#allocation8 + $0x510] sm:$0xff]
    %v3002 = vld [vmem:[#allocation8 + $0x518] sm:$0xff]
    %v3003 = vld [vmem:[#allocation8 + $0x520] sm:$0xff]
    %v3004 = vld [vmem:[#allocation8 + $0x528] sm:$0xff]
    %v3005 = vld [vmem:[#allocation8 + $0x530] sm:$0xff]
    %v3006 = vld [vmem:[#allocation8 + $0x538] sm:$0xff]
    %v3007 = vld [vmem:[#allocation8 + $0x540] sm:$0xff]
    %v3008 = vld [vmem:[#allocation8 + $0x548] sm:$0xff]
    %v3009 = vld [vmem:[#allocation8 + $0x550] sm:$0xff]
    %v3010 = vld [vmem:[#allocation8 + $0x558] sm:$0xff]
    %v3011 = vld [vmem:[#allocation8 + $0x560] sm:$0xff]
    %v3012 = vld [vmem:[#allocation8 + $0x568] sm:$0xff]
    %v3013 = vld [vmem:[#allocation8 + $0x570] sm:$0xff]
    %v3014 = vld [vmem:[#allocation8 + $0x578] sm:$0xff]
    %v3015 = vld [vmem:[#allocation8 + $0x580] sm:$0xff]
    %v3016 = vld [vmem:[#allocation8 + $0x588] sm:$0xff]
    %v3017 = vld [vmem:[#allocation8 + $0x590] sm:$0xff]
    %v3018 = vld [vmem:[#allocation8 + $0x598] sm:$0xff]
    %v3019 = vld [vmem:[#allocation8 + $0x5a0] sm:$0xff]
    %v3020 = vld [vmem:[#allocation8 + $0x5a8] sm:$0xff]
    %v3021 = vld [vmem:[#allocation8 + $0x5b0] sm:$0xff]
    %v3022 = vld [vmem:[#allocation8 + $0x5b8] sm:$0xff]
    %v3023 = vld [vmem:[#allocation8 + $0x5c0] sm:$0xff]
    %v3024 = vld [vmem:[#allocation8 + $0x5c8] sm:$0xff]
    %v3025 = vld [vmem:[#allocation8 + $0x5d0] sm:$0xff]
    %v3026 = vld [vmem:[#allocation8 + $0x5d8] sm:$0xff]
    %v3027 = vld [vmem:[#allocation8 + $0x5e0] sm:$0xff]
    %v3028 = vld [vmem:[#allocation8 + $0x5e8] sm:$0xff]
    %v3029 = vld [vmem:[#allocation8 + $0x5f0] sm:$0xff]
    %v3030 = vld [vmem:[#allocation8 + $0x5f8] sm:$0xff]
    %v3031 = vld [vmem:[#allocation8 + $0x600] sm:$0xff]
    %v3032 = vld [vmem:[#allocation8 + $0x608] sm:$0xff]
    %v3033 = vld [vmem:[#allocation8 + $0x610] sm:$0xff]
    %v3034 = vld [vmem:[#allocation8 + $0x618] sm:$0xff]
    %v3035 = vld [vmem:[#allocation8 + $0x620] sm:$0xff]
    %v3036 = vld [vmem:[#allocation8 + $0x628] sm:$0xff]
    %v3037 = vld [vmem:[#allocation8 + $0x630] sm:$0xff]
    %v3038 = vld [vmem:[#allocation8 + $0x638] sm:$0xff]
    %v3039 = vld [vmem:[#allocation8 + $0x640] sm:$0xff]
    %v3040 = vld [vmem:[#allocation8 + $0x648] sm:$0xff]
    %v3041 = vld [vmem:[#allocation8 + $0x650] sm:$0xff]
    %v3042 = vld [vmem:[#allocation8 + $0x658] sm:$0xff]
    %v3043 = vld [vmem:[#allocation8 + $0x660] sm:$0xff]
    %v3044 = vld [vmem:[#allocation8 + $0x668] sm:$0xff]
    %v3045 = vld [vmem:[#allocation8 + $0x670] sm:$0xff]
    %v3046 = vld [vmem:[#allocation8 + $0x678] sm:$0xff]
    %v3047 = vld [vmem:[#allocation8 + $0x680] sm:$0xff]
    %v3048 = vld [vmem:[#allocation8 + $0x688] sm:$0xff]
    %v3049 = vld [vmem:[#allocation8 + $0x690] sm:$0xff]
    %v3050 = vld [vmem:[#allocation8 + $0x698] sm:$0xff]
    %v3051 = vld [vmem:[#allocation8 + $0x6a0] sm:$0xff]
    %v3052 = vld [vmem:[#allocation8 + $0x6a8] sm:$0xff]
    %v3053 = vld [vmem:[#allocation8 + $0x6b0] sm:$0xff]
    %v3054 = vld [vmem:[#allocation8 + $0x6b8] sm:$0xff]
    %v3055 = vld [vmem:[#allocation8 + $0x6c0] sm:$0xff]
    %v3056 = vld [vmem:[#allocation8 + $0x6c8] sm:$0xff]
    %v3057 = vld [vmem:[#allocation8 + $0x6d0] sm:$0xff]
    %v3058 = vld [vmem:[#allocation8 + $0x6d8] sm:$0xff]
    %v3059 = vld [vmem:[#allocation8 + $0x6e0] sm:$0xff]
    %v3060 = vld [vmem:[#allocation8 + $0x6e8] sm:$0xff]
    %v3061 = vld [vmem:[#allocation8 + $0x6f0] sm:$0xff]
    %v3062 = vld [vmem:[#allocation8 + $0x6f8] sm:$0xff]
    %v3063 = vld [vmem:[#allocation8 + $0x700] sm:$0xff]
    %v3064 = vld [vmem:[#allocation8 + $0x708] sm:$0xff]
    %v3065 = vld [vmem:[#allocation8 + $0x710] sm:$0xff]
    %v3066 = vld [vmem:[#allocation8 + $0x718] sm:$0xff]
    %v3067 = vld [vmem:[#allocation8 + $0x720] sm:$0xff]
    %v3068 = vld [vmem:[#allocation8 + $0x728] sm:$0xff]
    %v3069 = vld [vmem:[#allocation8 + $0x730] sm:$0xff]
    %v3070 = vld [vmem:[#allocation8 + $0x738] sm:$0xff]
    %v3071 = vld [vmem:[#allocation8 + $0x740] sm:$0xff]
    %v3072 = vld [vmem:[#allocation8 + $0x748] sm:$0xff]
    %v3073 = vld [vmem:[#allocation8 + $0x750] sm:$0xff]
    %v3074 = vld [vmem:[#allocation8 + $0x758] sm:$0xff]
    %v3075 = vld [vmem:[#allocation8 + $0x760] sm:$0xff]
    %v3076 = vld [vmem:[#allocation8 + $0x768] sm:$0xff]
    %v3077 = vld [vmem:[#allocation8 + $0x770] sm:$0xff]
    %v3078 = vld [vmem:[#allocation8 + $0x778] sm:$0xff]
    %v3079 = vld [vmem:[#allocation8 + $0x780] sm:$0xff]
    %v3080 = vld [vmem:[#allocation8 + $0x788] sm:$0xff]
    %v3081 = vld [vmem:[#allocation8 + $0x790] sm:$0xff]
    %v3082 = vld [vmem:[#allocation8 + $0x798] sm:$0xff]
    %v3083 = vld [vmem:[#allocation8 + $0x7a0] sm:$0xff]
    %v3084 = vld [vmem:[#allocation8 + $0x7a8] sm:$0xff]
    %v3085 = vld [vmem:[#allocation8 + $0x7b0] sm:$0xff]
    %v3086 = vld [vmem:[#allocation8 + $0x7b8] sm:$0xff]
    %v3087 = vld [vmem:[#allocation8 + $0x7c0] sm:$0xff]
    %v3088 = vld [vmem:[#allocation8 + $0x7c8] sm:$0xff]
    %v3089 = vld [vmem:[#allocation8 + $0x7d0] sm:$0xff]
    %v3090 = vld [vmem:[#allocation8 + $0x7d8] sm:$0xff]
    %v3091 = vld [vmem:[#allocation8 + $0x7e0] sm:$0xff]
    %v3092 = vld [vmem:[#allocation8 + $0x7e8] sm:$0xff]
    %v3093 = vld [vmem:[#allocation8 + $0x7f0] sm:$0xff]
    %v3094 = vld [vmem:[#allocation8 + $0x7f8] sm:$0xff]
    %v3095 = vld [vmem:[#allocation8 + $0x800] sm:$0xff]
    %v3096 = vld [vmem:[#allocation8 + $0x808] sm:$0xff]
    %v3097 = vld [vmem:[#allocation8 + $0x810] sm:$0xff]
    %v3098 = vld [vmem:[#allocation8 + $0x818] sm:$0xff]
    %v3099 = vld [vmem:[#allocation8 + $0x820] sm:$0xff]
    %v3100 = vld [vmem:[#allocation8 + $0x828] sm:$0xff]
    %v3101 = vld [vmem:[#allocation8 + $0x830] sm:$0xff]
    %v3102 = vld [vmem:[#allocation8 + $0x838] sm:$0xff]
    %v3103 = vld [vmem:[#allocation8 + $0x840] sm:$0xff]
    %v3104 = vld [vmem:[#allocation8 + $0x848] sm:$0xff]
    %v3105 = vld [vmem:[#allocation8 + $0x850] sm:$0xff]
    %v3106 = vld [vmem:[#allocation8 + $0x858] sm:$0xff]
    %v3107 = vld [vmem:[#allocation8 + $0x860] sm:$0xff]
    %v3108 = vld [vmem:[#allocation8 + $0x868] sm:$0xff]
    %v3109 = vld [vmem:[#allocation8 + $0x870] sm:$0xff]
    %v3110 = vld [vmem:[#allocation8 + $0x878] sm:$0xff]
    %v3111 = vld [vmem:[#allocation8 + $0x880] sm:$0xff]
    %v3112 = vld [vmem:[#allocation8 + $0x888] sm:$0xff]
    %v3113 = vld [vmem:[#allocation8 + $0x890] sm:$0xff]
    %v3114 = vld [vmem:[#allocation8 + $0x898] sm:$0xff]
    %v3115 = vld [vmem:[#allocation8 + $0x8a0] sm:$0xff]
    %v3116 = vld [vmem:[#allocation8 + $0x8a8] sm:$0xff]
    %v3117 = vld [vmem:[#allocation8 + $0x8b0] sm:$0xff]
    %v3118 = vld [vmem:[#allocation8 + $0x8b8] sm:$0xff]
    %v3119 = vld [vmem:[#allocation8 + $0x8c0] sm:$0xff]
    %v3120 = vld [vmem:[#allocation8 + $0x8c8] sm:$0xff]
    %v3121 = vld [vmem:[#allocation8 + $0x8d0] sm:$0xff]
    %v3122 = vld [vmem:[#allocation8 + $0x8d8] sm:$0xff]
    %v3123 = vld [vmem:[#allocation8 + $0x8e0] sm:$0xff]
    %v3124 = vld [vmem:[#allocation8 + $0x8e8] sm:$0xff]
    %v3125 = vld [vmem:[#allocation8 + $0x8f0] sm:$0xff]
    %v3126 = vld [vmem:[#allocation8 + $0x8f8] sm:$0xff]
    %3127 = vmatprep.subr.mxu0 %v2840
    %3128 = vmatpush1.msra.mxu0 %v2839
    %3129 = vmatprep.subr.mxu0 %v2849
    %3130 = vmatpush1.msra.mxu0 %v2848
    %3131 = vmatprep.subr.mxu0 %v2858
    %3132 = vmatpush1.msra.mxu0 %v2857
    %3133 = vmatprep.subr.mxu0 %v2867
    %3134 = vmatpush1.msra.mxu0 %v2866
    %3135 = vmatprep.subr.mxu0 %v2876
    %3136 = vmatpush1.msra.mxu0 %v2875
    %3137 = vmatprep.subr.mxu0 %v2885
    %3138 = vmatpush1.msra.mxu0 %v2884
    %3139 = vmatprep.subr.mxu0 %v2894
    %3140 = vmatpush1.msra.mxu0 %v2893
    %3141 = vmatprep.subr.mxu0 %v2903
    %3142 = vmatpush1.msra.mxu0 %v2902
    %3143 = vmatprep.subr.mxu0 %v2912
    %3144 = vmatpush1.msra.mxu0 %v2911
    %3145 = vmatprep.subr.mxu0 %v2921
    %3146 = vmatpush1.msra.mxu0 %v2920
    %3147 = vmatprep.subr.mxu0 %v2930
    %3148 = vmatpush1.msra.mxu0 %v2929
    %3149 = vmatprep.subr.mxu0 %v2939
    %3150 = vmatpush1.msra.mxu0 %v2938
    %3151 = vmatprep.subr.mxu0 %v2948
    %3152 = vmatpush1.msra.mxu0 %v2947
    %3153 = vmatprep.subr.mxu0 %v2957
    %3154 = vmatpush1.msra.mxu0 %v2956
    %3155 = vmatprep.subr.mxu0 %v2966
    %3156 = vmatpush1.msra.mxu0 %v2965
    %3157 = vmatprep.subr.mxu0 %v2975
    %3158 = vmatpush1.msra.mxu0 %v2974
    %3159 = vmatprep.subr.mxu0 %v2984
    %3160 = vmatpush1.msra.mxu0 %v2983
    %3161 = vmatprep.subr.mxu0 %v2993
    %3162 = vmatpush1.msra.mxu0 %v2992
    %3163 = vmatprep.subr.mxu0 %v3002
    %3164 = vmatpush1.msra.mxu0 %v3001
    %3165 = vmatprep.subr.mxu0 %v3011
    %3166 = vmatpush1.msra.mxu0 %v3010
    %3167 = vmatprep.subr.mxu0 %v3020
    %3168 = vmatpush1.msra.mxu0 %v3019
    %3169 = vmatprep.subr.mxu0 %v3029
    %3170 = vmatpush1.msra.mxu0 %v3028
    %3171 = vmatprep.subr.mxu0 %v3038
    %3172 = vmatpush1.msra.mxu0 %v3037
    %3173 = vmatprep.subr.mxu0 %v3047
    %3174 = vmatpush1.msra.mxu0 %v3046
    %3175 = vmatprep.subr.mxu0 %v3056
    %3176 = vmatpush1.msra.mxu0 %v3055
    %3177 = vmatprep.subr.mxu0 %v3065
    %3178 = vmatpush1.msra.mxu0 %v3064
    %3179 = vmatprep.subr.mxu0 %v3074
    %3180 = vmatpush1.msra.mxu0 %v3073
    %3181 = vmatprep.subr.mxu0 %v3083
    %3182 = vmatpush1.msra.mxu0 %v3082
    %3183 = vmatprep.subr.mxu0 %v3092
    %3184 = vmatpush1.msra.mxu0 %v3091
    %3185 = vmatprep.subr.mxu0 %v3101
    %3186 = vmatpush1.msra.mxu0 %v3100
    %3187 = vmatprep.subr.mxu0 %v3110
    %3188 = vmatpush1.msra.mxu0 %v3109
    %3189 = vmatprep.subr.mxu0 %v3119
    %3190 = vmatpush1.msra.mxu0 %v3118
    %3191 = vmatprep.mubr.f32.mxu0 %v1390
    %3192 = vmatmul.mubr.f32.gmra.mrb[0].mxu0 %v1389
    %v3193 = vpop.f32.mrb[0].mxu0
    %v3194 = vadd.f32 0.0, %v3193
    %v3195 = vpop.f32.mrb[0].mxu0
    %v3196 = vadd.f32 0.0, %v3195
    %3197 = vdwg.mxu0
    %3198 = vmatprep.subr.mxu0 %v2842
    %3199 = vmatpush1.msra.mxu0 %v2841
    %3200 = vmatprep.subr.mxu0 %v2851
    %3201 = vmatpush1.msra.mxu0 %v2850
    %3202 = vmatprep.subr.mxu0 %v2860
    %3203 = vmatpush1.msra.mxu0 %v2859
    %3204 = vmatprep.subr.mxu0 %v2869
    %3205 = vmatpush1.msra.mxu0 %v2868
    %3206 = vmatprep.subr.mxu0 %v2878
    %3207 = vmatpush1.msra.mxu0 %v2877
    %3208 = vmatprep.subr.mxu0 %v2887
    %3209 = vmatpush1.msra.mxu0 %v2886
    %3210 = vmatprep.subr.mxu0 %v2896
    %3211 = vmatpush1.msra.mxu0 %v2895
    %3212 = vmatprep.subr.mxu0 %v2905
    %3213 = vmatpush1.msra.mxu0 %v2904
    %3214 = vmatprep.subr.mxu0 %v2914
    %3215 = vmatpush1.msra.mxu0 %v2913
    %3216 = vmatprep.subr.mxu0 %v2923
    %3217 = vmatpush1.msra.mxu0 %v2922
    %3218 = vmatprep.subr.mxu0 %v2932
    %3219 = vmatpush1.msra.mxu0 %v2931
    %3220 = vmatprep.subr.mxu0 %v2941
    %3221 = vmatpush1.msra.mxu0 %v2940
    %3222 = vmatprep.subr.mxu0 %v2950
    %3223 = vmatpush1.msra.mxu0 %v2949
    %3224 = vmatprep.subr.mxu0 %v2959
    %3225 = vmatpush1.msra.mxu0 %v2958
    %3226 = vmatprep.subr.mxu0 %v2968
    %3227 = vmatpush1.msra.mxu0 %v2967
    %3228 = vmatprep.subr.mxu0 %v2977
    %3229 = vmatpush1.msra.mxu0 %v2976
    %3230 = vmatprep.subr.mxu0 %v2986
    %3231 = vmatpush1.msra.mxu0 %v2985
    %3232 = vmatprep.subr.mxu0 %v2995
    %3233 = vmatpush1.msra.mxu0 %v2994
    %3234 = vmatprep.subr.mxu0 %v3004
    %3235 = vmatpush1.msra.mxu0 %v3003
    %3236 = vmatprep.subr.mxu0 %v3013
    %3237 = vmatpush1.msra.mxu0 %v3012
    %3238 = vmatprep.subr.mxu0 %v3022
    %3239 = vmatpush1.msra.mxu0 %v3021
    %3240 = vmatprep.subr.mxu0 %v3031
    %3241 = vmatpush1.msra.mxu0 %v3030
    %3242 = vmatprep.subr.mxu0 %v3040
    %3243 = vmatpush1.msra.mxu0 %v3039
    %3244 = vmatprep.subr.mxu0 %v3049
    %3245 = vmatpush1.msra.mxu0 %v3048
    %3246 = vmatprep.subr.mxu0 %v3058
    %3247 = vmatpush1.msra.mxu0 %v3057
    %3248 = vmatprep.subr.mxu0 %v3067
    %3249 = vmatpush1.msra.mxu0 %v3066
    %3250 = vmatprep.subr.mxu0 %v3076
    %3251 = vmatpush1.msra.mxu0 %v3075
    %3252 = vmatprep.subr.mxu0 %v3085
    %3253 = vmatpush1.msra.mxu0 %v3084
    %3254 = vmatprep.subr.mxu0 %v3094
    %3255 = vmatpush1.msra.mxu0 %v3093
    %3256 = vmatprep.subr.mxu0 %v3103
    %3257 = vmatpush1.msra.mxu0 %v3102
    %3258 = vmatprep.subr.mxu0 %v3112
    %3259 = vmatpush1.msra.mxu0 %v3111
    %3260 = vmatprep.subr.mxu0 %v3121
    %3261 = vmatpush1.msra.mxu0 %v3120
    %3262 = vmatprep.mubr.f32.mxu0 %v1390
    %3263 = vmatmul.mubr.f32.gmra.mrb[0].mxu0 %v1389
    %v3264 = vpop.f32.mrb[0].mxu0
    %v3265 = vadd.f32 0.0, %v3264
    %v3266 = vpop.f32.mrb[0].mxu0
    %v3267 = vadd.f32 0.0, %v3266
    %3268 = vdwg.mxu0
    %3269 = vmatprep.subr.mxu0 %v2844
    %3270 = vmatpush1.msra.mxu0 %v2843
    %3271 = vmatprep.subr.mxu0 %v2853
    %3272 = vmatpush1.msra.mxu0 %v2852
    %3273 = vmatprep.subr.mxu0 %v2862
    %3274 = vmatpush1.msra.mxu0 %v2861
    %3275 = vmatprep.subr.mxu0 %v2871
    %3276 = vmatpush1.msra.mxu0 %v2870
    %3277 = vmatprep.subr.mxu0 %v2880
    %3278 = vmatpush1.msra.mxu0 %v2879
    %3279 = vmatprep.subr.mxu0 %v2889
    %3280 = vmatpush1.msra.mxu0 %v2888
    %3281 = vmatprep.subr.mxu0 %v2898
    %3282 = vmatpush1.msra.mxu0 %v2897
    %3283 = vmatprep.subr.mxu0 %v2907
    %3284 = vmatpush1.msra.mxu0 %v2906
    %3285 = vmatprep.subr.mxu0 %v2916
    %3286 = vmatpush1.msra.mxu0 %v2915
    %3287 = vmatprep.subr.mxu0 %v2925
    %3288 = vmatpush1.msra.mxu0 %v2924
    %3289 = vmatprep.subr.mxu0 %v2934
    %3290 = vmatpush1.msra.mxu0 %v2933
    %3291 = vmatprep.subr.mxu0 %v2943
    %3292 = vmatpush1.msra.mxu0 %v2942
    %3293 = vmatprep.subr.mxu0 %v2952
    %3294 = vmatpush1.msra.mxu0 %v2951
    %3295 = vmatprep.subr.mxu0 %v2961
    %3296 = vmatpush1.msra.mxu0 %v2960
    %3297 = vmatprep.subr.mxu0 %v2970
    %3298 = vmatpush1.msra.mxu0 %v2969
    %3299 = vmatprep.subr.mxu0 %v2979
    %3300 = vmatpush1.msra.mxu0 %v2978
    %3301 = vmatprep.subr.mxu0 %v2988
    %3302 = vmatpush1.msra.mxu0 %v2987
    %3303 = vmatprep.subr.mxu0 %v2997
    %3304 = vmatpush1.msra.mxu0 %v2996
    %3305 = vmatprep.subr.mxu0 %v3006
    %3306 = vmatpush1.msra.mxu0 %v3005
    %3307 = vmatprep.subr.mxu0 %v3015
    %3308 = vmatpush1.msra.mxu0 %v3014
    %3309 = vmatprep.subr.mxu0 %v3024
    %3310 = vmatpush1.msra.mxu0 %v3023
    %3311 = vmatprep.subr.mxu0 %v3033
    %3312 = vmatpush1.msra.mxu0 %v3032
    %3313 = vmatprep.subr.mxu0 %v3042
    %3314 = vmatpush1.msra.mxu0 %v3041
    %3315 = vmatprep.subr.mxu0 %v3051
    %3316 = vmatpush1.msra.mxu0 %v3050
    %3317 = vmatprep.subr.mxu0 %v3060
    %3318 = vmatpush1.msra.mxu0 %v3059
    %3319 = vmatprep.subr.mxu0 %v3069
    %3320 = vmatpush1.msra.mxu0 %v3068
    %3321 = vmatprep.subr.mxu0 %v3078
    %3322 = vmatpush1.msra.mxu0 %v3077
    %3323 = vmatprep.subr.mxu0 %v3087
    %3324 = vmatpush1.msra.mxu0 %v3086
    %3325 = vmatprep.subr.mxu0 %v3096
    %3326 = vmatpush1.msra.mxu0 %v3095
    %3327 = vmatprep.subr.mxu0 %v3105
    %3328 = vmatpush1.msra.mxu0 %v3104
    %3329 = vmatprep.subr.mxu0 %v3114
    %3330 = vmatpush1.msra.mxu0 %v3113
    %3331 = vmatprep.subr.mxu0 %v3123
    %3332 = vmatpush1.msra.mxu0 %v3122
    %3333 = vmatprep.mubr.f32.mxu0 %v1390
    %3334 = vmatmul.mubr.f32.gmra.mrb[0].mxu0 %v1389
    %v3335 = vpop.f32.mrb[0].mxu0
    %v3336 = vadd.f32 0.0, %v3335
    %v3337 = vpop.f32.mrb[0].mxu0
    %v3338 = vadd.f32 0.0, %v3337
    %3339 = vdwg.mxu0
    %3340 = vmatprep.subr.mxu0 %v2846
    %3341 = vmatpush1.msra.mxu0 %v2845
    %3342 = vmatprep.subr.mxu0 %v2855
    %3343 = vmatpush1.msra.mxu0 %v2854
    %3344 = vmatprep.subr.mxu0 %v2864
    %3345 = vmatpush1.msra.mxu0 %v2863
    %3346 = vmatprep.subr.mxu0 %v2873
    %3347 = vmatpush1.msra.mxu0 %v2872
    %3348 = vmatprep.subr.mxu0 %v2882
    %3349 = vmatpush1.msra.mxu0 %v2881
    %3350 = vmatprep.subr.mxu0 %v2891
    %3351 = vmatpush1.msra.mxu0 %v2890
    %3352 = vmatprep.subr.mxu0 %v2900
    %3353 = vmatpush1.msra.mxu0 %v2899
    %3354 = vmatprep.subr.mxu0 %v2909
    %3355 = vmatpush1.msra.mxu0 %v2908
    %3356 = vmatprep.subr.mxu0 %v2918
    %3357 = vmatpush1.msra.mxu0 %v2917
    %3358 = vmatprep.subr.mxu0 %v2927
    %3359 = vmatpush1.msra.mxu0 %v2926
    %3360 = vmatprep.subr.mxu0 %v2936
    %3361 = vmatpush1.msra.mxu0 %v2935
    %3362 = vmatprep.subr.mxu0 %v2945
    %3363 = vmatpush1.msra.mxu0 %v2944
    %3364 = vmatprep.subr.mxu0 %v2954
    %3365 = vmatpush1.msra.mxu0 %v2953
    %3366 = vmatprep.subr.mxu0 %v2963
    %3367 = vmatpush1.msra.mxu0 %v2962
    %3368 = vmatprep.subr.mxu0 %v2972
    %3369 = vmatpush1.msra.mxu0 %v2971
    %3370 = vmatprep.subr.mxu0 %v2981
    %3371 = vmatpush1.msra.mxu0 %v2980
    %3372 = vmatprep.subr.mxu0 %v2990
    %3373 = vmatpush1.msra.mxu0 %v2989
    %3374 = vmatprep.subr.mxu0 %v2999
    %3375 = vmatpush1.msra.mxu0 %v2998
    %3376 = vmatprep.subr.mxu0 %v3008
    %3377 = vmatpush1.msra.mxu0 %v3007
    %3378 = vmatprep.subr.mxu0 %v3017
    %3379 = vmatpush1.msra.mxu0 %v3016
    %3380 = vmatprep.subr.mxu0 %v3026
    %3381 = vmatpush1.msra.mxu0 %v3025
    %3382 = vmatprep.subr.mxu0 %v3035
    %3383 = vmatpush1.msra.mxu0 %v3034
    %3384 = vmatprep.subr.mxu0 %v3044
    %3385 = vmatpush1.msra.mxu0 %v3043
    %3386 = vmatprep.subr.mxu0 %v3053
    %3387 = vmatpush1.msra.mxu0 %v3052
    %3388 = vmatprep.subr.mxu0 %v3062
    %3389 = vmatpush1.msra.mxu0 %v3061
    %3390 = vmatprep.subr.mxu0 %v3071
    %3391 = vmatpush1.msra.mxu0 %v3070
    %3392 = vmatprep.subr.mxu0 %v3080
    %3393 = vmatpush1.msra.mxu0 %v3079
    %3394 = vmatprep.subr.mxu0 %v3089
    %3395 = vmatpush1.msra.mxu0 %v3088
    %3396 = vmatprep.subr.mxu0 %v3098
    %3397 = vmatpush1.msra.mxu0 %v3097
    %3398 = vmatprep.subr.mxu0 %v3107
    %3399 = vmatpush1.msra.mxu0 %v3106
    %3400 = vmatprep.subr.mxu0 %v3116
    %3401 = vmatpush1.msra.mxu0 %v3115
    %3402 = vmatprep.subr.mxu0 %v3125
    %3403 = vmatpush1.msra.mxu0 %v3124
    %3404 = vmatprep.mubr.f32.mxu0 %v1390
    %3405 = vmatmul.mubr.f32.gmra.mrb[0].mxu0 %v1389
    %v3406 = vpop.f32.mrb[0].mxu0
    %v3407 = vadd.f32 0.0, %v3406
    %v3408 = vpop.f32.mrb[0].mxu0
    %v3409 = vadd.f32 0.0, %v3408
    %3410 = vdwg.mxu0
    %3411 = vmatprep.subr.mxu0 0.0
    %3412 = vmatpush1.msra.mxu0 %v2847
    %3413 = vmatprep.subr.mxu0 0.0
    %3414 = vmatpush1.msra.mxu0 %v2856
    %3415 = vmatprep.subr.mxu0 0.0
    %3416 = vmatpush1.msra.mxu0 %v2865
    %3417 = vmatprep.subr.mxu0 0.0
    %3418 = vmatpush1.msra.mxu0 %v2874
    %3419 = vmatprep.subr.mxu0 0.0
    %3420 = vmatpush1.msra.mxu0 %v2883
    %3421 = vmatprep.subr.mxu0 0.0
    %3422 = vmatpush1.msra.mxu0 %v2892
    %3423 = vmatprep.subr.mxu0 0.0
    %3424 = vmatpush1.msra.mxu0 %v2901
    %3425 = vmatprep.subr.mxu0 0.0
    %3426 = vmatpush1.msra.mxu0 %v2910
    %3427 = vmatprep.subr.mxu0 0.0
    %3428 = vmatpush1.msra.mxu0 %v2919
    %3429 = vmatprep.subr.mxu0 0.0
    %3430 = vmatpush1.msra.mxu0 %v2928
    %3431 = vmatprep.subr.mxu0 0.0
    %3432 = vmatpush1.msra.mxu0 %v2937
    %3433 = vmatprep.subr.mxu0 0.0
    %3434 = vmatpush1.msra.mxu0 %v2946
    %3435 = vmatprep.subr.mxu0 0.0
    %3436 = vmatpush1.msra.mxu0 %v2955
    %3437 = vmatprep.subr.mxu0 0.0
    %3438 = vmatpush1.msra.mxu0 %v2964
    %3439 = vmatprep.subr.mxu0 0.0
    %3440 = vmatpush1.msra.mxu0 %v2973
    %3441 = vmatprep.subr.mxu0 0.0
    %3442 = vmatpush1.msra.mxu0 %v2982
    %3443 = vmatprep.subr.mxu0 0.0
    %3444 = vmatpush1.msra.mxu0 %v2991
    %3445 = vmatprep.subr.mxu0 0.0
    %3446 = vmatpush1.msra.mxu0 %v3000
    %3447 = vmatprep.subr.mxu0 0.0
    %3448 = vmatpush1.msra.mxu0 %v3009
    %3449 = vmatprep.subr.mxu0 0.0
    %3450 = vmatpush1.msra.mxu0 %v3018
    %3451 = vmatprep.subr.mxu0 0.0
    %3452 = vmatpush1.msra.mxu0 %v3027
    %3453 = vmatprep.subr.mxu0 0.0
    %3454 = vmatpush1.msra.mxu0 %v3036
    %3455 = vmatprep.subr.mxu0 0.0
    %3456 = vmatpush1.msra.mxu0 %v3045
    %3457 = vmatprep.subr.mxu0 0.0
    %3458 = vmatpush1.msra.mxu0 %v3054
    %3459 = vmatprep.subr.mxu0 0.0
    %3460 = vmatpush1.msra.mxu0 %v3063
    %3461 = vmatprep.subr.mxu0 0.0
    %3462 = vmatpush1.msra.mxu0 %v3072
    %3463 = vmatprep.subr.mxu0 0.0
    %3464 = vmatpush1.msra.mxu0 %v3081
    %3465 = vmatprep.subr.mxu0 0.0
    %3466 = vmatpush1.msra.mxu0 %v3090
    %3467 = vmatprep.subr.mxu0 0.0
    %3468 = vmatpush1.msra.mxu0 %v3099
    %3469 = vmatprep.subr.mxu0 0.0
    %3470 = vmatpush1.msra.mxu0 %v3108
    %3471 = vmatprep.subr.mxu0 0.0
    %3472 = vmatpush1.msra.mxu0 %v3117
    %3473 = vmatprep.subr.mxu0 0.0
    %3474 = vmatpush1.msra.mxu0 %v3126
    %3475 = vmatprep.mubr.f32.mxu0 %v1390
    %3476 = vmatmul.mubr.f32.gmra.mrb[0].mxu0 %v1389
    %v3477 = vpop.f32.mrb[0].mxu0
    %v3478 = vadd.f32 0.0, %v3477
    %v3479 = vpop.f32.mrb[0].mxu0
    %3480 = vdwg.mxu0
    %s3481 = scalar_lea.vmem [#allocation5], 24
    %v3482 = vld [vmem:[%s3481] sm:$0xff]
    %s3483 = scalar_lea.vmem %s2, 24
    %v3484 = vld [vmem:[%s3483] sm:$0xff]
    %3486 = vset.pattern.permute.xlu0 0
    %3487 = vperm.xlu0 %3486, %v3484
    %v3488 = vpop.permute.xlu0 %3487
    %v3491 = vsel %vm1314, %v3482, 0
    %3493 = vmatprep.subr.mxu0 0.0
    %3494 = vmatpush1.msra.mxu0 %v3194
    %3495 = vmatprep.subr.mxu0 0.0
    %3496 = vmatpush1.msra.mxu0 %v3196
    %3497 = vmatprep.subr.mxu0 0.0
    %3498 = vmatpush1.msra.mxu0 %v3265
    %3499 = vmatprep.subr.mxu0 0.0
    %3500 = vmatpush1.msra.mxu0 %v3267
    %3501 = vmatprep.subr.mxu0 0.0
    %3502 = vmatpush1.msra.mxu0 %v3336
    %3503 = vmatprep.subr.mxu0 0.0
    %3504 = vmatpush1.msra.mxu0 %v3338
    %3505 = vmatprep.subr.mxu0 0.0
    %3506 = vmatpush1.msra.mxu0 %v3407
    %3507 = vmatprep.subr.mxu0 0.0
    %3508 = vmatpush1.msra.mxu0 %v3409
    %3509 = vmatprep.subr.mxu0 0.0
    %3510 = vmatpush1.msra.mxu0 %v3478
    %3511 = vmatprep.subr.mxu0 0.0
    %3512 = vmatpush1.msra.mxu0 0.0
    %3513 = vmatprep.subr.mxu0 0.0
    %3514 = vmatpush1.msra.mxu0 0.0
    %3515 = vmatprep.subr.mxu0 0.0
    %3516 = vmatpush1.msra.mxu0 0.0
    %3517 = vmatprep.subr.mxu0 0.0
    %3518 = vmatpush1.msra.mxu0 0.0
    %3519 = vmatprep.subr.mxu0 0.0
    %3520 = vmatpush1.msra.mxu0 0.0
    %3521 = vmatprep.subr.mxu0 0.0
    %3522 = vmatpush1.msra.mxu0 0.0
    %3523 = vmatprep.subr.mxu0 0.0
    %3524 = vmatpush1.msra.mxu0 0.0
    %3525 = vmatprep.subr.mxu0 0.0
    %3526 = vmatpush1.msra.mxu0 0.0
    %3527 = vmatprep.subr.mxu0 0.0
    %3528 = vmatpush1.msra.mxu0 0.0
    %3529 = vmatprep.subr.mxu0 0.0
    %3530 = vmatpush1.msra.mxu0 0.0
    %3531 = vmatprep.subr.mxu0 0.0
    %3532 = vmatpush1.msra.mxu0 0.0
    %3533 = vmatprep.subr.mxu0 0.0
    %3534 = vmatpush1.msra.mxu0 0.0
    %3535 = vmatprep.subr.mxu0 0.0
    %3536 = vmatpush1.msra.mxu0 0.0
    %3537 = vmatprep.subr.mxu0 0.0
    %3538 = vmatpush1.msra.mxu0 0.0
    %3539 = vmatprep.subr.mxu0 0.0
    %3540 = vmatpush1.msra.mxu0 0.0
    %3541 = vmatprep.subr.mxu0 0.0
    %3542 = vmatpush1.msra.mxu0 0.0
    %3543 = vmatprep.subr.mxu0 0.0
    %3544 = vmatpush1.msra.mxu0 0.0
    %3545 = vmatprep.subr.mxu0 0.0
    %3546 = vmatpush1.msra.mxu0 0.0
    %3547 = vmatprep.subr.mxu0 0.0
    %3548 = vmatpush1.msra.mxu0 0.0
    %3549 = vmatprep.subr.mxu0 0.0
    %3550 = vmatpush1.msra.mxu0 0.0
    %3551 = vmatprep.subr.mxu0 0.0
    %3552 = vmatpush1.msra.mxu0 0.0
    %3553 = vmatprep.subr.mxu0 0.0
    %3554 = vmatpush1.msra.mxu0 0.0
    %3555 = vmatprep.subr.mxu0 0.0
    %3556 = vmatpush1.msra.mxu0 0.0
    %3557 = vmatprep.mubr.f32.mxu0 0.0
    %3558 = vmatmul.mubr.f32.gmra.mrb[0].mxu0 %v3491
    %v3559 = vpop.f32.mrb[0].mxu0
    %v3560 = vadd.f32 %v3488, %v3559
    %v3561 = vpop.f32.mrb[0].mxu0
    %3562 = vdwg.mxu0
    %v3563 = vmax.f32 %v3560, 0.0
    %v3564 = vld [vmem:[#allocation10] sm:$0xff]
    %v3565 = vld [vmem:[#allocation10 + $0x8] sm:$0xff]
    %v3566 = vld [vmem:[#allocation10 + $0x10] sm:$0xff]
    %v3567 = vld [vmem:[#allocation10 + $0x18] sm:$0xff]
    %v3568 = vld [vmem:[#allocation10 + $0x20] sm:$0xff]
    %v3569 = vld [vmem:[#allocation10 + $0x28] sm:$0xff]
    %v3570 = vld [vmem:[#allocation10 + $0x30] sm:$0xff]
    %v3571 = vld [vmem:[#allocation10 + $0x38] sm:$0xff]
    %v3572 = vld [vmem:[#allocation10 + $0x40] sm:$0xff]
    %v3573 = vld [vmem:[#allocation10 + $0x48] sm:$0xff]
    %v3574 = vld [vmem:[#allocation10 + $0x50] sm:$0xff]
    %v3575 = vld [vmem:[#allocation10 + $0x58] sm:$0xff]
    %v3576 = vld [vmem:[#allocation10 + $0x60] sm:$0xff]
    %v3577 = vld [vmem:[#allocation10 + $0x68] sm:$0xff]
    %v3578 = vld [vmem:[#allocation10 + $0x70] sm:$0xff]
    %v3579 = vld [vmem:[#allocation10 + $0x78] sm:$0xff]
    %v3580 = vld [vmem:[#allocation10 + $0x80] sm:$0xff]
    %v3581 = vld [vmem:[#allocation10 + $0x88] sm:$0xff]
    %v3582 = vld [vmem:[#allocation10 + $0x90] sm:$0xff]
    %v3583 = vld [vmem:[#allocation10 + $0x98] sm:$0xff]
    %v3584 = vld [vmem:[#allocation10 + $0xa0] sm:$0xff]
    %v3585 = vld [vmem:[#allocation10 + $0xa8] sm:$0xff]
    %v3586 = vld [vmem:[#allocation10 + $0xb0] sm:$0xff]
    %v3587 = vld [vmem:[#allocation10 + $0xb8] sm:$0xff]
    %v3588 = vld [vmem:[#allocation10 + $0xc0] sm:$0xff]
    %v3589 = vld [vmem:[#allocation10 + $0xc8] sm:$0xff]
    %v3590 = vld [vmem:[#allocation10 + $0xd0] sm:$0xff]
    %v3591 = vld [vmem:[#allocation10 + $0xd8] sm:$0xff]
    %v3592 = vld [vmem:[#allocation10 + $0xe0] sm:$0xff]
    %v3593 = vld [vmem:[#allocation10 + $0xe8] sm:$0xff]
    %v3594 = vld [vmem:[#allocation10 + $0xf0] sm:$0xff]
    %v3595 = vld [vmem:[#allocation10 + $0xf8] sm:$0xff]
    %3596 = vmatprep.subr.mxu0 %v3565
    %3597 = vmatpush1.msra.mxu0 %v3564
    %3598 = vmatprep.subr.mxu0 %v3567
    %3599 = vmatpush1.msra.mxu0 %v3566
    %3600 = vmatprep.subr.mxu0 %v3569
    %3601 = vmatpush1.msra.mxu0 %v3568
    %3602 = vmatprep.subr.mxu0 %v3571
    %3603 = vmatpush1.msra.mxu0 %v3570
    %3604 = vmatprep.subr.mxu0 %v3573
    %3605 = vmatpush1.msra.mxu0 %v3572
    %3606 = vmatprep.subr.mxu0 %v3575
    %3607 = vmatpush1.msra.mxu0 %v3574
    %3608 = vmatprep.subr.mxu0 %v3577
    %3609 = vmatpush1.msra.mxu0 %v3576
    %3610 = vmatprep.subr.mxu0 %v3579
    %3611 = vmatpush1.msra.mxu0 %v3578
    %3612 = vmatprep.subr.mxu0 %v3581
    %3613 = vmatpush1.msra.mxu0 %v3580
    %3614 = vmatprep.subr.mxu0 %v3583
    %3615 = vmatpush1.msra.mxu0 %v3582
    %3616 = vmatprep.subr.mxu0 %v3585
    %3617 = vmatpush1.msra.mxu0 %v3584
    %3618 = vmatprep.subr.mxu0 %v3587
    %3619 = vmatpush1.msra.mxu0 %v3586
    %3620 = vmatprep.subr.mxu0 %v3589
    %3621 = vmatpush1.msra.mxu0 %v3588
    %3622 = vmatprep.subr.mxu0 %v3591
    %3623 = vmatpush1.msra.mxu0 %v3590
    %3624 = vmatprep.subr.mxu0 %v3593
    %3625 = vmatpush1.msra.mxu0 %v3592
    %3626 = vmatprep.subr.mxu0 %v3595
    %3627 = vmatpush1.msra.mxu0 %v3594
    %3628 = vmatprep.subr.mxu0 0.0
    %3629 = vmatpush1.msra.mxu0 0.0
    %3630 = vmatprep.subr.mxu0 0.0
    %3631 = vmatpush1.msra.mxu0 0.0
    %3632 = vmatprep.subr.mxu0 0.0
    %3633 = vmatpush1.msra.mxu0 0.0
    %3634 = vmatprep.subr.mxu0 0.0
    %3635 = vmatpush1.msra.mxu0 0.0
    %3636 = vmatprep.subr.mxu0 0.0
    %3637 = vmatpush1.msra.mxu0 0.0
    %3638 = vmatprep.subr.mxu0 0.0
    %3639 = vmatpush1.msra.mxu0 0.0
    %3640 = vmatprep.subr.mxu0 0.0
    %3641 = vmatpush1.msra.mxu0 0.0
    %3642 = vmatprep.subr.mxu0 0.0
    %3643 = vmatpush1.msra.mxu0 0.0
    %3644 = vmatprep.subr.mxu0 0.0
    %3645 = vmatpush1.msra.mxu0 0.0
    %3646 = vmatprep.subr.mxu0 0.0
    %3647 = vmatpush1.msra.mxu0 0.0
    %3648 = vmatprep.subr.mxu0 0.0
    %3649 = vmatpush1.msra.mxu0 0.0
    %3650 = vmatprep.subr.mxu0 0.0
    %3651 = vmatpush1.msra.mxu0 0.0
    %3652 = vmatprep.subr.mxu0 0.0
    %3653 = vmatpush1.msra.mxu0 0.0
    %3654 = vmatprep.subr.mxu0 0.0
    %3655 = vmatpush1.msra.mxu0 0.0
    %3656 = vmatprep.subr.mxu0 0.0
    %3657 = vmatpush1.msra.mxu0 0.0
    %3658 = vmatprep.subr.mxu0 0.0
    %3659 = vmatpush1.msra.mxu0 0.0
    %3660 = vmatprep.mubr.f32.mxu0 0.0
    %3661 = vmatmul.mubr.f32.gmra.mrb[0].mxu0 %v3563
    %v3662 = vpop.f32.mrb[0].mxu0
    %v3663 = vadd.f32 0.0, %v3662
    %v3664 = vpop.f32.mrb[0].mxu0
    %v3665 = vadd.f32 0.0, %v3664
    %3666 = vdwg.mxu0
    %v3667 = vadd.f32 %v2837, %v3663
    %v3668 = vadd.f32 %v2838, %v3665
    %3669 = vmatprep.subr.mxu0 %v93
    %3670 = vmatpush1.msra.mxu0 %v92
    %3671 = vmatprep.subr.mxu0 %v111
    %3672 = vmatpush1.msra.mxu0 %v110
    %3673 = vmatprep.subr.mxu0 %v129
    %3674 = vmatpush1.msra.mxu0 %v128
    %3675 = vmatprep.subr.mxu0 %v147
    %3676 = vmatpush1.msra.mxu0 %v146
    %3677 = vmatprep.subr.mxu0 %v165
    %3678 = vmatpush1.msra.mxu0 %v164
    %3679 = vmatprep.subr.mxu0 %v183
    %3680 = vmatpush1.msra.mxu0 %v182
    %3681 = vmatprep.subr.mxu0 %v201
    %3682 = vmatpush1.msra.mxu0 %v200
    %3683 = vmatprep.subr.mxu0 %v219
    %3684 = vmatpush1.msra.mxu0 %v218
    %3685 = vmatprep.subr.mxu0 %v237
    %3686 = vmatpush1.msra.mxu0 %v236
    %3687 = vmatprep.subr.mxu0 %v255
    %3688 = vmatpush1.msra.mxu0 %v254
    %3689 = vmatprep.subr.mxu0 %v273
    %3690 = vmatpush1.msra.mxu0 %v272
    %3691 = vmatprep.subr.mxu0 %v291
    %3692 = vmatpush1.msra.mxu0 %v290
    %3693 = vmatprep.subr.mxu0 %v309
    %3694 = vmatpush1.msra.mxu0 %v308
    %3695 = vmatprep.subr.mxu0 %v327
    %3696 = vmatpush1.msra.mxu0 %v326
    %3697 = vmatprep.subr.mxu0 %v345
    %3698 = vmatpush1.msra.mxu0 %v344
    %3699 = vmatprep.subr.mxu0 %v363
    %3700 = vmatpush1.msra.mxu0 %v362
    %3701 = vmatprep.subr.mxu0 %v381
    %3702 = vmatpush1.msra.mxu0 %v380
    %3703 = vmatprep.subr.mxu0 %v399
    %3704 = vmatpush1.msra.mxu0 %v398
    %3705 = vmatprep.subr.mxu0 %v417
    %3706 = vmatpush1.msra.mxu0 %v416
    %3707 = vmatprep.subr.mxu0 %v435
    %3708 = vmatpush1.msra.mxu0 %v434
    %3709 = vmatprep.subr.mxu0 %v453
    %3710 = vmatpush1.msra.mxu0 %v452
    %3711 = vmatprep.subr.mxu0 %v471
    %3712 = vmatpush1.msra.mxu0 %v470
    %3713 = vmatprep.subr.mxu0 %v489
    %3714 = vmatpush1.msra.mxu0 %v488
    %3715 = vmatprep.subr.mxu0 %v507
    %3716 = vmatpush1.msra.mxu0 %v506
    %3717 = vmatprep.subr.mxu0 %v525
    %3718 = vmatpush1.msra.mxu0 %v524
    %3719 = vmatprep.subr.mxu0 %v543
    %3720 = vmatpush1.msra.mxu0 %v542
    %3721 = vmatprep.subr.mxu0 %v561
    %3722 = vmatpush1.msra.mxu0 %v560
    %3723 = vmatprep.subr.mxu0 %v579
    %3724 = vmatpush1.msra.mxu0 %v578
    %3725 = vmatprep.subr.mxu0 %v597
    %3726 = vmatpush1.msra.mxu0 %v596
    %3727 = vmatprep.subr.mxu0 %v615
    %3728 = vmatpush1.msra.mxu0 %v614
    %3729 = vmatprep.subr.mxu0 %v633
    %3730 = vmatpush1.msra.mxu0 %v632
    %3731 = vmatprep.subr.mxu0 %v651
    %3732 = vmatpush1.msra.mxu0 %v650
    %3733 = vmatprep.mubr.f32.mxu0 %v3668
    %3734 = vmatmul.mubr.f32.gmra.mrb[0].mxu0 %v3667
    %v3735 = vpop.f32.mrb[0].mxu0
    %v3736 = vadd.f32 0.0, %v3735
    %v3737 = vpop.f32.mrb[0].mxu0
    %v3738 = vadd.f32 0.0, %v3737
    %3739 = vdwg.mxu0
    %3740 = vmatprep.subr.mxu0 %v95
    %3741 = vmatpush1.msra.mxu0 %v94
    %3742 = vmatprep.subr.mxu0 %v113
    %3743 = vmatpush1.msra.mxu0 %v112
    %3744 = vmatprep.subr.mxu0 %v131
    %3745 = vmatpush1.msra.mxu0 %v130
    %3746 = vmatprep.subr.mxu0 %v149
    %3747 = vmatpush1.msra.mxu0 %v148
    %3748 = vmatprep.subr.mxu0 %v167
    %3749 = vmatpush1.msra.mxu0 %v166
    %3750 = vmatprep.subr.mxu0 %v185
    %3751 = vmatpush1.msra.mxu0 %v184
    %3752 = vmatprep.subr.mxu0 %v203
    %3753 = vmatpush1.msra.mxu0 %v202
    %3754 = vmatprep.subr.mxu0 %v221
    %3755 = vmatpush1.msra.mxu0 %v220
    %3756 = vmatprep.subr.mxu0 %v239
    %3757 = vmatpush1.msra.mxu0 %v238
    %3758 = vmatprep.subr.mxu0 %v257
    %3759 = vmatpush1.msra.mxu0 %v256
    %3760 = vmatprep.subr.mxu0 %v275
    %3761 = vmatpush1.msra.mxu0 %v274
    %3762 = vmatprep.subr.mxu0 %v293
    %3763 = vmatpush1.msra.mxu0 %v292
    %3764 = vmatprep.subr.mxu0 %v311
    %3765 = vmatpush1.msra.mxu0 %v310
    %3766 = vmatprep.subr.mxu0 %v329
    %3767 = vmatpush1.msra.mxu0 %v328
    %3768 = vmatprep.subr.mxu0 %v347
    %3769 = vmatpush1.msra.mxu0 %v346
    %3770 = vmatprep.subr.mxu0 %v365
    %3771 = vmatpush1.msra.mxu0 %v364
    %3772 = vmatprep.subr.mxu0 %v383
    %3773 = vmatpush1.msra.mxu0 %v382
    %3774 = vmatprep.subr.mxu0 %v401
    %3775 = vmatpush1.msra.mxu0 %v400
    %3776 = vmatprep.subr.mxu0 %v419
    %3777 = vmatpush1.msra.mxu0 %v418
    %3778 = vmatprep.subr.mxu0 %v437
    %3779 = vmatpush1.msra.mxu0 %v436
    %3780 = vmatprep.subr.mxu0 %v455
    %3781 = vmatpush1.msra.mxu0 %v454
    %3782 = vmatprep.subr.mxu0 %v473
    %3783 = vmatpush1.msra.mxu0 %v472
    %3784 = vmatprep.subr.mxu0 %v491
    %3785 = vmatpush1.msra.mxu0 %v490
    %3786 = vmatprep.subr.mxu0 %v509
    %3787 = vmatpush1.msra.mxu0 %v508
    %3788 = vmatprep.subr.mxu0 %v527
    %3789 = vmatpush1.msra.mxu0 %v526
    %3790 = vmatprep.subr.mxu0 %v545
    %3791 = vmatpush1.msra.mxu0 %v544
    %3792 = vmatprep.subr.mxu0 %v563
    %3793 = vmatpush1.msra.mxu0 %v562
    %3794 = vmatprep.subr.mxu0 %v581
    %3795 = vmatpush1.msra.mxu0 %v580
    %3796 = vmatprep.subr.mxu0 %v599
    %3797 = vmatpush1.msra.mxu0 %v598
    %3798 = vmatprep.subr.mxu0 %v617
    %3799 = vmatpush1.msra.mxu0 %v616
    %3800 = vmatprep.subr.mxu0 %v635
    %3801 = vmatpush1.msra.mxu0 %v634
    %3802 = vmatprep.subr.mxu0 %v653
    %3803 = vmatpush1.msra.mxu0 %v652
    %3804 = vmatprep.mubr.f32.mxu0 %v3668
    %3805 = vmatmul.mubr.f32.gmra.mrb[0].mxu0 %v3667
    %v3806 = vpop.f32.mrb[0].mxu0
    %v3807 = vadd.f32 0.0, %v3806
    %v3808 = vpop.f32.mrb[0].mxu0
    %v3809 = vadd.f32 0.0, %v3808
    %3810 = vdwg.mxu0
    %3811 = vmatprep.subr.mxu0 %v97
    %3812 = vmatpush1.msra.mxu0 %v96
    %3813 = vmatprep.subr.mxu0 %v115
    %3814 = vmatpush1.msra.mxu0 %v114
    %3815 = vmatprep.subr.mxu0 %v133
    %3816 = vmatpush1.msra.mxu0 %v132
    %3817 = vmatprep.subr.mxu0 %v151
    %3818 = vmatpush1.msra.mxu0 %v150
    %3819 = vmatprep.subr.mxu0 %v169
    %3820 = vmatpush1.msra.mxu0 %v168
    %3821 = vmatprep.subr.mxu0 %v187
    %3822 = vmatpush1.msra.mxu0 %v186
    %3823 = vmatprep.subr.mxu0 %v205
    %3824 = vmatpush1.msra.mxu0 %v204
    %3825 = vmatprep.subr.mxu0 %v223
    %3826 = vmatpush1.msra.mxu0 %v222
    %3827 = vmatprep.subr.mxu0 %v241
    %3828 = vmatpush1.msra.mxu0 %v240
    %3829 = vmatprep.subr.mxu0 %v259
    %3830 = vmatpush1.msra.mxu0 %v258
    %3831 = vmatprep.subr.mxu0 %v277
    %3832 = vmatpush1.msra.mxu0 %v276
    %3833 = vmatprep.subr.mxu0 %v295
    %3834 = vmatpush1.msra.mxu0 %v294
    %3835 = vmatprep.subr.mxu0 %v313
    %3836 = vmatpush1.msra.mxu0 %v312
    %3837 = vmatprep.subr.mxu0 %v331
    %3838 = vmatpush1.msra.mxu0 %v330
    %3839 = vmatprep.subr.mxu0 %v349
    %3840 = vmatpush1.msra.mxu0 %v348
    %3841 = vmatprep.subr.mxu0 %v367
    %3842 = vmatpush1.msra.mxu0 %v366
    %3843 = vmatprep.subr.mxu0 %v385
    %3844 = vmatpush1.msra.mxu0 %v384
    %3845 = vmatprep.subr.mxu0 %v403
    %3846 = vmatpush1.msra.mxu0 %v402
    %3847 = vmatprep.subr.mxu0 %v421
    %3848 = vmatpush1.msra.mxu0 %v420
    %3849 = vmatprep.subr.mxu0 %v439
    %3850 = vmatpush1.msra.mxu0 %v438
    %3851 = vmatprep.subr.mxu0 %v457
    %3852 = vmatpush1.msra.mxu0 %v456
    %3853 = vmatprep.subr.mxu0 %v475
    %3854 = vmatpush1.msra.mxu0 %v474
    %3855 = vmatprep.subr.mxu0 %v493
    %3856 = vmatpush1.msra.mxu0 %v492
    %3857 = vmatprep.subr.mxu0 %v511
    %3858 = vmatpush1.msra.mxu0 %v510
    %3859 = vmatprep.subr.mxu0 %v529
    %3860 = vmatpush1.msra.mxu0 %v528
    %3861 = vmatprep.subr.mxu0 %v547
    %3862 = vmatpush1.msra.mxu0 %v546
    %3863 = vmatprep.subr.mxu0 %v565
    %3864 = vmatpush1.msra.mxu0 %v564
    %3865 = vmatprep.subr.mxu0 %v583
    %3866 = vmatpush1.msra.mxu0 %v582
    %3867 = vmatprep.subr.mxu0 %v601
    %3868 = vmatpush1.msra.mxu0 %v600
    %3869 = vmatprep.subr.mxu0 %v619
    %3870 = vmatpush1.msra.mxu0 %v618
    %3871 = vmatprep.subr.mxu0 %v637
    %3872 = vmatpush1.msra.mxu0 %v636
    %3873 = vmatprep.subr.mxu0 %v655
    %3874 = vmatpush1.msra.mxu0 %v654
    %3875 = vmatprep.mubr.f32.mxu0 %v3668
    %3876 = vmatmul.mubr.f32.gmra.mrb[0].mxu0 %v3667
    %v3877 = vpop.f32.mrb[0].mxu0
    %v3878 = vadd.f32 0.0, %v3877
    %v3879 = vpop.f32.mrb[0].mxu0
    %v3880 = vadd.f32 0.0, %v3879
    %3881 = vdwg.mxu0
    %3882 = vmatprep.subr.mxu0 %v99
    %3883 = vmatpush1.msra.mxu0 %v98
    %3884 = vmatprep.subr.mxu0 %v117
    %3885 = vmatpush1.msra.mxu0 %v116
    %3886 = vmatprep.subr.mxu0 %v135
    %3887 = vmatpush1.msra.mxu0 %v134
    %3888 = vmatprep.subr.mxu0 %v153
    %3889 = vmatpush1.msra.mxu0 %v152
    %3890 = vmatprep.subr.mxu0 %v171
    %3891 = vmatpush1.msra.mxu0 %v170
    %3892 = vmatprep.subr.mxu0 %v189
    %3893 = vmatpush1.msra.mxu0 %v188
    %3894 = vmatprep.subr.mxu0 %v207
    %3895 = vmatpush1.msra.mxu0 %v206
    %3896 = vmatprep.subr.mxu0 %v225
    %3897 = vmatpush1.msra.mxu0 %v224
    %3898 = vmatprep.subr.mxu0 %v243
    %3899 = vmatpush1.msra.mxu0 %v242
    %3900 = vmatprep.subr.mxu0 %v261
    %3901 = vmatpush1.msra.mxu0 %v260
    %3902 = vmatprep.subr.mxu0 %v279
    %3903 = vmatpush1.msra.mxu0 %v278
    %3904 = vmatprep.subr.mxu0 %v297
    %3905 = vmatpush1.msra.mxu0 %v296
    %3906 = vmatprep.subr.mxu0 %v315
    %3907 = vmatpush1.msra.mxu0 %v314
    %3908 = vmatprep.subr.mxu0 %v333
    %3909 = vmatpush1.msra.mxu0 %v332
    %3910 = vmatprep.subr.mxu0 %v351
    %3911 = vmatpush1.msra.mxu0 %v350
    %3912 = vmatprep.subr.mxu0 %v369
    %3913 = vmatpush1.msra.mxu0 %v368
    %3914 = vmatprep.subr.mxu0 %v387
    %3915 = vmatpush1.msra.mxu0 %v386
    %3916 = vmatprep.subr.mxu0 %v405
    %3917 = vmatpush1.msra.mxu0 %v404
    %3918 = vmatprep.subr.mxu0 %v423
    %3919 = vmatpush1.msra.mxu0 %v422
    %3920 = vmatprep.subr.mxu0 %v441
    %3921 = vmatpush1.msra.mxu0 %v440
    %3922 = vmatprep.subr.mxu0 %v459
    %3923 = vmatpush1.msra.mxu0 %v458
    %3924 = vmatprep.subr.mxu0 %v477
    %3925 = vmatpush1.msra.mxu0 %v476
    %3926 = vmatprep.subr.mxu0 %v495
    %3927 = vmatpush1.msra.mxu0 %v494
    %3928 = vmatprep.subr.mxu0 %v513
    %3929 = vmatpush1.msra.mxu0 %v512
    %3930 = vmatprep.subr.mxu0 %v531
    %3931 = vmatpush1.msra.mxu0 %v530
    %3932 = vmatprep.subr.mxu0 %v549
    %3933 = vmatpush1.msra.mxu0 %v548
    %3934 = vmatprep.subr.mxu0 %v567
    %3935 = vmatpush1.msra.mxu0 %v566
    %3936 = vmatprep.subr.mxu0 %v585
    %3937 = vmatpush1.msra.mxu0 %v584
    %3938 = vmatprep.subr.mxu0 %v603
    %3939 = vmatpush1.msra.mxu0 %v602
    %3940 = vmatprep.subr.mxu0 %v621
    %3941 = vmatpush1.msra.mxu0 %v620
    %3942 = vmatprep.subr.mxu0 %v639
    %3943 = vmatpush1.msra.mxu0 %v638
    %3944 = vmatprep.subr.mxu0 %v657
    %3945 = vmatpush1.msra.mxu0 %v656
    %3946 = vmatprep.mubr.f32.mxu0 %v3668
    %3947 = vmatmul.mubr.f32.gmra.mrb[0].mxu0 %v3667
    %v3948 = vpop.f32.mrb[0].mxu0
    %v3949 = vadd.f32 0.0, %v3948
    %v3950 = vpop.f32.mrb[0].mxu0
    %v3951 = vadd.f32 0.0, %v3950
    %3952 = vdwg.mxu0
    %3953 = vmatprep.subr.mxu0 %v101
    %3954 = vmatpush1.msra.mxu0 %v100
    %3955 = vmatprep.subr.mxu0 %v119
    %3956 = vmatpush1.msra.mxu0 %v118
    %3957 = vmatprep.subr.mxu0 %v137
    %3958 = vmatpush1.msra.mxu0 %v136
    %3959 = vmatprep.subr.mxu0 %v155
    %3960 = vmatpush1.msra.mxu0 %v154
    %3961 = vmatprep.subr.mxu0 %v173
    %3962 = vmatpush1.msra.mxu0 %v172
    %3963 = vmatprep.subr.mxu0 %v191
    %3964 = vmatpush1.msra.mxu0 %v190
    %3965 = vmatprep.subr.mxu0 %v209
    %3966 = vmatpush1.msra.mxu0 %v208
    %3967 = vmatprep.subr.mxu0 %v227
    %3968 = vmatpush1.msra.mxu0 %v226
    %3969 = vmatprep.subr.mxu0 %v245
    %3970 = vmatpush1.msra.mxu0 %v244
    %3971 = vmatprep.subr.mxu0 %v263
    %3972 = vmatpush1.msra.mxu0 %v262
    %3973 = vmatprep.subr.mxu0 %v281
    %3974 = vmatpush1.msra.mxu0 %v280
    %3975 = vmatprep.subr.mxu0 %v299
    %3976 = vmatpush1.msra.mxu0 %v298
    %3977 = vmatprep.subr.mxu0 %v317
    %3978 = vmatpush1.msra.mxu0 %v316
    %3979 = vmatprep.subr.mxu0 %v335
    %3980 = vmatpush1.msra.mxu0 %v334
    %3981 = vmatprep.subr.mxu0 %v353
    %3982 = vmatpush1.msra.mxu0 %v352
    %3983 = vmatprep.subr.mxu0 %v371
    %3984 = vmatpush1.msra.mxu0 %v370
    %3985 = vmatprep.subr.mxu0 %v389
    %3986 = vmatpush1.msra.mxu0 %v388
    %3987 = vmatprep.subr.mxu0 %v407
    %3988 = vmatpush1.msra.mxu0 %v406
    %3989 = vmatprep.subr.mxu0 %v425
    %3990 = vmatpush1.msra.mxu0 %v424
    %3991 = vmatprep.subr.mxu0 %v443
    %3992 = vmatpush1.msra.mxu0 %v442
    %3993 = vmatprep.subr.mxu0 %v461
    %3994 = vmatpush1.msra.mxu0 %v460
    %3995 = vmatprep.subr.mxu0 %v479
    %3996 = vmatpush1.msra.mxu0 %v478
    %3997 = vmatprep.subr.mxu0 %v497
    %3998 = vmatpush1.msra.mxu0 %v496
    %3999 = vmatprep.subr.mxu0 %v515
    %4000 = vmatpush1.msra.mxu0 %v514
    %4001 = vmatprep.subr.mxu0 %v533
    %4002 = vmatpush1.msra.mxu0 %v532
    %4003 = vmatprep.subr.mxu0 %v551
    %4004 = vmatpush1.msra.mxu0 %v550
    %4005 = vmatprep.subr.mxu0 %v569
    %4006 = vmatpush1.msra.mxu0 %v568
    %4007 = vmatprep.subr.mxu0 %v587
    %4008 = vmatpush1.msra.mxu0 %v586
    %4009 = vmatprep.subr.mxu0 %v605
    %4010 = vmatpush1.msra.mxu0 %v604
    %4011 = vmatprep.subr.mxu0 %v623
    %4012 = vmatpush1.msra.mxu0 %v622
    %4013 = vmatprep.subr.mxu0 %v641
    %4014 = vmatpush1.msra.mxu0 %v640
    %4015 = vmatprep.subr.mxu0 %v659
    %4016 = vmatpush1.msra.mxu0 %v658
    %4017 = vmatprep.mubr.f32.mxu0 %v3668
    %4018 = vmatmul.mubr.f32.gmra.mrb[0].mxu0 %v3667
    %v4019 = vpop.f32.mrb[0].mxu0
    %v4020 = vadd.f32 0.0, %v4019
    %v4021 = vpop.f32.mrb[0].mxu0
    %v4022 = vadd.f32 0.0, %v4021
    %4023 = vdwg.mxu0
    %4024 = vmatprep.subr.mxu0 %v103
    %4025 = vmatpush1.msra.mxu0 %v102
    %4026 = vmatprep.subr.mxu0 %v121
    %4027 = vmatpush1.msra.mxu0 %v120
    %4028 = vmatprep.subr.mxu0 %v139
    %4029 = vmatpush1.msra.mxu0 %v138
    %4030 = vmatprep.subr.mxu0 %v157
    %4031 = vmatpush1.msra.mxu0 %v156
    %4032 = vmatprep.subr.mxu0 %v175
    %4033 = vmatpush1.msra.mxu0 %v174
    %4034 = vmatprep.subr.mxu0 %v193
    %4035 = vmatpush1.msra.mxu0 %v192
    %4036 = vmatprep.subr.mxu0 %v211
    %4037 = vmatpush1.msra.mxu0 %v210
    %4038 = vmatprep.subr.mxu0 %v229
    %4039 = vmatpush1.msra.mxu0 %v228
    %4040 = vmatprep.subr.mxu0 %v247
    %4041 = vmatpush1.msra.mxu0 %v246
    %4042 = vmatprep.subr.mxu0 %v265
    %4043 = vmatpush1.msra.mxu0 %v264
    %4044 = vmatprep.subr.mxu0 %v283
    %4045 = vmatpush1.msra.mxu0 %v282
    %4046 = vmatprep.subr.mxu0 %v301
    %4047 = vmatpush1.msra.mxu0 %v300
    %4048 = vmatprep.subr.mxu0 %v319
    %4049 = vmatpush1.msra.mxu0 %v318
    %4050 = vmatprep.subr.mxu0 %v337
    %4051 = vmatpush1.msra.mxu0 %v336
    %4052 = vmatprep.subr.mxu0 %v355
    %4053 = vmatpush1.msra.mxu0 %v354
    %4054 = vmatprep.subr.mxu0 %v373
    %4055 = vmatpush1.msra.mxu0 %v372
    %4056 = vmatprep.subr.mxu0 %v391
    %4057 = vmatpush1.msra.mxu0 %v390
    %4058 = vmatprep.subr.mxu0 %v409
    %4059 = vmatpush1.msra.mxu0 %v408
    %4060 = vmatprep.subr.mxu0 %v427
    %4061 = vmatpush1.msra.mxu0 %v426
    %4062 = vmatprep.subr.mxu0 %v445
    %4063 = vmatpush1.msra.mxu0 %v444
    %4064 = vmatprep.subr.mxu0 %v463
    %4065 = vmatpush1.msra.mxu0 %v462
    %4066 = vmatprep.subr.mxu0 %v481
    %4067 = vmatpush1.msra.mxu0 %v480
    %4068 = vmatprep.subr.mxu0 %v499
    %4069 = vmatpush1.msra.mxu0 %v498
    %4070 = vmatprep.subr.mxu0 %v517
    %4071 = vmatpush1.msra.mxu0 %v516
    %4072 = vmatprep.subr.mxu0 %v535
    %4073 = vmatpush1.msra.mxu0 %v534
    %4074 = vmatprep.subr.mxu0 %v553
    %4075 = vmatpush1.msra.mxu0 %v552
    %4076 = vmatprep.subr.mxu0 %v571
    %4077 = vmatpush1.msra.mxu0 %v570
    %4078 = vmatprep.subr.mxu0 %v589
    %4079 = vmatpush1.msra.mxu0 %v588
    %4080 = vmatprep.subr.mxu0 %v607
    %4081 = vmatpush1.msra.mxu0 %v606
    %4082 = vmatprep.subr.mxu0 %v625
    %4083 = vmatpush1.msra.mxu0 %v624
    %4084 = vmatprep.subr.mxu0 %v643
    %4085 = vmatpush1.msra.mxu0 %v642
    %4086 = vmatprep.subr.mxu0 %v661
    %4087 = vmatpush1.msra.mxu0 %v660
    %4088 = vmatprep.mubr.f32.mxu0 %v3668
    %4089 = vmatmul.mubr.f32.gmra.mrb[0].mxu0 %v3667
    %v4090 = vpop.f32.mrb[0].mxu0
    %v4091 = vadd.f32 0.0, %v4090
    %v4092 = vpop.f32.mrb[0].mxu0
    %v4093 = vadd.f32 0.0, %v4092
    %4094 = vdwg.mxu0
    %4095 = vmatprep.subr.mxu0 %v105
    %4096 = vmatpush1.msra.mxu0 %v104
    %4097 = vmatprep.subr.mxu0 %v123
    %4098 = vmatpush1.msra.mxu0 %v122
    %4099 = vmatprep.subr.mxu0 %v141
    %4100 = vmatpush1.msra.mxu0 %v140
    %4101 = vmatprep.subr.mxu0 %v159
    %4102 = vmatpush1.msra.mxu0 %v158
    %4103 = vmatprep.subr.mxu0 %v177
    %4104 = vmatpush1.msra.mxu0 %v176
    %4105 = vmatprep.subr.mxu0 %v195
    %4106 = vmatpush1.msra.mxu0 %v194
    %4107 = vmatprep.subr.mxu0 %v213
    %4108 = vmatpush1.msra.mxu0 %v212
    %4109 = vmatprep.subr.mxu0 %v231
    %4110 = vmatpush1.msra.mxu0 %v230
    %4111 = vmatprep.subr.mxu0 %v249
    %4112 = vmatpush1.msra.mxu0 %v248
    %4113 = vmatprep.subr.mxu0 %v267
    %4114 = vmatpush1.msra.mxu0 %v266
    %4115 = vmatprep.subr.mxu0 %v285
    %4116 = vmatpush1.msra.mxu0 %v284
    %4117 = vmatprep.subr.mxu0 %v303
    %4118 = vmatpush1.msra.mxu0 %v302
    %4119 = vmatprep.subr.mxu0 %v321
    %4120 = vmatpush1.msra.mxu0 %v320
    %4121 = vmatprep.subr.mxu0 %v339
    %4122 = vmatpush1.msra.mxu0 %v338
    %4123 = vmatprep.subr.mxu0 %v357
    %4124 = vmatpush1.msra.mxu0 %v356
    %4125 = vmatprep.subr.mxu0 %v375
    %4126 = vmatpush1.msra.mxu0 %v374
    %4127 = vmatprep.subr.mxu0 %v393
    %4128 = vmatpush1.msra.mxu0 %v392
    %4129 = vmatprep.subr.mxu0 %v411
    %4130 = vmatpush1.msra.mxu0 %v410
    %4131 = vmatprep.subr.mxu0 %v429
    %4132 = vmatpush1.msra.mxu0 %v428
    %4133 = vmatprep.subr.mxu0 %v447
    %4134 = vmatpush1.msra.mxu0 %v446
    %4135 = vmatprep.subr.mxu0 %v465
    %4136 = vmatpush1.msra.mxu0 %v464
    %4137 = vmatprep.subr.mxu0 %v483
    %4138 = vmatpush1.msra.mxu0 %v482
    %4139 = vmatprep.subr.mxu0 %v501
    %4140 = vmatpush1.msra.mxu0 %v500
    %4141 = vmatprep.subr.mxu0 %v519
    %4142 = vmatpush1.msra.mxu0 %v518
    %4143 = vmatprep.subr.mxu0 %v537
    %4144 = vmatpush1.msra.mxu0 %v536
    %4145 = vmatprep.subr.mxu0 %v555
    %4146 = vmatpush1.msra.mxu0 %v554
    %4147 = vmatprep.subr.mxu0 %v573
    %4148 = vmatpush1.msra.mxu0 %v572
    %4149 = vmatprep.subr.mxu0 %v591
    %4150 = vmatpush1.msra.mxu0 %v590
    %4151 = vmatprep.subr.mxu0 %v609
    %4152 = vmatpush1.msra.mxu0 %v608
    %4153 = vmatprep.subr.mxu0 %v627
    %4154 = vmatpush1.msra.mxu0 %v626
    %4155 = vmatprep.subr.mxu0 %v645
    %4156 = vmatpush1.msra.mxu0 %v644
    %4157 = vmatprep.subr.mxu0 %v663
    %4158 = vmatpush1.msra.mxu0 %v662
    %4159 = vmatprep.mubr.f32.mxu0 %v3668
    %4160 = vmatmul.mubr.f32.gmra.mrb[0].mxu0 %v3667
    %v4161 = vpop.f32.mrb[0].mxu0
    %v4162 = vadd.f32 0.0, %v4161
    %v4163 = vpop.f32.mrb[0].mxu0
    %v4164 = vadd.f32 0.0, %v4163
    %4165 = vdwg.mxu0
    %4166 = vmatprep.subr.mxu0 %v107
    %4167 = vmatpush1.msra.mxu0 %v106
    %4168 = vmatprep.subr.mxu0 %v125
    %4169 = vmatpush1.msra.mxu0 %v124
    %4170 = vmatprep.subr.mxu0 %v143
    %4171 = vmatpush1.msra.mxu0 %v142
    %4172 = vmatprep.subr.mxu0 %v161
    %4173 = vmatpush1.msra.mxu0 %v160
    %4174 = vmatprep.subr.mxu0 %v179
    %4175 = vmatpush1.msra.mxu0 %v178
    %4176 = vmatprep.subr.mxu0 %v197
    %4177 = vmatpush1.msra.mxu0 %v196
    %4178 = vmatprep.subr.mxu0 %v215
    %4179 = vmatpush1.msra.mxu0 %v214
    %4180 = vmatprep.subr.mxu0 %v233
    %4181 = vmatpush1.msra.mxu0 %v232
    %4182 = vmatprep.subr.mxu0 %v251
    %4183 = vmatpush1.msra.mxu0 %v250
    %4184 = vmatprep.subr.mxu0 %v269
    %4185 = vmatpush1.msra.mxu0 %v268
    %4186 = vmatprep.subr.mxu0 %v287
    %4187 = vmatpush1.msra.mxu0 %v286
    %4188 = vmatprep.subr.mxu0 %v305
    %4189 = vmatpush1.msra.mxu0 %v304
    %4190 = vmatprep.subr.mxu0 %v323
    %4191 = vmatpush1.msra.mxu0 %v322
    %4192 = vmatprep.subr.mxu0 %v341
    %4193 = vmatpush1.msra.mxu0 %v340
    %4194 = vmatprep.subr.mxu0 %v359
    %4195 = vmatpush1.msra.mxu0 %v358
    %4196 = vmatprep.subr.mxu0 %v377
    %4197 = vmatpush1.msra.mxu0 %v376
    %4198 = vmatprep.subr.mxu0 %v395
    %4199 = vmatpush1.msra.mxu0 %v394
    %4200 = vmatprep.subr.mxu0 %v413
    %4201 = vmatpush1.msra.mxu0 %v412
    %4202 = vmatprep.subr.mxu0 %v431
    %4203 = vmatpush1.msra.mxu0 %v430
    %4204 = vmatprep.subr.mxu0 %v449
    %4205 = vmatpush1.msra.mxu0 %v448
    %4206 = vmatprep.subr.mxu0 %v467
    %4207 = vmatpush1.msra.mxu0 %v466
    %4208 = vmatprep.subr.mxu0 %v485
    %4209 = vmatpush1.msra.mxu0 %v484
    %4210 = vmatprep.subr.mxu0 %v503
    %4211 = vmatpush1.msra.mxu0 %v502
    %4212 = vmatprep.subr.mxu0 %v521
    %4213 = vmatpush1.msra.mxu0 %v520
    %4214 = vmatprep.subr.mxu0 %v539
    %4215 = vmatpush1.msra.mxu0 %v538
    %4216 = vmatprep.subr.mxu0 %v557
    %4217 = vmatpush1.msra.mxu0 %v556
    %4218 = vmatprep.subr.mxu0 %v575
    %4219 = vmatpush1.msra.mxu0 %v574
    %4220 = vmatprep.subr.mxu0 %v593
    %4221 = vmatpush1.msra.mxu0 %v592
    %4222 = vmatprep.subr.mxu0 %v611
    %4223 = vmatpush1.msra.mxu0 %v610
    %4224 = vmatprep.subr.mxu0 %v629
    %4225 = vmatpush1.msra.mxu0 %v628
    %4226 = vmatprep.subr.mxu0 %v647
    %4227 = vmatpush1.msra.mxu0 %v646
    %4228 = vmatprep.subr.mxu0 %v665
    %4229 = vmatpush1.msra.mxu0 %v664
    %4230 = vmatprep.mubr.f32.mxu0 %v3668
    %4231 = vmatmul.mubr.f32.gmra.mrb[0].mxu0 %v3667
    %v4232 = vpop.f32.mrb[0].mxu0
    %v4233 = vadd.f32 0.0, %v4232
    %v4234 = vpop.f32.mrb[0].mxu0
    %v4235 = vadd.f32 0.0, %v4234
    %4236 = vdwg.mxu0
    %4237 = vmatprep.subr.mxu0 %v109
    %4238 = vmatpush1.msra.mxu0 %v108
    %4239 = vmatprep.subr.mxu0 %v127
    %4240 = vmatpush1.msra.mxu0 %v126
    %4241 = vmatprep.subr.mxu0 %v145
    %4242 = vmatpush1.msra.mxu0 %v144
    %4243 = vmatprep.subr.mxu0 %v163
    %4244 = vmatpush1.msra.mxu0 %v162
    %4245 = vmatprep.subr.mxu0 %v181
    %4246 = vmatpush1.msra.mxu0 %v180
    %4247 = vmatprep.subr.mxu0 %v199
    %4248 = vmatpush1.msra.mxu0 %v198
    %4249 = vmatprep.subr.mxu0 %v217
    %4250 = vmatpush1.msra.mxu0 %v216
    %4251 = vmatprep.subr.mxu0 %v235
    %4252 = vmatpush1.msra.mxu0 %v234
    %4253 = vmatprep.subr.mxu0 %v253
    %4254 = vmatpush1.msra.mxu0 %v252
    %4255 = vmatprep.subr.mxu0 %v271
    %4256 = vmatpush1.msra.mxu0 %v270
    %4257 = vmatprep.subr.mxu0 %v289
    %4258 = vmatpush1.msra.mxu0 %v288
    %4259 = vmatprep.subr.mxu0 %v307
    %4260 = vmatpush1.msra.mxu0 %v306
    %4261 = vmatprep.subr.mxu0 %v325
    %4262 = vmatpush1.msra.mxu0 %v324
    %4263 = vmatprep.subr.mxu0 %v343
    %4264 = vmatpush1.msra.mxu0 %v342
    %4265 = vmatprep.subr.mxu0 %v361
    %4266 = vmatpush1.msra.mxu0 %v360
    %4267 = vmatprep.subr.mxu0 %v379
    %4268 = vmatpush1.msra.mxu0 %v378
    %4269 = vmatprep.subr.mxu0 %v397
    %4270 = vmatpush1.msra.mxu0 %v396
    %4271 = vmatprep.subr.mxu0 %v415
    %4272 = vmatpush1.msra.mxu0 %v414
    %4273 = vmatprep.subr.mxu0 %v433
    %4274 = vmatpush1.msra.mxu0 %v432
    %4275 = vmatprep.subr.mxu0 %v451
    %4276 = vmatpush1.msra.mxu0 %v450
    %4277 = vmatprep.subr.mxu0 %v469
    %4278 = vmatpush1.msra.mxu0 %v468
    %4279 = vmatprep.subr.mxu0 %v487
    %4280 = vmatpush1.msra.mxu0 %v486
    %4281 = vmatprep.subr.mxu0 %v505
    %4282 = vmatpush1.msra.mxu0 %v504
    %4283 = vmatprep.subr.mxu0 %v523
    %4284 = vmatpush1.msra.mxu0 %v522
    %4285 = vmatprep.subr.mxu0 %v541
    %4286 = vmatpush1.msra.mxu0 %v540
    %4287 = vmatprep.subr.mxu0 %v559
    %4288 = vmatpush1.msra.mxu0 %v558
    %4289 = vmatprep.subr.mxu0 %v577
    %4290 = vmatpush1.msra.mxu0 %v576
    %4291 = vmatprep.subr.mxu0 %v595
    %4292 = vmatpush1.msra.mxu0 %v594
    %4293 = vmatprep.subr.mxu0 %v613
    %4294 = vmatpush1.msra.mxu0 %v612
    %4295 = vmatprep.subr.mxu0 %v631
    %4296 = vmatpush1.msra.mxu0 %v630
    %4297 = vmatprep.subr.mxu0 %v649
    %4298 = vmatpush1.msra.mxu0 %v648
    %4299 = vmatprep.subr.mxu0 %v667
    %4300 = vmatpush1.msra.mxu0 %v666
    %4301 = vmatprep.mubr.f32.mxu0 %v3668
    %4302 = vmatmul.mubr.f32.gmra.mrb[0].mxu0 %v3667
    %v4303 = vpop.f32.mrb[0].mxu0
    %v4304 = vadd.f32 0.0, %v4303
    %v4305 = vpop.f32.mrb[0].mxu0
    %v4306 = vadd.f32 0.0, %v4305
    %4307 = vdwg.mxu0
    %s4308 = scalar_lea.vmem [#allocation5], 32
    %v4309 = vld [vmem:[%s4308] sm:$0xff]
    %s4310 = scalar_lea.vmem %s2, 32
    %v4311 = vld [vmem:[%s4310] sm:$0xff]
    %4313 = vset.pattern.permute.xlu0 0
    %4314 = vperm.xlu0 %4313, %v4311
    %v4315 = vpop.permute.xlu0 %4314
    %v4318 = vsel %vm1314, %v4309, 0
    %4320 = vmatprep.subr.mxu0 %v3738
    %4321 = vmatpush1.msra.mxu0 %v3736
    %4322 = vmatprep.subr.mxu0 %v3809
    %4323 = vmatpush1.msra.mxu0 %v3807
    %4324 = vmatprep.subr.mxu0 %v3880
    %4325 = vmatpush1.msra.mxu0 %v3878
    %4326 = vmatprep.subr.mxu0 %v3951
    %4327 = vmatpush1.msra.mxu0 %v3949
    %4328 = vmatprep.subr.mxu0 %v4022
    %4329 = vmatpush1.msra.mxu0 %v4020
    %4330 = vmatprep.subr.mxu0 %v4093
    %4331 = vmatpush1.msra.mxu0 %v4091
    %4332 = vmatprep.subr.mxu0 %v4164
    %4333 = vmatpush1.msra.mxu0 %v4162
    %4334 = vmatprep.subr.mxu0 %v4235
    %4335 = vmatpush1.msra.mxu0 %v4233
    %4336 = vmatprep.subr.mxu0 %v4306
    %4337 = vmatpush1.msra.mxu0 %v4304
    %4338 = vmatprep.subr.mxu0 0.0
    %4339 = vmatpush1.msra.mxu0 0.0
    %4340 = vmatprep.subr.mxu0 0.0
    %4341 = vmatpush1.msra.mxu0 0.0
    %4342 = vmatprep.subr.mxu0 0.0
    %4343 = vmatpush1.msra.mxu0 0.0
    %4344 = vmatprep.subr.mxu0 0.0
    %4345 = vmatpush1.msra.mxu0 0.0
    %4346 = vmatprep.subr.mxu0 0.0
    %4347 = vmatpush1.msra.mxu0 0.0
    %4348 = vmatprep.subr.mxu0 0.0
    %4349 = vmatpush1.msra.mxu0 0.0
    %4350 = vmatprep.subr.mxu0 0.0
    %4351 = vmatpush1.msra.mxu0 0.0
    %4352 = vmatprep.subr.mxu0 0.0
    %4353 = vmatpush1.msra.mxu0 0.0
    %4354 = vmatprep.subr.mxu0 0.0
    %4355 = vmatpush1.msra.mxu0 0.0
    %4356 = vmatprep.subr.mxu0 0.0
    %4357 = vmatpush1.msra.mxu0 0.0
    %4358 = vmatprep.subr.mxu0 0.0
    %4359 = vmatpush1.msra.mxu0 0.0
    %4360 = vmatprep.subr.mxu0 0.0
    %4361 = vmatpush1.msra.mxu0 0.0
    %4362 = vmatprep.subr.mxu0 0.0
    %4363 = vmatpush1.msra.mxu0 0.0
    %4364 = vmatprep.subr.mxu0 0.0
    %4365 = vmatpush1.msra.mxu0 0.0
    %4366 = vmatprep.subr.mxu0 0.0
    %4367 = vmatpush1.msra.mxu0 0.0
    %4368 = vmatprep.subr.mxu0 0.0
    %4369 = vmatpush1.msra.mxu0 0.0
    %4370 = vmatprep.subr.mxu0 0.0
    %4371 = vmatpush1.msra.mxu0 0.0
    %4372 = vmatprep.subr.mxu0 0.0
    %4373 = vmatpush1.msra.mxu0 0.0
    %4374 = vmatprep.subr.mxu0 0.0
    %4375 = vmatpush1.msra.mxu0 0.0
    %4376 = vmatprep.subr.mxu0 0.0
    %4377 = vmatpush1.msra.mxu0 0.0
    %4378 = vmatprep.subr.mxu0 0.0
    %4379 = vmatpush1.msra.mxu0 0.0
    %4380 = vmatprep.subr.mxu0 0.0
    %4381 = vmatpush1.msra.mxu0 0.0
    %4382 = vmatprep.subr.mxu0 0.0
    %4383 = vmatpush1.msra.mxu0 0.0
    %4384 = vmatprep.mubr.f32.mxu0 0.0
    %4385 = vmatmul.mubr.f32.gmra.mrb[0].mxu0 %v4318
    %v4386 = vpop.f32.mrb[0].mxu0
    %v4387 = vadd.f32 %v4315, %v4386
    %v4388 = vpop.f32.mrb[0].mxu0
    %v4389 = vadd.f32 %v4315, %v4388
    %4390 = vdwg.mxu0
    %v4391 = vmax.f32 %v4387, 0.0
    %v4392 = vmax.f32 %v4389, 0.0
    %v4393 = vadd.f32 %v4391, %v90
    %v4394 = vadd.f32 %v4392, %v91
    %4395 = vst [vmem:[#allocation11] sm:$0xff] %v4393
    %4396 = vst [vmem:[#allocation11 + $0x8] sm:$0xff] %v4394
    // Predicated region
    $region46: #{tpu_custom_call.1} parent=1 // pred_check
      _
    $region47: #{tpu_custom_call.1} parent=1 // pred_check_branch
      %4398 = sbr.rel (0) target = $region49
    $region48: #{tpu_custom_call.1} parent=1 // pred_region
      %s4400 = ssub.s32 256, 256
      %4401 = vsyncadd [#allocation4], %s4400
      %s4403 = sshll.u32 [#allocation11], 4
      %s4404 = int_to_ptr.vmem [resolvable:$true] %s4403
      %4406 = dma.vmem_to_hbm [thread:$0]  %s4404, 256, %s6, [#allocation4]
    $region49: #{tpu_custom_call.1} parent=1 // pred_fallthru
      _
    // Predicated region
    $region50: #{tpu_custom_call.1} parent=1 // pred_check
      _
    $region51: #{tpu_custom_call.1} parent=1 // pred_check_branch
      %4408 = sbr.rel (0) target = $region53
    $region52: #{tpu_custom_call.1} parent=1 // pred_region
      %4409 = dma.done [#allocation4], 256
    $region53: #{tpu_custom_call.1} parent=1 // pred_fallthru
      _
    %4410 = vsyncpa [#allocation3], 1
    %4411 = vsyncpa [#allocation6], 1
    %4412 = vsyncpa [#allocation9], 1
    %4413 = vsyncpa [#allocation4], 1

</llo_original>
